<compile_context>
chip_gen: v5e
topology: v5e:2x2
jax: 0.10.0
libtpu: 0.0.40
codegen_flags: <defaults>
</compile_context>

<pallas_src>
import jax
import jax.numpy as jnp
from jax.experimental import pallas as pl
from jax.experimental.pallas import tpu as pltpu

# --- problem constants (from the PyTorch module) ---
GROUPS = 16
CG_IN = 120            # 1920 / 16
CG_OUT = 120
KH = KW = 3
STRIDE = 2
PAD = 1
H = W = 14
OH = OW = (H + 2 * PAD - KH) // STRIDE + 1   # 7

# --- TPU-aligned padded sizes ---
CPAD = 128             # per-group channels 120 -> 128 (lane dim)
OHP = OWP = 8          # output spatial 7 -> 8   (M = 64 = 8 full sublane tiles)
MPAD = OHP * OWP       # 64 rows per group in the matmul
NPH = 9                # phase-grid extent: padded H/W = 18 = 2 * 9
NTAPS = KH * KW        # 9
GROUPS_PER_STEP = 4    # grid = (4,)


def _relu_gconv_kernel(x_ref, w_ref, o_ref):
    # x_ref: [Gb, 4, 9, 9, 128]  phase-split spatially-padded channel-padded input (pre-ReLU):
    #                            x_ref[g, ph*2+pw, i, j, c] = x_pad[g, 2*i+ph, 2*j+pw, c]
    # w_ref: [Gb, 9, 128, 128]   per-tap weights [ci, co], tap index = kh*3 + kw
    # o_ref: [Gb, 64, 128]       row index m = oh*8 + ow
    gb = x_ref.shape[0]
    for gi in range(gb):                                   # static unroll over groups in block
        acc = jnp.zeros((MPAD, CPAD), jnp.float32)
        for kh in range(KH):                               # static unroll over the 9 taps
            for kw in range(KW):
                p = (kh % 2) * 2 + (kw % 2)                # phase of this tap
                i0, j0 = kh // 2, kw // 2                  # contiguous (stride-1) offsets
                patch = x_ref[gi, p, i0:i0 + OHP, j0:j0 + OWP, :]      # [8, 8, 128]
                patch = jnp.maximum(patch, 0.0)            # fused ReLU (zero pad is invariant)
                patch = patch.reshape(MPAD, CPAD)          # layout-preserving collapse -> [64,128]
                acc += jnp.dot(patch, w_ref[gi, kh * KW + kw],
                               preferred_element_type=jnp.float32)
        o_ref[gi] = acc.astype(o_ref.dtype)


def prepare_weights(w_oihw):
    """One-time (init-time) weight relayout; keep OUT of the per-call hot path.

    [Cout, Cg_in, KH, KW] -> [G, 9, CPAD(ci), CPAD(co)] with zero-padded channels.
    """
    wg = w_oihw.reshape(GROUPS, CG_OUT, CG_IN, KH, KW)
    wg = wg.transpose(0, 3, 4, 2, 1)                       # [G, kh, kw, ci, co]
    wg = jnp.pad(wg, ((0, 0), (0, 0), (0, 0),
                      (0, CPAD - CG_IN), (0, CPAD - CG_OUT)))
    return wg.reshape(GROUPS, NTAPS, CPAD, CPAD).astype(jnp.float32)


def relu_grouped_conv2d(x_nchw, wg_prepared):
    """ReLU followed by grouped Conv2d (no bias), matching PyTorch semantics."""
    # --- glue (single relayout pass): spatial pad to 18x18, group-major, phase split, lane pad ---
    pad_hi = 2 * NPH - H - PAD                             # 3: right/bottom pad so 18 = 2*9
    xp = jnp.pad(x_nchw[0], ((0, 0), (PAD, pad_hi), (PAD, pad_hi)))      # [1920, 18, 18]
    xg = xp.reshape(GROUPS, CG_IN, NPH, 2, NPH, 2)         # [g, ch, i, ph, j, pw]
    xg = xg.transpose(0, 3, 5, 2, 4, 1)                    # [g, ph, pw, i, j, ch]
    xg = xg.reshape(GROUPS, 4, NPH, NPH, CG_IN)
    xg = jnp.pad(xg, ((0, 0), (0, 0), (0, 0), (0, 0), (0, CPAD - CG_IN)))  # [16, 4, 9, 9, 128]

    out_g = pl.pallas_call(
        _relu_gconv_kernel,
        out_shape=jax.ShapeDtypeStruct((GROUPS, MPAD, CPAD), jnp.float32),
        grid_spec=pltpu.PrefetchScalarGridSpec(
            num_scalar_prefetch=0,
            grid=(GROUPS // GROUPS_PER_STEP,),
            in_specs=[
                pl.BlockSpec((GROUPS_PER_STEP, 4, NPH, NPH, CPAD),
                             lambda g: (g, 0, 0, 0, 0)),
                pl.BlockSpec((GROUPS_PER_STEP, NTAPS, CPAD, CPAD),
                             lambda g: (g, 0, 0, 0)),
            ],
            out_specs=pl.BlockSpec((GROUPS_PER_STEP, MPAD, CPAD),
                                   lambda g: (g, 0, 0)),
        ),
        compiler_params=pltpu.CompilerParams(
            dimension_semantics=("parallel",),
        ),
    )(xg, wg_prepared)                                     # [16, 64, 128]

    # --- glue: drop pads, back to NCHW ---
    out = out_g.reshape(GROUPS, OHP, OWP, CPAD)[:, :OH, :OW, :CG_OUT]     # [16, 7, 7, 120]
    out = out.transpose(0, 3, 1, 2).reshape(1, GROUPS * CG_OUT, OH, OW)
    return out.astype(x_nchw.dtype)


if __name__ == "__main__":
    key = jax.random.PRNGKey(0)
    kx, kw_key = jax.random.split(key)

    # Module-implied shapes: input [1, 1920, 14, 14]; Conv2d weight [1920, 120, 3, 3] (groups=16).
    x = jax.random.normal(kx, (1, 1920, 14, 14), dtype=jnp.float32)
    w = jax.random.normal(kw_key, (1920, 1920 // 16, 3, 3), dtype=jnp.float32) * 0.05

    # Init-time weight prep (hoisted out of the per-call path).
    wg = jax.block_until_ready(prepare_weights(w))

    fwd = jax.jit(relu_grouped_conv2d)
    out = jax.block_until_ready(fwd(x, wg))
    assert out.shape == (1, 1920, 7, 7), out.shape

    # Cross-check against XLA's grouped conv on relu(x).
    ref = jax.lax.conv_general_dilated(
        jnp.maximum(x, 0.0), w,
        window_strides=(2, 2), padding=((1, 1), (1, 1)),
        dimension_numbers=("NCHW", "OIHW", "NCHW"),
        feature_group_count=16,
    )
    ref = jax.block_until_ready(ref)
    assert jnp.allclose(out, ref, rtol=2e-3, atol=2e-3), float(jnp.max(jnp.abs(out - ref)))

    print("KERNEL_OK")
</pallas_src>

<mosaic_0001>
module attributes {stable_mosaic.version = 11 : i64} {
  func.func @_relu_gconv_kernel(%arg0: i32, %arg1: memref<4x4x9x9x128xf32, #tpu.memory_space<vmem>>, %arg2: memref<4x9x128x128xf32, #tpu.memory_space<vmem>>, %arg3: memref<4x64x128xf32, #tpu.memory_space<vmem>>) attributes {dimension_semantics = [#tpu.dimension_semantics<parallel>], iteration_bounds = array<i64: 4>, scalar_prefetch = 0 : i64, scratch_operands = 0 : i64, tpu.core_type = #tpu.core_type<tc>, window_params = [{transform_indices = @transform_0, window_bounds = array<i64: 4, 4, 9, 9, 128>}, {transform_indices = @transform_1, window_bounds = array<i64: 4, 9, 128, 128>}, {transform_indices = @transform_2, window_bounds = array<i64: 4, 64, 128>}]} {
    %cst = arith.constant 0.000000e+00 : f32
    %0 = vector.broadcast %cst : f32 to vector<64x128xf32>
    %c0 = arith.constant 0 : index
    %c0_0 = arith.constant 0 : index
    %c0_1 = arith.constant 0 : index
    %c0_2 = arith.constant 0 : index
    %c0_3 = arith.constant 0 : index
    %1 = vector.load %arg1[%c0, %c0_0, %c0_1, %c0_2, %c0_3] : memref<4x4x9x9x128xf32, #tpu.memory_space<vmem>>, vector<1x1x8x8x128xf32>
    %2 = vector.shape_cast %1 : vector<1x1x8x8x128xf32> to vector<8x8x128xf32>
    %cst_4 = arith.constant 0.000000e+00 : f32
    %3 = vector.broadcast %cst_4 : f32 to vector<8x8x128xf32>
    %4 = arith.maximumf %2, %3 : vector<8x8x128xf32>
    %5 = vector.shape_cast %4 : vector<8x8x128xf32> to vector<64x128xf32>
    %c0_5 = arith.constant 0 : index
    %c0_6 = arith.constant 0 : index
    %c0_7 = arith.constant 0 : index
    %c0_8 = arith.constant 0 : index
    %6 = vector.load %arg2[%c0_5, %c0_6, %c0_7, %c0_8] : memref<4x9x128x128xf32, #tpu.memory_space<vmem>>, vector<1x1x128x128xf32>
    %7 = vector.shape_cast %6 : vector<1x1x128x128xf32> to vector<128x128xf32>
    %cst_9 = arith.constant dense<0.000000e+00> : vector<64x128xf32>
    %8 = tpu.matmul %5, %7, %cst_9 {dimension_numbers = #tpu.dot_dimension_numbers<[1], [0], [0], [1], [0, 0, 1, 1], [], []>} : vector<64x128xf32>, vector<128x128xf32>, vector<64x128xf32> -> vector<64x128xf32>
    %9 = arith.addf %0, %8 : vector<64x128xf32>
    %c0_10 = arith.constant 0 : index
    %c1 = arith.constant 1 : index
    %c0_11 = arith.constant 0 : index
    %c0_12 = arith.constant 0 : index
    %c0_13 = arith.constant 0 : index
    %10 = vector.load %arg1[%c0_10, %c1, %c0_11, %c0_12, %c0_13] : memref<4x4x9x9x128xf32, #tpu.memory_space<vmem>>, vector<1x1x8x8x128xf32>
    %11 = vector.shape_cast %10 : vector<1x1x8x8x128xf32> to vector<8x8x128xf32>
    %cst_14 = arith.constant 0.000000e+00 : f32
    %12 = vector.broadcast %cst_14 : f32 to vector<8x8x128xf32>
    %13 = arith.maximumf %11, %12 : vector<8x8x128xf32>
    %14 = vector.shape_cast %13 : vector<8x8x128xf32> to vector<64x128xf32>
    %c0_15 = arith.constant 0 : index
    %c1_16 = arith.constant 1 : index
    %c0_17 = arith.constant 0 : index
    %c0_18 = arith.constant 0 : index
    %15 = vector.load %arg2[%c0_15, %c1_16, %c0_17, %c0_18] : memref<4x9x128x128xf32, #tpu.memory_space<vmem>>, vector<1x1x128x128xf32>
    %16 = vector.shape_cast %15 : vector<1x1x128x128xf32> to vector<128x128xf32>
    %cst_19 = arith.constant dense<0.000000e+00> : vector<64x128xf32>
    %17 = tpu.matmul %14, %16, %cst_19 {dimension_numbers = #tpu.dot_dimension_numbers<[1], [0], [0], [1], [0, 0, 1, 1], [], []>} : vector<64x128xf32>, vector<128x128xf32>, vector<64x128xf32> -> vector<64x128xf32>
    %18 = arith.addf %9, %17 : vector<64x128xf32>
    %c0_20 = arith.constant 0 : index
    %c0_21 = arith.constant 0 : index
    %c0_22 = arith.constant 0 : index
    %c1_23 = arith.constant 1 : index
    %c0_24 = arith.constant 0 : index
    %19 = vector.load %arg1[%c0_20, %c0_21, %c0_22, %c1_23, %c0_24] : memref<4x4x9x9x128xf32, #tpu.memory_space<vmem>>, vector<1x1x8x8x128xf32>
    %20 = vector.shape_cast %19 : vector<1x1x8x8x128xf32> to vector<8x8x128xf32>
    %cst_25 = arith.constant 0.000000e+00 : f32
    %21 = vector.broadcast %cst_25 : f32 to vector<8x8x128xf32>
    %22 = arith.maximumf %20, %21 : vector<8x8x128xf32>
    %23 = vector.shape_cast %22 : vector<8x8x128xf32> to vector<64x128xf32>
    %c0_26 = arith.constant 0 : index
    %c2 = arith.constant 2 : index
    %c0_27 = arith.constant 0 : index
    %c0_28 = arith.constant 0 : index
    %24 = vector.load %arg2[%c0_26, %c2, %c0_27, %c0_28] : memref<4x9x128x128xf32, #tpu.memory_space<vmem>>, vector<1x1x128x128xf32>
    %25 = vector.shape_cast %24 : vector<1x1x128x128xf32> to vector<128x128xf32>
    %cst_29 = arith.constant dense<0.000000e+00> : vector<64x128xf32>
    %26 = tpu.matmul %23, %25, %cst_29 {dimension_numbers = #tpu.dot_dimension_numbers<[1], [0], [0], [1], [0, 0, 1, 1], [], []>} : vector<64x128xf32>, vector<128x128xf32>, vector<64x128xf32> -> vector<64x128xf32>
    %27 = arith.addf %18, %26 : vector<64x128xf32>
    %c0_30 = arith.constant 0 : index
    %c2_31 = arith.constant 2 : index
    %c0_32 = arith.constant 0 : index
    %c0_33 = arith.constant 0 : index
    %c0_34 = arith.constant 0 : index
    %28 = vector.load %arg1[%c0_30, %c2_31, %c0_32, %c0_33, %c0_34] : memref<4x4x9x9x128xf32, #tpu.memory_space<vmem>>, vector<1x1x8x8x128xf32>
    %29 = vector.shape_cast %28 : vector<1x1x8x8x128xf32> to vector<8x8x128xf32>
    %cst_35 = arith.constant 0.000000e+00 : f32
    %30 = vector.broadcast %cst_35 : f32 to vector<8x8x128xf32>
    %31 = arith.maximumf %29, %30 : vector<8x8x128xf32>
    %32 = vector.shape_cast %31 : vector<8x8x128xf32> to vector<64x128xf32>
    %c0_36 = arith.constant 0 : index
    %c3 = arith.constant 3 : index
    %c0_37 = arith.constant 0 : index
    %c0_38 = arith.constant 0 : index
    %33 = vector.load %arg2[%c0_36, %c3, %c0_37, %c0_38] : memref<4x9x128x128xf32, #tpu.memory_space<vmem>>, vector<1x1x128x128xf32>
    %34 = vector.shape_cast %33 : vector<1x1x128x128xf32> to vector<128x128xf32>
    %cst_39 = arith.constant dense<0.000000e+00> : vector<64x128xf32>
    %35 = tpu.matmul %32, %34, %cst_39 {dimension_numbers = #tpu.dot_dimension_numbers<[1], [0], [0], [1], [0, 0, 1, 1], [], []>} : vector<64x128xf32>, vector<128x128xf32>, vector<64x128xf32> -> vector<64x128xf32>
    %36 = arith.addf %27, %35 : vector<64x128xf32>
    %c0_40 = arith.constant 0 : index
    %c3_41 = arith.constant 3 : index
    %c0_42 = arith.constant 0 : index
    %c0_43 = arith.constant 0 : index
    %c0_44 = arith.constant 0 : index
    %37 = vector.load %arg1[%c0_40, %c3_41, %c0_42, %c0_43, %c0_44] : memref<4x4x9x9x128xf32, #tpu.memory_space<vmem>>, vector<1x1x8x8x128xf32>
    %38 = vector.shape_cast %37 : vector<1x1x8x8x128xf32> to vector<8x8x128xf32>
    %cst_45 = arith.constant 0.000000e+00 : f32
    %39 = vector.broadcast %cst_45 : f32 to vector<8x8x128xf32>
    %40 = arith.maximumf %38, %39 : vector<8x8x128xf32>
    %41 = vector.shape_cast %40 : vector<8x8x128xf32> to vector<64x128xf32>
    %c0_46 = arith.constant 0 : index
    %c4 = arith.constant 4 : index
    %c0_47 = arith.constant 0 : index
    %c0_48 = arith.constant 0 : index
    %42 = vector.load %arg2[%c0_46, %c4, %c0_47, %c0_48] : memref<4x9x128x128xf32, #tpu.memory_space<vmem>>, vector<1x1x128x128xf32>
    %43 = vector.shape_cast %42 : vector<1x1x128x128xf32> to vector<128x128xf32>
    %cst_49 = arith.constant dense<0.000000e+00> : vector<64x128xf32>
    %44 = tpu.matmul %41, %43, %cst_49 {dimension_numbers = #tpu.dot_dimension_numbers<[1], [0], [0], [1], [0, 0, 1, 1], [], []>} : vector<64x128xf32>, vector<128x128xf32>, vector<64x128xf32> -> vector<64x128xf32>
    %45 = arith.addf %36, %44 : vector<64x128xf32>
    %c0_50 = arith.constant 0 : index
    %c2_51 = arith.constant 2 : index
    %c0_52 = arith.constant 0 : index
    %c1_53 = arith.constant 1 : index
    %c0_54 = arith.constant 0 : index
    %46 = vector.load %arg1[%c0_50, %c2_51, %c0_52, %c1_53, %c0_54] : memref<4x4x9x9x128xf32, #tpu.memory_space<vmem>>, vector<1x1x8x8x128xf32>
    %47 = vector.shape_cast %46 : vector<1x1x8x8x128xf32> to vector<8x8x128xf32>
    %cst_55 = arith.constant 0.000000e+00 : f32
    %48 = vector.broadcast %cst_55 : f32 to vector<8x8x128xf32>
    %49 = arith.maximumf %47, %48 : vector<8x8x128xf32>
    %50 = vector.shape_cast %49 : vector<8x8x128xf32> to vector<64x128xf32>
    %c0_56 = arith.constant 0 : index
    %c5 = arith.constant 5 : index
    %c0_57 = arith.constant 0 : index
    %c0_58 = arith.constant 0 : index
    %51 = vector.load %arg2[%c0_56, %c5, %c0_57, %c0_58] : memref<4x9x128x128xf32, #tpu.memory_space<vmem>>, vector<1x1x128x128xf32>
    %52 = vector.shape_cast %51 : vector<1x1x128x128xf32> to vector<128x128xf32>
    %cst_59 = arith.constant dense<0.000000e+00> : vector<64x128xf32>
    %53 = tpu.matmul %50, %52, %cst_59 {dimension_numbers = #tpu.dot_dimension_numbers<[1], [0], [0], [1], [0, 0, 1, 1], [], []>} : vector<64x128xf32>, vector<128x128xf32>, vector<64x128xf32> -> vector<64x128xf32>
    %54 = arith.addf %45, %53 : vector<64x128xf32>
    %c0_60 = arith.constant 0 : index
    %c0_61 = arith.constant 0 : index
    %c1_62 = arith.constant 1 : index
    %c0_63 = arith.constant 0 : index
    %c0_64 = arith.constant 0 : index
    %55 = vector.load %arg1[%c0_60, %c0_61, %c1_62, %c0_63, %c0_64] : memref<4x4x9x9x128xf32, #tpu.memory_space<vmem>>, vector<1x1x8x8x128xf32>
    %56 = vector.shape_cast %55 : vector<1x1x8x8x128xf32> to vector<8x8x128xf32>
    %cst_65 = arith.constant 0.000000e+00 : f32
    %57 = vector.broadcast %cst_65 : f32 to vector<8x8x128xf32>
    %58 = arith.maximumf %56, %57 : vector<8x8x128xf32>
    %59 = vector.shape_cast %58 : vector<8x8x128xf32> to vector<64x128xf32>
    %c0_66 = arith.constant 0 : index
    %c6 = arith.constant 6 : index
    %c0_67 = arith.constant 0 : index
    %c0_68 = arith.constant 0 : index
    %60 = vector.load %arg2[%c0_66, %c6, %c0_67, %c0_68] : memref<4x9x128x128xf32, #tpu.memory_space<vmem>>, vector<1x1x128x128xf32>
    %61 = vector.shape_cast %60 : vector<1x1x128x128xf32> to vector<128x128xf32>
    %cst_69 = arith.constant dense<0.000000e+00> : vector<64x128xf32>
    %62 = tpu.matmul %59, %61, %cst_69 {dimension_numbers = #tpu.dot_dimension_numbers<[1], [0], [0], [1], [0, 0, 1, 1], [], []>} : vector<64x128xf32>, vector<128x128xf32>, vector<64x128xf32> -> vector<64x128xf32>
    %63 = arith.addf %54, %62 : vector<64x128xf32>
    %c0_70 = arith.constant 0 : index
    %c1_71 = arith.constant 1 : index
    %c1_72 = arith.constant 1 : index
    %c0_73 = arith.constant 0 : index
    %c0_74 = arith.constant 0 : index
    %64 = vector.load %arg1[%c0_70, %c1_71, %c1_72, %c0_73, %c0_74] : memref<4x4x9x9x128xf32, #tpu.memory_space<vmem>>, vector<1x1x8x8x128xf32>
    %65 = vector.shape_cast %64 : vector<1x1x8x8x128xf32> to vector<8x8x128xf32>
    %cst_75 = arith.constant 0.000000e+00 : f32
    %66 = vector.broadcast %cst_75 : f32 to vector<8x8x128xf32>
    %67 = arith.maximumf %65, %66 : vector<8x8x128xf32>
    %68 = vector.shape_cast %67 : vector<8x8x128xf32> to vector<64x128xf32>
    %c0_76 = arith.constant 0 : index
    %c7 = arith.constant 7 : index
    %c0_77 = arith.constant 0 : index
    %c0_78 = arith.constant 0 : index
    %69 = vector.load %arg2[%c0_76, %c7, %c0_77, %c0_78] : memref<4x9x128x128xf32, #tpu.memory_space<vmem>>, vector<1x1x128x128xf32>
    %70 = vector.shape_cast %69 : vector<1x1x128x128xf32> to vector<128x128xf32>
    %cst_79 = arith.constant dense<0.000000e+00> : vector<64x128xf32>
    %71 = tpu.matmul %68, %70, %cst_79 {dimension_numbers = #tpu.dot_dimension_numbers<[1], [0], [0], [1], [0, 0, 1, 1], [], []>} : vector<64x128xf32>, vector<128x128xf32>, vector<64x128xf32> -> vector<64x128xf32>
    %72 = arith.addf %63, %71 : vector<64x128xf32>
    %c0_80 = arith.constant 0 : index
    %c0_81 = arith.constant 0 : index
    %c1_82 = arith.constant 1 : index
    %c1_83 = arith.constant 1 : index
    %c0_84 = arith.constant 0 : index
    %73 = vector.load %arg1[%c0_80, %c0_81, %c1_82, %c1_83, %c0_84] : memref<4x4x9x9x128xf32, #tpu.memory_space<vmem>>, vector<1x1x8x8x128xf32>
    %74 = vector.shape_cast %73 : vector<1x1x8x8x128xf32> to vector<8x8x128xf32>
    %cst_85 = arith.constant 0.000000e+00 : f32
    %75 = vector.broadcast %cst_85 : f32 to vector<8x8x128xf32>
    %76 = arith.maximumf %74, %75 : vector<8x8x128xf32>
    %77 = vector.shape_cast %76 : vector<8x8x128xf32> to vector<64x128xf32>
    %c0_86 = arith.constant 0 : index
    %c8 = arith.constant 8 : index
    %c0_87 = arith.constant 0 : index
    %c0_88 = arith.constant 0 : index
    %78 = vector.load %arg2[%c0_86, %c8, %c0_87, %c0_88] : memref<4x9x128x128xf32, #tpu.memory_space<vmem>>, vector<1x1x128x128xf32>
    %79 = vector.shape_cast %78 : vector<1x1x128x128xf32> to vector<128x128xf32>
    %cst_89 = arith.constant dense<0.000000e+00> : vector<64x128xf32>
    %80 = tpu.matmul %77, %79, %cst_89 {dimension_numbers = #tpu.dot_dimension_numbers<[1], [0], [0], [1], [0, 0, 1, 1], [], []>} : vector<64x128xf32>, vector<128x128xf32>, vector<64x128xf32> -> vector<64x128xf32>
    %81 = arith.addf %72, %80 : vector<64x128xf32>
    %c0_90 = arith.constant 0 : index
    %c0_91 = arith.constant 0 : index
    %c0_92 = arith.constant 0 : index
    %82 = vector.load %arg3[%c0_90, %c0_91, %c0_92] : memref<4x64x128xf32, #tpu.memory_space<vmem>>, vector<1x64x128xf32>
    %83 = vector.shape_cast %82 : vector<1x64x128xf32> to vector<64x128xf32>
    %84 = vector.shape_cast %81 : vector<64x128xf32> to vector<1x64x128xf32>
    tpu.vector_store %arg3[%c0_90, %c0_91, %c0_92], %84 {strides = array<i32>} : memref<4x64x128xf32, #tpu.memory_space<vmem>>, vector<1x64x128xf32>,
    %cst_93 = arith.constant 0.000000e+00 : f32
    %85 = vector.broadcast %cst_93 : f32 to vector<64x128xf32>
    %c1_94 = arith.constant 1 : index
    %c0_95 = arith.constant 0 : index
    %c0_96 = arith.constant 0 : index
    %c0_97 = arith.constant 0 : index
    %c0_98 = arith.constant 0 : index
    %86 = vector.load %arg1[%c1_94, %c0_95, %c0_96, %c0_97, %c0_98] : memref<4x4x9x9x128xf32, #tpu.memory_space<vmem>>, vector<1x1x8x8x128xf32>
    %87 = vector.shape_cast %86 : vector<1x1x8x8x128xf32> to vector<8x8x128xf32>
    %cst_99 = arith.constant 0.000000e+00 : f32
    %88 = vector.broadcast %cst_99 : f32 to vector<8x8x128xf32>
    %89 = arith.maximumf %87, %88 : vector<8x8x128xf32>
    %90 = vector.shape_cast %89 : vector<8x8x128xf32> to vector<64x128xf32>
    %c1_100 = arith.constant 1 : index
    %c0_101 = arith.constant 0 : index
    %c0_102 = arith.constant 0 : index
    %c0_103 = arith.constant 0 : index
    %91 = vector.load %arg2[%c1_100, %c0_101, %c0_102, %c0_103] : memref<4x9x128x128xf32, #tpu.memory_space<vmem>>, vector<1x1x128x128xf32>
    %92 = vector.shape_cast %91 : vector<1x1x128x128xf32> to vector<128x128xf32>
    %cst_104 = arith.constant dense<0.000000e+00> : vector<64x128xf32>
    %93 = tpu.matmul %90, %92, %cst_104 {dimension_numbers = #tpu.dot_dimension_numbers<[1], [0], [0], [1], [0, 0, 1, 1], [], []>} : vector<64x128xf32>, vector<128x128xf32>, vector<64x128xf32> -> vector<64x128xf32>
    %94 = arith.addf %85, %93 : vector<64x128xf32>
    %c1_105 = arith.constant 1 : index
    %c1_106 = arith.constant 1 : index
    %c0_107 = arith.constant 0 : index
    %c0_108 = arith.constant 0 : index
    %c0_109 = arith.constant 0 : index
    %95 = vector.load %arg1[%c1_105, %c1_106, %c0_107, %c0_108, %c0_109] : memref<4x4x9x9x128xf32, #tpu.memory_space<vmem>>, vector<1x1x8x8x128xf32>
    %96 = vector.shape_cast %95 : vector<1x1x8x8x128xf32> to vector<8x8x128xf32>
    %cst_110 = arith.constant 0.000000e+00 : f32
    %97 = vector.broadcast %cst_110 : f32 to vector<8x8x128xf32>
    %98 = arith.maximumf %96, %97 : vector<8x8x128xf32>
    %99 = vector.shape_cast %98 : vector<8x8x128xf32> to vector<64x128xf32>
    %c1_111 = arith.constant 1 : index
    %c1_112 = arith.constant 1 : index
    %c0_113 = arith.constant 0 : index
    %c0_114 = arith.constant 0 : index
    %100 = vector.load %arg2[%c1_111, %c1_112, %c0_113, %c0_114] : memref<4x9x128x128xf32, #tpu.memory_space<vmem>>, vector<1x1x128x128xf32>
    %101 = vector.shape_cast %100 : vector<1x1x128x128xf32> to vector<128x128xf32>
    %cst_115 = arith.constant dense<0.000000e+00> : vector<64x128xf32>
    %102 = tpu.matmul %99, %101, %cst_115 {dimension_numbers = #tpu.dot_dimension_numbers<[1], [0], [0], [1], [0, 0, 1, 1], [], []>} : vector<64x128xf32>, vector<128x128xf32>, vector<64x128xf32> -> vector<64x128xf32>
    %103 = arith.addf %94, %102 : vector<64x128xf32>
    %c1_116 = arith.constant 1 : index
    %c0_117 = arith.constant 0 : index
    %c0_118 = arith.constant 0 : index
    %c1_119 = arith.constant 1 : index
    %c0_120 = arith.constant 0 : index
    %104 = vector.load %arg1[%c1_116, %c0_117, %c0_118, %c1_119, %c0_120] : memref<4x4x9x9x128xf32, #tpu.memory_space<vmem>>, vector<1x1x8x8x128xf32>
    %105 = vector.shape_cast %104 : vector<1x1x8x8x128xf32> to vector<8x8x128xf32>
    %cst_121 = arith.constant 0.000000e+00 : f32
    %106 = vector.broadcast %cst_121 : f32 to vector<8x8x128xf32>
    %107 = arith.maximumf %105, %106 : vector<8x8x128xf32>
    %108 = vector.shape_cast %107 : vector<8x8x128xf32> to vector<64x128xf32>
    %c1_122 = arith.constant 1 : index
    %c2_123 = arith.constant 2 : index
    %c0_124 = arith.constant 0 : index
    %c0_125 = arith.constant 0 : index
    %109 = vector.load %arg2[%c1_122, %c2_123, %c0_124, %c0_125] : memref<4x9x128x128xf32, #tpu.memory_space<vmem>>, vector<1x1x128x128xf32>
    %110 = vector.shape_cast %109 : vector<1x1x128x128xf32> to vector<128x128xf32>
    %cst_126 = arith.constant dense<0.000000e+00> : vector<64x128xf32>
    %111 = tpu.matmul %108, %110, %cst_126 {dimension_numbers = #tpu.dot_dimension_numbers<[1], [0], [0], [1], [0, 0, 1, 1], [], []>} : vector<64x128xf32>, vector<128x128xf32>, vector<64x128xf32> -> vector<64x128xf32>
    %112 = arith.addf %103, %111 : vector<64x128xf32>
    %c1_127 = arith.constant 1 : index
    %c2_128 = arith.constant 2 : index
    %c0_129 = arith.constant 0 : index
    %c0_130 = arith.constant 0 : index
    %c0_131 = arith.constant 0 : index
    %113 = vector.load %arg1[%c1_127, %c2_128, %c0_129, %c0_130, %c0_131] : memref<4x4x9x9x128xf32, #tpu.memory_space<vmem>>, vector<1x1x8x8x128xf32>
    %114 = vector.shape_cast %113 : vector<1x1x8x8x128xf32> to vector<8x8x128xf32>
    %cst_132 = arith.constant 0.000000e+00 : f32
    %115 = vector.broadcast %cst_132 : f32 to vector<8x8x128xf32>
    %116 = arith.maximumf %114, %115 : vector<8x8x128xf32>
    %117 = vector.shape_cast %116 : vector<8x8x128xf32> to vector<64x128xf32>
    %c1_133 = arith.constant 1 : index
    %c3_134 = arith.constant 3 : index
    %c0_135 = arith.constant 0 : index
    %c0_136 = arith.constant 0 : index
    %118 = vector.load %arg2[%c1_133, %c3_134, %c0_135, %c0_136] : memref<4x9x128x128xf32, #tpu.memory_space<vmem>>, vector<1x1x128x128xf32>
    %119 = vector.shape_cast %118 : vector<1x1x128x128xf32> to vector<128x128xf32>
    %cst_137 = arith.constant dense<0.000000e+00> : vector<64x128xf32>
    %120 = tpu.matmul %117, %119, %cst_137 {dimension_numbers = #tpu.dot_dimension_numbers<[1], [0], [0], [1], [0, 0, 1, 1], [], []>} : vector<64x128xf32>, vector<128x128xf32>, vector<64x128xf32> -> vector<64x128xf32>
    %121 = arith.addf %112, %120 : vector<64x128xf32>
    %c1_138 = arith.constant 1 : index
    %c3_139 = arith.constant 3 : index
    %c0_140 = arith.constant 0 : index
    %c0_141 = arith.constant 0 : index
    %c0_142 = arith.constant 0 : index
    %122 = vector.load %arg1[%c1_138, %c3_139, %c0_140, %c0_141, %c0_142] : memref<4x4x9x9x128xf32, #tpu.memory_space<vmem>>, vector<1x1x8x8x128xf32>
    %123 = vector.shape_cast %122 : vector<1x1x8x8x128xf32> to vector<8x8x128xf32>
    %cst_143 = arith.constant 0.000000e+00 : f32
    %124 = vector.broadcast %cst_143 : f32 to vector<8x8x128xf32>
    %125 = arith.maximumf %123, %124 : vector<8x8x128xf32>
    %126 = vector.shape_cast %125 : vector<8x8x128xf32> to vector<64x128xf32>
    %c1_144 = arith.constant 1 : index
    %c4_145 = arith.constant 4 : index
    %c0_146 = arith.constant 0 : index
    %c0_147 = arith.constant 0 : index
    %127 = vector.load %arg2[%c1_144, %c4_145, %c0_146, %c0_147] : memref<4x9x128x128xf32, #tpu.memory_space<vmem>>, vector<1x1x128x128xf32>
    %128 = vector.shape_cast %127 : vector<1x1x128x128xf32> to vector<128x128xf32>
    %cst_148 = arith.constant dense<0.000000e+00> : vector<64x128xf32>
    %129 = tpu.matmul %126, %128, %cst_148 {dimension_numbers = #tpu.dot_dimension_numbers<[1], [0], [0], [1], [0, 0, 1, 1], [], []>} : vector<64x128xf32>, vector<128x128xf32>, vector<64x128xf32> -> vector<64x128xf32>
    %130 = arith.addf %121, %129 : vector<64x128xf32>
    %c1_149 = arith.constant 1 : index
    %c2_150 = arith.constant 2 : index
    %c0_151 = arith.constant 0 : index
    %c1_152 = arith.constant 1 : index
    %c0_153 = arith.constant 0 : index
    %131 = vector.load %arg1[%c1_149, %c2_150, %c0_151, %c1_152, %c0_153] : memref<4x4x9x9x128xf32, #tpu.memory_space<vmem>>, vector<1x1x8x8x128xf32>
    %132 = vector.shape_cast %131 : vector<1x1x8x8x128xf32> to vector<8x8x128xf32>
    %cst_154 = arith.constant 0.000000e+00 : f32
    %133 = vector.broadcast %cst_154 : f32 to vector<8x8x128xf32>
    %134 = arith.maximumf %132, %133 : vector<8x8x128xf32>
    %135 = vector.shape_cast %134 : vector<8x8x128xf32> to vector<64x128xf32>
    %c1_155 = arith.constant 1 : index
    %c5_156 = arith.constant 5 : index
    %c0_157 = arith.constant 0 : index
    %c0_158 = arith.constant 0 : index
    %136 = vector.load %arg2[%c1_155, %c5_156, %c0_157, %c0_158] : memref<4x9x128x128xf32, #tpu.memory_space<vmem>>, vector<1x1x128x128xf32>
    %137 = vector.shape_cast %136 : vector<1x1x128x128xf32> to vector<128x128xf32>
    %cst_159 = arith.constant dense<0.000000e+00> : vector<64x128xf32>
    %138 = tpu.matmul %135, %137, %cst_159 {dimension_numbers = #tpu.dot_dimension_numbers<[1], [0], [0], [1], [0, 0, 1, 1], [], []>} : vector<64x128xf32>, vector<128x128xf32>, vector<64x128xf32> -> vector<64x128xf32>
    %139 = arith.addf %130, %138 : vector<64x128xf32>
    %c1_160 = arith.constant 1 : index
    %c0_161 = arith.constant 0 : index
    %c1_162 = arith.constant 1 : index
    %c0_163 = arith.constant 0 : index
    %c0_164 = arith.constant 0 : index
    %140 = vector.load %arg1[%c1_160, %c0_161, %c1_162, %c0_163, %c0_164] : memref<4x4x9x9x128xf32, #tpu.memory_space<vmem>>, vector<1x1x8x8x128xf32>
    %141 = vector.shape_cast %140 : vector<1x1x8x8x128xf32> to vector<8x8x128xf32>
    %cst_165 = arith.constant 0.000000e+00 : f32
    %142 = vector.broadcast %cst_165 : f32 to vector<8x8x128xf32>
    %143 = arith.maximumf %141, %142 : vector<8x8x128xf32>
    %144 = vector.shape_cast %143 : vector<8x8x128xf32> to vector<64x128xf32>
    %c1_166 = arith.constant 1 : index
    %c6_167 = arith.constant 6 : index
    %c0_168 = arith.constant 0 : index
    %c0_169 = arith.constant 0 : index
    %145 = vector.load %arg2[%c1_166, %c6_167, %c0_168, %c0_169] : memref<4x9x128x128xf32, #tpu.memory_space<vmem>>, vector<1x1x128x128xf32>
    %146 = vector.shape_cast %145 : vector<1x1x128x128xf32> to vector<128x128xf32>
    %cst_170 = arith.constant dense<0.000000e+00> : vector<64x128xf32>
    %147 = tpu.matmul %144, %146, %cst_170 {dimension_numbers = #tpu.dot_dimension_numbers<[1], [0], [0], [1], [0, 0, 1, 1], [], []>} : vector<64x128xf32>, vector<128x128xf32>, vector<64x128xf32> -> vector<64x128xf32>
    %148 = arith.addf %139, %147 : vector<64x128xf32>
    %c1_171 = arith.constant 1 : index
    %c1_172 = arith.constant 1 : index
    %c1_173 = arith.constant 1 : index
    %c0_174 = arith.constant 0 : index
    %c0_175 = arith.constant 0 : index
    %149 = vector.load %arg1[%c1_171, %c1_172, %c1_173, %c0_174, %c0_175] : memref<4x4x9x9x128xf32, #tpu.memory_space<vmem>>, vector<1x1x8x8x128xf32>
    %150 = vector.shape_cast %149 : vector<1x1x8x8x128xf32> to vector<8x8x128xf32>
    %cst_176 = arith.constant 0.000000e+00 : f32
    %151 = vector.broadcast %cst_176 : f32 to vector<8x8x128xf32>
    %152 = arith.maximumf %150, %151 : vector<8x8x128xf32>
    %153 = vector.shape_cast %152 : vector<8x8x128xf32> to vector<64x128xf32>
    %c1_177 = arith.constant 1 : index
    %c7_178 = arith.constant 7 : index
    %c0_179 = arith.constant 0 : index
    %c0_180 = arith.constant 0 : index
    %154 = vector.load %arg2[%c1_177, %c7_178, %c0_179, %c0_180] : memref<4x9x128x128xf32, #tpu.memory_space<vmem>>, vector<1x1x128x128xf32>
    %155 = vector.shape_cast %154 : vector<1x1x128x128xf32> to vector<128x128xf32>
    %cst_181 = arith.constant dense<0.000000e+00> : vector<64x128xf32>
    %156 = tpu.matmul %153, %155, %cst_181 {dimension_numbers = #tpu.dot_dimension_numbers<[1], [0], [0], [1], [0, 0, 1, 1], [], []>} : vector<64x128xf32>, vector<128x128xf32>, vector<64x128xf32> -> vector<64x128xf32>
    %157 = arith.addf %148, %156 : vector<64x128xf32>
    %c1_182 = arith.constant 1 : index
    %c0_183 = arith.constant 0 : index
    %c1_184 = arith.constant 1 : index
    %c1_185 = arith.constant 1 : index
    %c0_186 = arith.constant 0 : index
    %158 = vector.load %arg1[%c1_182, %c0_183, %c1_184, %c1_185, %c0_186] : memref<4x4x9x9x128xf32, #tpu.memory_space<vmem>>, vector<1x1x8x8x128xf32>
    %159 = vector.shape_cast %158 : vector<1x1x8x8x128xf32> to vector<8x8x128xf32>
    %cst_187 = arith.constant 0.000000e+00 : f32
    %160 = vector.broadcast %cst_187 : f32 to vector<8x8x128xf32>
    %161 = arith.maximumf %159, %160 : vector<8x8x128xf32>
    %162 = vector.shape_cast %161 : vector<8x8x128xf32> to vector<64x128xf32>
    %c1_188 = arith.constant 1 : index
    %c8_189 = arith.constant 8 : index
    %c0_190 = arith.constant 0 : index
    %c0_191 = arith.constant 0 : index
    %163 = vector.load %arg2[%c1_188, %c8_189, %c0_190, %c0_191] : memref<4x9x128x128xf32, #tpu.memory_space<vmem>>, vector<1x1x128x128xf32>
    %164 = vector.shape_cast %163 : vector<1x1x128x128xf32> to vector<128x128xf32>
    %cst_192 = arith.constant dense<0.000000e+00> : vector<64x128xf32>
    %165 = tpu.matmul %162, %164, %cst_192 {dimension_numbers = #tpu.dot_dimension_numbers<[1], [0], [0], [1], [0, 0, 1, 1], [], []>} : vector<64x128xf32>, vector<128x128xf32>, vector<64x128xf32> -> vector<64x128xf32>
    %166 = arith.addf %157, %165 : vector<64x128xf32>
    %c1_193 = arith.constant 1 : index
    %c0_194 = arith.constant 0 : index
    %c0_195 = arith.constant 0 : index
    %167 = vector.load %arg3[%c1_193, %c0_194, %c0_195] : memref<4x64x128xf32, #tpu.memory_space<vmem>>, vector<1x64x128xf32>
    %168 = vector.shape_cast %167 : vector<1x64x128xf32> to vector<64x128xf32>
    %169 = vector.shape_cast %166 : vector<64x128xf32> to vector<1x64x128xf32>
    tpu.vector_store %arg3[%c1_193, %c0_194, %c0_195], %169 {strides = array<i32>} : memref<4x64x128xf32, #tpu.memory_space<vmem>>, vector<1x64x128xf32>,
    %cst_196 = arith.constant 0.000000e+00 : f32
    %170 = vector.broadcast %cst_196 : f32 to vector<64x128xf32>
    %c2_197 = arith.constant 2 : index
    %c0_198 = arith.constant 0 : index
    %c0_199 = arith.constant 0 : index
    %c0_200 = arith.constant 0 : index
    %c0_201 = arith.constant 0 : index
    %171 = vector.load %arg1[%c2_197, %c0_198, %c0_199, %c0_200, %c0_201] : memref<4x4x9x9x128xf32, #tpu.memory_space<vmem>>, vector<1x1x8x8x128xf32>
    %172 = vector.shape_cast %171 : vector<1x1x8x8x128xf32> to vector<8x8x128xf32>
    %cst_202 = arith.constant 0.000000e+00 : f32
    %173 = vector.broadcast %cst_202 : f32 to vector<8x8x128xf32>
    %174 = arith.maximumf %172, %173 : vector<8x8x128xf32>
    %175 = vector.shape_cast %174 : vector<8x8x128xf32> to vector<64x128xf32>
    %c2_203 = arith.constant 2 : index
    %c0_204 = arith.constant 0 : index
    %c0_205 = arith.constant 0 : index
    %c0_206 = arith.constant 0 : index
    %176 = vector.load %arg2[%c2_203, %c0_204, %c0_205, %c0_206] : memref<4x9x128x128xf32, #tpu.memory_space<vmem>>, vector<1x1x128x128xf32>
    %177 = vector.shape_cast %176 : vector<1x1x128x128xf32> to vector<128x128xf32>
    %cst_207 = arith.constant dense<0.000000e+00> : vector<64x128xf32>
    %178 = tpu.matmul %175, %177, %cst_207 {dimension_numbers = #tpu.dot_dimension_numbers<[1], [0], [0], [1], [0, 0, 1, 1], [], []>} : vector<64x128xf32>, vector<128x128xf32>, vector<64x128xf32> -> vector<64x128xf32>
    %179 = arith.addf %170, %178 : vector<64x128xf32>
    %c2_208 = arith.constant 2 : index
    %c1_209 = arith.constant 1 : index
    %c0_210 = arith.constant 0 : index
    %c0_211 = arith.constant 0 : index
    %c0_212 = arith.constant 0 : index
    %180 = vector.load %arg1[%c2_208, %c1_209, %c0_210, %c0_211, %c0_212] : memref<4x4x9x9x128xf32, #tpu.memory_space<vmem>>, vector<1x1x8x8x128xf32>
    %181 = vector.shape_cast %180 : vector<1x1x8x8x128xf32> to vector<8x8x128xf32>
    %cst_213 = arith.constant 0.000000e+00 : f32
    %182 = vector.broadcast %cst_213 : f32 to vector<8x8x128xf32>
    %183 = arith.maximumf %181, %182 : vector<8x8x128xf32>
    %184 = vector.shape_cast %183 : vector<8x8x128xf32> to vector<64x128xf32>
    %c2_214 = arith.constant 2 : index
    %c1_215 = arith.constant 1 : index
    %c0_216 = arith.constant 0 : index
    %c0_217 = arith.constant 0 : index
    %185 = vector.load %arg2[%c2_214, %c1_215, %c0_216, %c0_217] : memref<4x9x128x128xf32, #tpu.memory_space<vmem>>, vector<1x1x128x128xf32>
    %186 = vector.shape_cast %185 : vector<1x1x128x128xf32> to vector<128x128xf32>
    %cst_218 = arith.constant dense<0.000000e+00> : vector<64x128xf32>
    %187 = tpu.matmul %184, %186, %cst_218 {dimension_numbers = #tpu.dot_dimension_numbers<[1], [0], [0], [1], [0, 0, 1, 1], [], []>} : vector<64x128xf32>, vector<128x128xf32>, vector<64x128xf32> -> vector<64x128xf32>
    %188 = arith.addf %179, %187 : vector<64x128xf32>
    %c2_219 = arith.constant 2 : index
    %c0_220 = arith.constant 0 : index
    %c0_221 = arith.constant 0 : index
    %c1_222 = arith.constant 1 : index
    %c0_223 = arith.constant 0 : index
    %189 = vector.load %arg1[%c2_219, %c0_220, %c0_221, %c1_222, %c0_223] : memref<4x4x9x9x128xf32, #tpu.memory_space<vmem>>, vector<1x1x8x8x128xf32>
    %190 = vector.shape_cast %189 : vector<1x1x8x8x128xf32> to vector<8x8x128xf32>
    %cst_224 = arith.constant 0.000000e+00 : f32
    %191 = vector.broadcast %cst_224 : f32 to vector<8x8x128xf32>
    %192 = arith.maximumf %190, %191 : vector<8x8x128xf32>
    %193 = vector.shape_cast %192 : vector<8x8x128xf32> to vector<64x128xf32>
    %c2_225 = arith.constant 2 : index
    %c2_226 = arith.constant 2 : index
    %c0_227 = arith.constant 0 : index
    %c0_228 = arith.constant 0 : index
    %194 = vector.load %arg2[%c2_225, %c2_226, %c0_227, %c0_228] : memref<4x9x128x128xf32, #tpu.memory_space<vmem>>, vector<1x1x128x128xf32>
    %195 = vector.shape_cast %194 : vector<1x1x128x128xf32> to vector<128x128xf32>
    %cst_229 = arith.constant dense<0.000000e+00> : vector<64x128xf32>
    %196 = tpu.matmul %193, %195, %cst_229 {dimension_numbers = #tpu.dot_dimension_numbers<[1], [0], [0], [1], [0, 0, 1, 1], [], []>} : vector<64x128xf32>, vector<128x128xf32>, vector<64x128xf32> -> vector<64x128xf32>
    %197 = arith.addf %188, %196 : vector<64x128xf32>
    %c2_230 = arith.constant 2 : index
    %c2_231 = arith.constant 2 : index
    %c0_232 = arith.constant 0 : index
    %c0_233 = arith.constant 0 : index
    %c0_234 = arith.constant 0 : index
    %198 = vector.load %arg1[%c2_230, %c2_231, %c0_232, %c0_233, %c0_234] : memref<4x4x9x9x128xf32, #tpu.memory_space<vmem>>, vector<1x1x8x8x128xf32>
    %199 = vector.shape_cast %198 : vector<1x1x8x8x128xf32> to vector<8x8x128xf32>
    %cst_235 = arith.constant 0.000000e+00 : f32
    %200 = vector.broadcast %cst_235 : f32 to vector<8x8x128xf32>
    %201 = arith.maximumf %199, %200 : vector<8x8x128xf32>
    %202 = vector.shape_cast %201 : vector<8x8x128xf32> to vector<64x128xf32>
    %c2_236 = arith.constant 2 : index
    %c3_237 = arith.constant 3 : index
    %c0_238 = arith.constant 0 : index
    %c0_239 = arith.constant 0 : index
    %203 = vector.load %arg2[%c2_236, %c3_237, %c0_238, %c0_239] : memref<4x9x128x128xf32, #tpu.memory_space<vmem>>, vector<1x1x128x128xf32>
    %204 = vector.shape_cast %203 : vector<1x1x128x128xf32> to vector<128x128xf32>
    %cst_240 = arith.constant dense<0.000000e+00> : vector<64x128xf32>
    %205 = tpu.matmul %202, %204, %cst_240 {dimension_numbers = #tpu.dot_dimension_numbers<[1], [0], [0], [1], [0, 0, 1, 1], [], []>} : vector<64x128xf32>, vector<128x128xf32>, vector<64x128xf32> -> vector<64x128xf32>
    %206 = arith.addf %197, %205 : vector<64x128xf32>
    %c2_241 = arith.constant 2 : index
    %c3_242 = arith.constant 3 : index
    %c0_243 = arith.constant 0 : index
    %c0_244 = arith.constant 0 : index
    %c0_245 = arith.constant 0 : index
    %207 = vector.load %arg1[%c2_241, %c3_242, %c0_243, %c0_244, %c0_245] : memref<4x4x9x9x128xf32, #tpu.memory_space<vmem>>, vector<1x1x8x8x128xf32>
    %208 = vector.shape_cast %207 : vector<1x1x8x8x128xf32> to vector<8x8x128xf32>
    %cst_246 = arith.constant 0.000000e+00 : f32
    %209 = vector.broadcast %cst_246 : f32 to vector<8x8x128xf32>
    %210 = arith.maximumf %208, %209 : vector<8x8x128xf32>
    %211 = vector.shape_cast %210 : vector<8x8x128xf32> to vector<64x128xf32>
    %c2_247 = arith.constant 2 : index
    %c4_248 = arith.constant 4 : index
    %c0_249 = arith.constant 0 : index
    %c0_250 = arith.constant 0 : index
    %212 = vector.load %arg2[%c2_247, %c4_248, %c0_249, %c0_250] : memref<4x9x128x128xf32, #tpu.memory_space<vmem>>, vector<1x1x128x128xf32>
    %213 = vector.shape_cast %212 : vector<1x1x128x128xf32> to vector<128x128xf32>
    %cst_251 = arith.constant dense<0.000000e+00> : vector<64x128xf32>
    %214 = tpu.matmul %211, %213, %cst_251 {dimension_numbers = #tpu.dot_dimension_numbers<[1], [0], [0], [1], [0, 0, 1, 1], [], []>} : vector<64x128xf32>, vector<128x128xf32>, vector<64x128xf32> -> vector<64x128xf32>
    %215 = arith.addf %206, %214 : vector<64x128xf32>
    %c2_252 = arith.constant 2 : index
    %c2_253 = arith.constant 2 : index
    %c0_254 = arith.constant 0 : index
    %c1_255 = arith.constant 1 : index
    %c0_256 = arith.constant 0 : index
    %216 = vector.load %arg1[%c2_252, %c2_253, %c0_254, %c1_255, %c0_256] : memref<4x4x9x9x128xf32, #tpu.memory_space<vmem>>, vector<1x1x8x8x128xf32>
    %217 = vector.shape_cast %216 : vector<1x1x8x8x128xf32> to vector<8x8x128xf32>
    %cst_257 = arith.constant 0.000000e+00 : f32
    %218 = vector.broadcast %cst_257 : f32 to vector<8x8x128xf32>
    %219 = arith.maximumf %217, %218 : vector<8x8x128xf32>
    %220 = vector.shape_cast %219 : vector<8x8x128xf32> to vector<64x128xf32>
    %c2_258 = arith.constant 2 : index
    %c5_259 = arith.constant 5 : index
    %c0_260 = arith.constant 0 : index
    %c0_261 = arith.constant 0 : index
    %221 = vector.load %arg2[%c2_258, %c5_259, %c0_260, %c0_261] : memref<4x9x128x128xf32, #tpu.memory_space<vmem>>, vector<1x1x128x128xf32>
    %222 = vector.shape_cast %221 : vector<1x1x128x128xf32> to vector<128x128xf32>
    %cst_262 = arith.constant dense<0.000000e+00> : vector<64x128xf32>
    %223 = tpu.matmul %220, %222, %cst_262 {dimension_numbers = #tpu.dot_dimension_numbers<[1], [0], [0], [1], [0, 0, 1, 1], [], []>} : vector<64x128xf32>, vector<128x128xf32>, vector<64x128xf32> -> vector<64x128xf32>
    %224 = arith.addf %215, %223 : vector<64x128xf32>
    %c2_263 = arith.constant 2 : index
    %c0_264 = arith.constant 0 : index
    %c1_265 = arith.constant 1 : index
    %c0_266 = arith.constant 0 : index
    %c0_267 = arith.constant 0 : index
    %225 = vector.load %arg1[%c2_263, %c0_264, %c1_265, %c0_266, %c0_267] : memref<4x4x9x9x128xf32, #tpu.memory_space<vmem>>, vector<1x1x8x8x128xf32>
    %226 = vector.shape_cast %225 : vector<1x1x8x8x128xf32> to vector<8x8x128xf32>
    %cst_268 = arith.constant 0.000000e+00 : f32
    %227 = vector.broadcast %cst_268 : f32 to vector<8x8x128xf32>
    %228 = arith.maximumf %226, %227 : vector<8x8x128xf32>
    %229 = vector.shape_cast %228 : vector<8x8x128xf32> to vector<64x128xf32>
    %c2_269 = arith.constant 2 : index
    %c6_270 = arith.constant 6 : index
    %c0_271 = arith.constant 0 : index
    %c0_272 = arith.constant 0 : index
    %230 = vector.load %arg2[%c2_269, %c6_270, %c0_271, %c0_272] : memref<4x9x128x128xf32, #tpu.memory_space<vmem>>, vector<1x1x128x128xf32>
    %231 = vector.shape_cast %230 : vector<1x1x128x128xf32> to vector<128x128xf32>
    %cst_273 = arith.constant dense<0.000000e+00> : vector<64x128xf32>
    %232 = tpu.matmul %229, %231, %cst_273 {dimension_numbers = #tpu.dot_dimension_numbers<[1], [0], [0], [1], [0, 0, 1, 1], [], []>} : vector<64x128xf32>, vector<128x128xf32>, vector<64x128xf32> -> vector<64x128xf32>
    %233 = arith.addf %224, %232 : vector<64x128xf32>
    %c2_274 = arith.constant 2 : index
    %c1_275 = arith.constant 1 : index
    %c1_276 = arith.constant 1 : index
    %c0_277 = arith.constant 0 : index
    %c0_278 = arith.constant 0 : index
    %234 = vector.load %arg1[%c2_274, %c1_275, %c1_276, %c0_277, %c0_278] : memref<4x4x9x9x128xf32, #tpu.memory_space<vmem>>, vector<1x1x8x8x128xf32>
    %235 = vector.shape_cast %234 : vector<1x1x8x8x128xf32> to vector<8x8x128xf32>
    %cst_279 = arith.constant 0.000000e+00 : f32
    %236 = vector.broadcast %cst_279 : f32 to vector<8x8x128xf32>
    %237 = arith.maximumf %235, %236 : vector<8x8x128xf32>
    %238 = vector.shape_cast %237 : vector<8x8x128xf32> to vector<64x128xf32>
    %c2_280 = arith.constant 2 : index
    %c7_281 = arith.constant 7 : index
    %c0_282 = arith.constant 0 : index
    %c0_283 = arith.constant 0 : index
    %239 = vector.load %arg2[%c2_280, %c7_281, %c0_282, %c0_283] : memref<4x9x128x128xf32, #tpu.memory_space<vmem>>, vector<1x1x128x128xf32>
    %240 = vector.shape_cast %239 : vector<1x1x128x128xf32> to vector<128x128xf32>
    %cst_284 = arith.constant dense<0.000000e+00> : vector<64x128xf32>
    %241 = tpu.matmul %238, %240, %cst_284 {dimension_numbers = #tpu.dot_dimension_numbers<[1], [0], [0], [1], [0, 0, 1, 1], [], []>} : vector<64x128xf32>, vector<128x128xf32>, vector<64x128xf32> -> vector<64x128xf32>
    %242 = arith.addf %233, %241 : vector<64x128xf32>
    %c2_285 = arith.constant 2 : index
    %c0_286 = arith.constant 0 : index
    %c1_287 = arith.constant 1 : index
    %c1_288 = arith.constant 1 : index
    %c0_289 = arith.constant 0 : index
    %243 = vector.load %arg1[%c2_285, %c0_286, %c1_287, %c1_288, %c0_289] : memref<4x4x9x9x128xf32, #tpu.memory_space<vmem>>, vector<1x1x8x8x128xf32>
    %244 = vector.shape_cast %243 : vector<1x1x8x8x128xf32> to vector<8x8x128xf32>
    %cst_290 = arith.constant 0.000000e+00 : f32
    %245 = vector.broadcast %cst_290 : f32 to vector<8x8x128xf32>
    %246 = arith.maximumf %244, %245 : vector<8x8x128xf32>
    %247 = vector.shape_cast %246 : vector<8x8x128xf32> to vector<64x128xf32>
    %c2_291 = arith.constant 2 : index
    %c8_292 = arith.constant 8 : index
    %c0_293 = arith.constant 0 : index
    %c0_294 = arith.constant 0 : index
    %248 = vector.load %arg2[%c2_291, %c8_292, %c0_293, %c0_294] : memref<4x9x128x128xf32, #tpu.memory_space<vmem>>, vector<1x1x128x128xf32>
    %249 = vector.shape_cast %248 : vector<1x1x128x128xf32> to vector<128x128xf32>
    %cst_295 = arith.constant dense<0.000000e+00> : vector<64x128xf32>
    %250 = tpu.matmul %247, %249, %cst_295 {dimension_numbers = #tpu.dot_dimension_numbers<[1], [0], [0], [1], [0, 0, 1, 1], [], []>} : vector<64x128xf32>, vector<128x128xf32>, vector<64x128xf32> -> vector<64x128xf32>
    %251 = arith.addf %242, %250 : vector<64x128xf32>
    %c2_296 = arith.constant 2 : index
    %c0_297 = arith.constant 0 : index
    %c0_298 = arith.constant 0 : index
    %252 = vector.load %arg3[%c2_296, %c0_297, %c0_298] : memref<4x64x128xf32, #tpu.memory_space<vmem>>, vector<1x64x128xf32>
    %253 = vector.shape_cast %252 : vector<1x64x128xf32> to vector<64x128xf32>
    %254 = vector.shape_cast %251 : vector<64x128xf32> to vector<1x64x128xf32>
    tpu.vector_store %arg3[%c2_296, %c0_297, %c0_298], %254 {strides = array<i32>} : memref<4x64x128xf32, #tpu.memory_space<vmem>>, vector<1x64x128xf32>,
    %cst_299 = arith.constant 0.000000e+00 : f32
    %255 = vector.broadcast %cst_299 : f32 to vector<64x128xf32>
    %c3_300 = arith.constant 3 : index
    %c0_301 = arith.constant 0 : index
    %c0_302 = arith.constant 0 : index
    %c0_303 = arith.constant 0 : index
    %c0_304 = arith.constant 0 : index
    %256 = vector.load %arg1[%c3_300, %c0_301, %c0_302, %c0_303, %c0_304] : memref<4x4x9x9x128xf32, #tpu.memory_space<vmem>>, vector<1x1x8x8x128xf32>
    %257 = vector.shape_cast %256 : vector<1x1x8x8x128xf32> to vector<8x8x128xf32>
    %cst_305 = arith.constant 0.000000e+00 : f32
    %258 = vector.broadcast %cst_305 : f32 to vector<8x8x128xf32>
    %259 = arith.maximumf %257, %258 : vector<8x8x128xf32>
    %260 = vector.shape_cast %259 : vector<8x8x128xf32> to vector<64x128xf32>
    %c3_306 = arith.constant 3 : index
    %c0_307 = arith.constant 0 : index
    %c0_308 = arith.constant 0 : index
    %c0_309 = arith.constant 0 : index
    %261 = vector.load %arg2[%c3_306, %c0_307, %c0_308, %c0_309] : memref<4x9x128x128xf32, #tpu.memory_space<vmem>>, vector<1x1x128x128xf32>
    %262 = vector.shape_cast %261 : vector<1x1x128x128xf32> to vector<128x128xf32>
    %cst_310 = arith.constant dense<0.000000e+00> : vector<64x128xf32>
    %263 = tpu.matmul %260, %262, %cst_310 {dimension_numbers = #tpu.dot_dimension_numbers<[1], [0], [0], [1], [0, 0, 1, 1], [], []>} : vector<64x128xf32>, vector<128x128xf32>, vector<64x128xf32> -> vector<64x128xf32>
    %264 = arith.addf %255, %263 : vector<64x128xf32>
    %c3_311 = arith.constant 3 : index
    %c1_312 = arith.constant 1 : index
    %c0_313 = arith.constant 0 : index
    %c0_314 = arith.constant 0 : index
    %c0_315 = arith.constant 0 : index
    %265 = vector.load %arg1[%c3_311, %c1_312, %c0_313, %c0_314, %c0_315] : memref<4x4x9x9x128xf32, #tpu.memory_space<vmem>>, vector<1x1x8x8x128xf32>
    %266 = vector.shape_cast %265 : vector<1x1x8x8x128xf32> to vector<8x8x128xf32>
    %cst_316 = arith.constant 0.000000e+00 : f32
    %267 = vector.broadcast %cst_316 : f32 to vector<8x8x128xf32>
    %268 = arith.maximumf %266, %267 : vector<8x8x128xf32>
    %269 = vector.shape_cast %268 : vector<8x8x128xf32> to vector<64x128xf32>
    %c3_317 = arith.constant 3 : index
    %c1_318 = arith.constant 1 : index
    %c0_319 = arith.constant 0 : index
    %c0_320 = arith.constant 0 : index
    %270 = vector.load %arg2[%c3_317, %c1_318, %c0_319, %c0_320] : memref<4x9x128x128xf32, #tpu.memory_space<vmem>>, vector<1x1x128x128xf32>
    %271 = vector.shape_cast %270 : vector<1x1x128x128xf32> to vector<128x128xf32>
    %cst_321 = arith.constant dense<0.000000e+00> : vector<64x128xf32>
    %272 = tpu.matmul %269, %271, %cst_321 {dimension_numbers = #tpu.dot_dimension_numbers<[1], [0], [0], [1], [0, 0, 1, 1], [], []>} : vector<64x128xf32>, vector<128x128xf32>, vector<64x128xf32> -> vector<64x128xf32>
    %273 = arith.addf %264, %272 : vector<64x128xf32>
    %c3_322 = arith.constant 3 : index
    %c0_323 = arith.constant 0 : index
    %c0_324 = arith.constant 0 : index
    %c1_325 = arith.constant 1 : index
    %c0_326 = arith.constant 0 : index
    %274 = vector.load %arg1[%c3_322, %c0_323, %c0_324, %c1_325, %c0_326] : memref<4x4x9x9x128xf32, #tpu.memory_space<vmem>>, vector<1x1x8x8x128xf32>
    %275 = vector.shape_cast %274 : vector<1x1x8x8x128xf32> to vector<8x8x128xf32>
    %cst_327 = arith.constant 0.000000e+00 : f32
    %276 = vector.broadcast %cst_327 : f32 to vector<8x8x128xf32>
    %277 = arith.maximumf %275, %276 : vector<8x8x128xf32>
    %278 = vector.shape_cast %277 : vector<8x8x128xf32> to vector<64x128xf32>
    %c3_328 = arith.constant 3 : index
    %c2_329 = arith.constant 2 : index
    %c0_330 = arith.constant 0 : index
    %c0_331 = arith.constant 0 : index
    %279 = vector.load %arg2[%c3_328, %c2_329, %c0_330, %c0_331] : memref<4x9x128x128xf32, #tpu.memory_space<vmem>>, vector<1x1x128x128xf32>
    %280 = vector.shape_cast %279 : vector<1x1x128x128xf32> to vector<128x128xf32>
    %cst_332 = arith.constant dense<0.000000e+00> : vector<64x128xf32>
    %281 = tpu.matmul %278, %280, %cst_332 {dimension_numbers = #tpu.dot_dimension_numbers<[1], [0], [0], [1], [0, 0, 1, 1], [], []>} : vector<64x128xf32>, vector<128x128xf32>, vector<64x128xf32> -> vector<64x128xf32>
    %282 = arith.addf %273, %281 : vector<64x128xf32>
    %c3_333 = arith.constant 3 : index
    %c2_334 = arith.constant 2 : index
    %c0_335 = arith.constant 0 : index
    %c0_336 = arith.constant 0 : index
    %c0_337 = arith.constant 0 : index
    %283 = vector.load %arg1[%c3_333, %c2_334, %c0_335, %c0_336, %c0_337] : memref<4x4x9x9x128xf32, #tpu.memory_space<vmem>>, vector<1x1x8x8x128xf32>
    %284 = vector.shape_cast %283 : vector<1x1x8x8x128xf32> to vector<8x8x128xf32>
    %cst_338 = arith.constant 0.000000e+00 : f32
    %285 = vector.broadcast %cst_338 : f32 to vector<8x8x128xf32>
    %286 = arith.maximumf %284, %285 : vector<8x8x128xf32>
    %287 = vector.shape_cast %286 : vector<8x8x128xf32> to vector<64x128xf32>
    %c3_339 = arith.constant 3 : index
    %c3_340 = arith.constant 3 : index
    %c0_341 = arith.constant 0 : index
    %c0_342 = arith.constant 0 : index
    %288 = vector.load %arg2[%c3_339, %c3_340, %c0_341, %c0_342] : memref<4x9x128x128xf32, #tpu.memory_space<vmem>>, vector<1x1x128x128xf32>
    %289 = vector.shape_cast %288 : vector<1x1x128x128xf32> to vector<128x128xf32>
    %cst_343 = arith.constant dense<0.000000e+00> : vector<64x128xf32>
    %290 = tpu.matmul %287, %289, %cst_343 {dimension_numbers = #tpu.dot_dimension_numbers<[1], [0], [0], [1], [0, 0, 1, 1], [], []>} : vector<64x128xf32>, vector<128x128xf32>, vector<64x128xf32> -> vector<64x128xf32>
    %291 = arith.addf %282, %290 : vector<64x128xf32>
    %c3_344 = arith.constant 3 : index
    %c3_345 = arith.constant 3 : index
    %c0_346 = arith.constant 0 : index
    %c0_347 = arith.constant 0 : index
    %c0_348 = arith.constant 0 : index
    %292 = vector.load %arg1[%c3_344, %c3_345, %c0_346, %c0_347, %c0_348] : memref<4x4x9x9x128xf32, #tpu.memory_space<vmem>>, vector<1x1x8x8x128xf32>
    %293 = vector.shape_cast %292 : vector<1x1x8x8x128xf32> to vector<8x8x128xf32>
    %cst_349 = arith.constant 0.000000e+00 : f32
    %294 = vector.broadcast %cst_349 : f32 to vector<8x8x128xf32>
    %295 = arith.maximumf %293, %294 : vector<8x8x128xf32>
    %296 = vector.shape_cast %295 : vector<8x8x128xf32> to vector<64x128xf32>
    %c3_350 = arith.constant 3 : index
    %c4_351 = arith.constant 4 : index
    %c0_352 = arith.constant 0 : index
    %c0_353 = arith.constant 0 : index
    %297 = vector.load %arg2[%c3_350, %c4_351, %c0_352, %c0_353] : memref<4x9x128x128xf32, #tpu.memory_space<vmem>>, vector<1x1x128x128xf32>
    %298 = vector.shape_cast %297 : vector<1x1x128x128xf32> to vector<128x128xf32>
    %cst_354 = arith.constant dense<0.000000e+00> : vector<64x128xf32>
    %299 = tpu.matmul %296, %298, %cst_354 {dimension_numbers = #tpu.dot_dimension_numbers<[1], [0], [0], [1], [0, 0, 1, 1], [], []>} : vector<64x128xf32>, vector<128x128xf32>, vector<64x128xf32> -> vector<64x128xf32>
    %300 = arith.addf %291, %299 : vector<64x128xf32>
    %c3_355 = arith.constant 3 : index
    %c2_356 = arith.constant 2 : index
    %c0_357 = arith.constant 0 : index
    %c1_358 = arith.constant 1 : index
    %c0_359 = arith.constant 0 : index
    %301 = vector.load %arg1[%c3_355, %c2_356, %c0_357, %c1_358, %c0_359] : memref<4x4x9x9x128xf32, #tpu.memory_space<vmem>>, vector<1x1x8x8x128xf32>
    %302 = vector.shape_cast %301 : vector<1x1x8x8x128xf32> to vector<8x8x128xf32>
    %cst_360 = arith.constant 0.000000e+00 : f32
    %303 = vector.broadcast %cst_360 : f32 to vector<8x8x128xf32>
    %304 = arith.maximumf %302, %303 : vector<8x8x128xf32>
    %305 = vector.shape_cast %304 : vector<8x8x128xf32> to vector<64x128xf32>
    %c3_361 = arith.constant 3 : index
    %c5_362 = arith.constant 5 : index
    %c0_363 = arith.constant 0 : index
    %c0_364 = arith.constant 0 : index
    %306 = vector.load %arg2[%c3_361, %c5_362, %c0_363, %c0_364] : memref<4x9x128x128xf32, #tpu.memory_space<vmem>>, vector<1x1x128x128xf32>
    %307 = vector.shape_cast %306 : vector<1x1x128x128xf32> to vector<128x128xf32>
    %cst_365 = arith.constant dense<0.000000e+00> : vector<64x128xf32>
    %308 = tpu.matmul %305, %307, %cst_365 {dimension_numbers = #tpu.dot_dimension_numbers<[1], [0], [0], [1], [0, 0, 1, 1], [], []>} : vector<64x128xf32>, vector<128x128xf32>, vector<64x128xf32> -> vector<64x128xf32>
    %309 = arith.addf %300, %308 : vector<64x128xf32>
    %c3_366 = arith.constant 3 : index
    %c0_367 = arith.constant 0 : index
    %c1_368 = arith.constant 1 : index
    %c0_369 = arith.constant 0 : index
    %c0_370 = arith.constant 0 : index
    %310 = vector.load %arg1[%c3_366, %c0_367, %c1_368, %c0_369, %c0_370] : memref<4x4x9x9x128xf32, #tpu.memory_space<vmem>>, vector<1x1x8x8x128xf32>
    %311 = vector.shape_cast %310 : vector<1x1x8x8x128xf32> to vector<8x8x128xf32>
    %cst_371 = arith.constant 0.000000e+00 : f32
    %312 = vector.broadcast %cst_371 : f32 to vector<8x8x128xf32>
    %313 = arith.maximumf %311, %312 : vector<8x8x128xf32>
    %314 = vector.shape_cast %313 : vector<8x8x128xf32> to vector<64x128xf32>
    %c3_372 = arith.constant 3 : index
    %c6_373 = arith.constant 6 : index
    %c0_374 = arith.constant 0 : index
    %c0_375 = arith.constant 0 : index
    %315 = vector.load %arg2[%c3_372, %c6_373, %c0_374, %c0_375] : memref<4x9x128x128xf32, #tpu.memory_space<vmem>>, vector<1x1x128x128xf32>
    %316 = vector.shape_cast %315 : vector<1x1x128x128xf32> to vector<128x128xf32>
    %cst_376 = arith.constant dense<0.000000e+00> : vector<64x128xf32>
    %317 = tpu.matmul %314, %316, %cst_376 {dimension_numbers = #tpu.dot_dimension_numbers<[1], [0], [0], [1], [0, 0, 1, 1], [], []>} : vector<64x128xf32>, vector<128x128xf32>, vector<64x128xf32> -> vector<64x128xf32>
    %318 = arith.addf %309, %317 : vector<64x128xf32>
    %c3_377 = arith.constant 3 : index
    %c1_378 = arith.constant 1 : index
    %c1_379 = arith.constant 1 : index
    %c0_380 = arith.constant 0 : index
    %c0_381 = arith.constant 0 : index
    %319 = vector.load %arg1[%c3_377, %c1_378, %c1_379, %c0_380, %c0_381] : memref<4x4x9x9x128xf32, #tpu.memory_space<vmem>>, vector<1x1x8x8x128xf32>
    %320 = vector.shape_cast %319 : vector<1x1x8x8x128xf32> to vector<8x8x128xf32>
    %cst_382 = arith.constant 0.000000e+00 : f32
    %321 = vector.broadcast %cst_382 : f32 to vector<8x8x128xf32>
    %322 = arith.maximumf %320, %321 : vector<8x8x128xf32>
    %323 = vector.shape_cast %322 : vector<8x8x128xf32> to vector<64x128xf32>
    %c3_383 = arith.constant 3 : index
    %c7_384 = arith.constant 7 : index
    %c0_385 = arith.constant 0 : index
    %c0_386 = arith.constant 0 : index
    %324 = vector.load %arg2[%c3_383, %c7_384, %c0_385, %c0_386] : memref<4x9x128x128xf32, #tpu.memory_space<vmem>>, vector<1x1x128x128xf32>
    %325 = vector.shape_cast %324 : vector<1x1x128x128xf32> to vector<128x128xf32>
    %cst_387 = arith.constant dense<0.000000e+00> : vector<64x128xf32>
    %326 = tpu.matmul %323, %325, %cst_387 {dimension_numbers = #tpu.dot_dimension_numbers<[1], [0], [0], [1], [0, 0, 1, 1], [], []>} : vector<64x128xf32>, vector<128x128xf32>, vector<64x128xf32> -> vector<64x128xf32>
    %327 = arith.addf %318, %326 : vector<64x128xf32>
    %c3_388 = arith.constant 3 : index
    %c0_389 = arith.constant 0 : index
    %c1_390 = arith.constant 1 : index
    %c1_391 = arith.constant 1 : index
    %c0_392 = arith.constant 0 : index
    %328 = vector.load %arg1[%c3_388, %c0_389, %c1_390, %c1_391, %c0_392] : memref<4x4x9x9x128xf32, #tpu.memory_space<vmem>>, vector<1x1x8x8x128xf32>
    %329 = vector.shape_cast %328 : vector<1x1x8x8x128xf32> to vector<8x8x128xf32>
    %cst_393 = arith.constant 0.000000e+00 : f32
    %330 = vector.broadcast %cst_393 : f32 to vector<8x8x128xf32>
    %331 = arith.maximumf %329, %330 : vector<8x8x128xf32>
    %332 = vector.shape_cast %331 : vector<8x8x128xf32> to vector<64x128xf32>
    %c3_394 = arith.constant 3 : index
    %c8_395 = arith.constant 8 : index
    %c0_396 = arith.constant 0 : index
    %c0_397 = arith.constant 0 : index
    %333 = vector.load %arg2[%c3_394, %c8_395, %c0_396, %c0_397] : memref<4x9x128x128xf32, #tpu.memory_space<vmem>>, vector<1x1x128x128xf32>
    %334 = vector.shape_cast %333 : vector<1x1x128x128xf32> to vector<128x128xf32>
    %cst_398 = arith.constant dense<0.000000e+00> : vector<64x128xf32>
    %335 = tpu.matmul %332, %334, %cst_398 {dimension_numbers = #tpu.dot_dimension_numbers<[1], [0], [0], [1], [0, 0, 1, 1], [], []>} : vector<64x128xf32>, vector<128x128xf32>, vector<64x128xf32> -> vector<64x128xf32>
    %336 = arith.addf %327, %335 : vector<64x128xf32>
    %c3_399 = arith.constant 3 : index
    %c0_400 = arith.constant 0 : index
    %c0_401 = arith.constant 0 : index
    %337 = vector.load %arg3[%c3_399, %c0_400, %c0_401] : memref<4x64x128xf32, #tpu.memory_space<vmem>>, vector<1x64x128xf32>
    %338 = vector.shape_cast %337 : vector<1x64x128xf32> to vector<64x128xf32>
    %339 = vector.shape_cast %336 : vector<64x128xf32> to vector<1x64x128xf32>
    tpu.vector_store %arg3[%c3_399, %c0_400, %c0_401], %339 {strides = array<i32>} : memref<4x64x128xf32, #tpu.memory_space<vmem>>, vector<1x64x128xf32>,
    return
  }
  func.func @transform_0(%arg0: i32) -> (i32, i32, i32, i32, i32) {
    %c0_i32 = arith.constant 0 : i32
    %c0_i32_0 = arith.constant 0 : i32
    %c0_i32_1 = arith.constant 0 : i32
    %c0_i32_2 = arith.constant 0 : i32
    %c0_i32_3 = arith.constant 0 : i32
    return %arg0, %c0_i32, %c0_i32_0, %c0_i32_1, %c0_i32_2 : i32, i32, i32, i32, i32
  }
  func.func @transform_1(%arg0: i32) -> (i32, i32, i32, i32) {
    %c0_i32 = arith.constant 0 : i32
    %c0_i32_0 = arith.constant 0 : i32
    %c0_i32_1 = arith.constant 0 : i32
    %c0_i32_2 = arith.constant 0 : i32
    return %arg0, %c0_i32, %c0_i32_0, %c0_i32_1 : i32, i32, i32, i32
  }
  func.func @transform_2(%arg0: i32) -> (i32, i32, i32) {
    %c0_i32 = arith.constant 0 : i32
    %c0_i32_0 = arith.constant 0 : i32
    %c0_i32_1 = arith.constant 0 : i32
    return %arg0, %c0_i32, %c0_i32_0 : i32, i32, i32
  }
}

</mosaic_0001>

<llo_original>
// kernel: relu_grouped_conv2d.1
$region0: #{relu_grouped_conv2d.1}
  #allocation0 [shape = 'u32[]', space=smem, size = 0x4, offset = 0x4, fixed_abs, tag = 'smem constant byte address 0x4 - core index']
  #allocation1 [shape = 'u32[72,128]{1,0:T(1,128)}', space=vmem, size = 0x9000, scoped, tag = 'internal scratch']
  %s0 = inlined_call_operand.vmem [shape: f32[16,4,9,9,128], index: 0, kind: input, shape index: {}]
  %s1 = inlined_call_operand.vmem [shape: f32[16,9,128,128], index: 1, kind: input, shape index: {}]
  %s2 = inlined_call_operand.vmem [shape: f32[16,64,128], index: 2, kind: output, shape index: {}]
  %s3 = sld [smem:[#allocation0]]
  $region41: #{relu_grouped_conv2d.1} parent=0
    _
  %s5 = ssub.s32 1, %s3
  %s6 = scalar_select 0, %s5, %s3
  loop: start=0, step=1, limit=6
  $region2: #{relu_grouped_conv2d.1} parent=0 // loop_pre_header
    _
  $region3: #{relu_grouped_conv2d.1} parent=0 // loop_header
    %s8 = sphi 0, %s12
    %p9 = scmp.ge.s32.totalorder %s8, 6
    %s18 = sphi 0, %s20
    %s21 = sphi 0, %s18
    %s22 = sphi 0, %s21
    %s38 = sphi 0, %s22
    %s44 = sphi 0, %s46
    %s47 = sphi 0, %s44
    %s48 = sphi 0, %s47
    %s64 = sphi 0, %s48
    %s70 = sphi 0, %s72
    %s73 = sphi 0, %s70
    %s74 = sphi 0, %s73
    %s90 = sphi 0, %s74
  $region4: #{relu_grouped_conv2d.1} parent=0 // loop_header_branch
    %11 = sbr.rel (%p9) target = $region8
  $region5: #{relu_grouped_conv2d.1} parent=0 // loop_body
    %s13 = ssub.s32 %s8, 1
    %s14 = ssub.s32 %s8, 2
    %s15 = sadd.s32 %s8, 1
    %s16 = ssub.s32 %s8, %s15
    %p17 = scmp.eq.s32.totalorder %s16, 0
    %s19 = sadd.s32 %s18, 1
    %s20 = scalar_select %p17, %s18, %s19
    %p23 = pneg %p17
    %p24 = scmp.eq.s32.totalorder %s8, 3
    %p25 = por %p23, %p24
    %p26 = scmp.ne.s32.totalorder %s18, %s21
    %p27 = scmp.eq.s32.totalorder %s8, 0
    %p28 = por %p26, %p27
    %p29 = scmp.ne.s32.totalorder %s18, %s21
    %p30 = scmp.eq.s32.totalorder %s13, 3
    %p31 = por %p29, %p30
    %p32 = scmp.ne.s32.totalorder %s21, %s22
    %p33 = scmp.eq.s32.totalorder %s13, 0
    %p34 = por %p32, %p33
    %p35 = scmp.ne.s32.totalorder %s21, %s22
    %p36 = scmp.eq.s32.totalorder %s14, 3
    %p37 = por %p35, %p36
    %p39 = scmp.ne.s32.totalorder %s22, %s38
    %p40 = scmp.eq.s32.totalorder %s14, 0
    %p41 = por %p39, %p40
    %s42 = ssub.s32 %s8, %s15
    %p43 = scmp.eq.s32.totalorder %s42, 0
    %s45 = sadd.s32 %s44, 1
    %s46 = scalar_select %p43, %s44, %s45
    %p49 = pneg %p43
    %p50 = scmp.eq.s32.totalorder %s8, 3
    %p51 = por %p49, %p50
    %p52 = scmp.ne.s32.totalorder %s44, %s47
    %p53 = scmp.eq.s32.totalorder %s8, 0
    %p54 = por %p52, %p53
    %p55 = scmp.ne.s32.totalorder %s44, %s47
    %p56 = scmp.eq.s32.totalorder %s13, 3
    %p57 = por %p55, %p56
    %p58 = scmp.ne.s32.totalorder %s47, %s48
    %p59 = scmp.eq.s32.totalorder %s13, 0
    %p60 = por %p58, %p59
    %p61 = scmp.ne.s32.totalorder %s47, %s48
    %p62 = scmp.eq.s32.totalorder %s14, 3
    %p63 = por %p61, %p62
    %p65 = scmp.ne.s32.totalorder %s48, %s64
    %p66 = scmp.eq.s32.totalorder %s14, 0
    %p67 = por %p65, %p66
    %s68 = ssub.s32 %s8, %s15
    %p69 = scmp.eq.s32.totalorder %s68, 0
    %s71 = sadd.s32 %s70, 1
    %s72 = scalar_select %p69, %s70, %s71
    %p75 = pneg %p69
    %p76 = scmp.eq.s32.totalorder %s8, 3
    %p77 = por %p75, %p76
    %p78 = scmp.ne.s32.totalorder %s70, %s73
    %p79 = scmp.eq.s32.totalorder %s8, 0
    %p80 = por %p78, %p79
    %p81 = scmp.ne.s32.totalorder %s70, %s73
    %p82 = scmp.eq.s32.totalorder %s13, 3
    %p83 = por %p81, %p82
    %p84 = scmp.ne.s32.totalorder %s73, %s74
    %p85 = scmp.eq.s32.totalorder %s13, 0
    %p86 = por %p84, %p85
    %p87 = scmp.ne.s32.totalorder %s73, %s74
    %p88 = scmp.eq.s32.totalorder %s14, 3
    %p89 = por %p87, %p88
    %p91 = scmp.ne.s32.totalorder %s74, %s90
    %p92 = scmp.eq.s32.totalorder %s14, 0
    %p93 = por %p91, %p92
    %p94 = scmp.le.s32.totalorder 1, %s8
    %p95 = scmp.lt.s32.totalorder %s8, 5
    %p96 = pnand %p94, %p95
    %p97 = pneg %p96
    // Predicated region
    $region9: #{relu_grouped_conv2d.1} parent=5 // pred_check
      _
    $region10: #{relu_grouped_conv2d.1} parent=5 // pred_check_branch
      %99 = sbr.rel (%p96) target = $region12
    $region11: #{relu_grouped_conv2d.1} parent=5 // pred_region
      %s100 = ssub.s32 %s8, 1
    $region12: #{relu_grouped_conv2d.1} parent=5 // pred_fallthru
      _
    %p101 = scmp.lt.s32.totalorder %s8, 4
    // Predicated region
    $region13: #{relu_grouped_conv2d.1} parent=5 // pred_check
      %p102 = pneg %p101
    $region14: #{relu_grouped_conv2d.1} parent=5 // pred_check_branch
      %104 = sbr.rel (%p102) target = $region16
    $region15: #{relu_grouped_conv2d.1} parent=5 // pred_region
      // Predicated region
      $region17: #{relu_grouped_conv2d.1} parent=15 // pred_check
        %p105 = pneg %p28
      $region18: #{relu_grouped_conv2d.1} parent=15 // pred_check_branch
        %107 = sbr.rel (%p105) target = $region20
      $region19: #{relu_grouped_conv2d.1} parent=15 // pred_region
        %s108 = smul.u32 4, %s8
        %p109 = scmp.lt.s32.totalorder %s108, 15
        %s110 = scalar_select %p109, %s108, 15
        %s111 = smul.addr %s110, 72
        %s112 = smul.addr %s111, 8
        %s113 = scalar_lea.vmem %s0, %s112
        %s114 = smul.u32 4, %s8
      $region20: #{relu_grouped_conv2d.1} parent=15 // pred_fallthru
        _
      // Predicated region
      $region21: #{relu_grouped_conv2d.1} parent=15 // pred_check
        %p115 = pneg %p54
      $region22: #{relu_grouped_conv2d.1} parent=15 // pred_check_branch
        %117 = sbr.rel (%p115) target = $region24
      $region23: #{relu_grouped_conv2d.1} parent=15 // pred_region
        %s118 = smul.u32 4, %s8
        %p119 = scmp.lt.s32.totalorder %s118, 15
        %s120 = scalar_select %p119, %s118, 15
        %s121 = smul.addr %s120, 144
        %s122 = smul.addr %s121, 8
        %s123 = scalar_lea.vmem %s1, %s122
        %s124 = smul.u32 4, %s8
      $region24: #{relu_grouped_conv2d.1} parent=15 // pred_fallthru
        _
    $region16: #{relu_grouped_conv2d.1} parent=5 // pred_fallthru
      _
    %p125 = scmp.le.s32.totalorder 1, %s8
    %p126 = scmp.lt.s32.totalorder %s8, 5
    %p127 = pnand %p125, %p126
    %p128 = pneg %p127
    // Predicated region
    $region25: #{relu_grouped_conv2d.1} parent=5 // pred_check
      _
    $region26: #{relu_grouped_conv2d.1} parent=5 // pred_check_branch
      %130 = sbr.rel (%p127) target = $region28
    $region27: #{relu_grouped_conv2d.1} parent=5 // pred_region
      %s131 = ssub.s32 %s8, 1
      %s132 = smul.u32 4, %s13
      %p133 = scmp.lt.s32.totalorder %s132, 15
      %s134 = scalar_select %p133, %s132, 15
      %s135 = smul.addr %s134, 72
      %s136 = smul.addr %s135, 8
      %s137 = scalar_lea.vmem %s0, %s136
      %p138 = pneg %p34
      %p139 = pneg %p31
      %s140 = smul.u32 4, %s13
      %p141 = scmp.lt.s32.totalorder %s140, 15
      %s142 = scalar_select %p141, %s140, 15
      %s143 = smul.addr %s142, 144
      %s144 = smul.addr %s143, 8
      %s145 = scalar_lea.vmem %s1, %s144
      %p146 = pneg %p60
      %p147 = pneg %p57
      %p148 = pneg %p86
      %p149 = pneg %p83
      %s150 = smul.u32 4, %s13
      %p151 = scmp.lt.s32.totalorder %s150, 15
      %s152 = scalar_select %p151, %s150, 15
      %s153 = smul.addr %s152, 8
      %s154 = smul.addr %s153, 8
      %s155 = scalar_lea.vmem %s2, %s154
      %s156 = smul.u32 4, %s13
      %p157 = scmp.lt.s32.totalorder %s156, 15
      %s158 = scalar_select %p157, %s156, 15
      %s159 = smul.addr %s158, 72
      %s160 = smul.addr %s159, 8
      %s161 = scalar_lea.vmem %s0, %s160
      %s162 = smul.u32 4, %s13
      %s163 = smul.u32 4, %s13
      %p164 = scmp.lt.s32.totalorder %s163, 15
      %s165 = scalar_select %p164, %s163, 15
      %s166 = smul.addr %s165, 144
      %s167 = smul.addr %s166, 8
      %s168 = scalar_lea.vmem %s1, %s167
      %s169 = smul.u32 4, %s13
      %s170 = smul.u32 4, %s13
      %p171 = scmp.lt.s32.totalorder %s170, 15
      %s172 = scalar_select %p171, %s170, 15
      %s173 = smul.addr %s172, 8
      %s174 = smul.addr %s173, 8
      %s175 = scalar_lea.vmem %s2, %s174
      %s176 = smul.u32 4, %s13
      %v177 = vld [vmem:[%s161] sm:$0xff]
      %v178 = vld [vmem:[%s161 + $0x10] sm:$0xff]
      %v179 = vld [vmem:[%s161 + $0x20] sm:$0xff]
      %v180 = vld [vmem:[%s161 + $0x30] sm:$0xff]
      %v181 = vld [vmem:[%s161 + $0x40] sm:$0xff]
      %v182 = vld [vmem:[%s161 + $0x50] sm:$0xff]
      %v183 = vld [vmem:[%s161 + $0x60] sm:$0xff]
      %v184 = vld [vmem:[%s161 + $0x70] sm:$0xff]
      %v185 = vmax.f32 %v177, 0.0
      %v186 = vmax.f32 %v178, 0.0
      %v187 = vmax.f32 %v179, 0.0
      %v188 = vmax.f32 %v180, 0.0
      %v189 = vmax.f32 %v181, 0.0
      %v190 = vmax.f32 %v182, 0.0
      %v191 = vmax.f32 %v183, 0.0
      %v192 = vmax.f32 %v184, 0.0
      %v193 = vld [vmem:[%s168] sm:$0xff]
      %v194 = vld [vmem:[%s168 + $0x8] sm:$0xff]
      %v195 = vld [vmem:[%s168 + $0x10] sm:$0xff]
      %v196 = vld [vmem:[%s168 + $0x18] sm:$0xff]
      %v197 = vld [vmem:[%s168 + $0x20] sm:$0xff]
      %v198 = vld [vmem:[%s168 + $0x28] sm:$0xff]
      %v199 = vld [vmem:[%s168 + $0x30] sm:$0xff]
      %v200 = vld [vmem:[%s168 + $0x38] sm:$0xff]
      %v201 = vld [vmem:[%s168 + $0x40] sm:$0xff]
      %v202 = vld [vmem:[%s168 + $0x48] sm:$0xff]
      %v203 = vld [vmem:[%s168 + $0x50] sm:$0xff]
      %v204 = vld [vmem:[%s168 + $0x58] sm:$0xff]
      %v205 = vld [vmem:[%s168 + $0x60] sm:$0xff]
      %v206 = vld [vmem:[%s168 + $0x68] sm:$0xff]
      %v207 = vld [vmem:[%s168 + $0x70] sm:$0xff]
      %v208 = vld [vmem:[%s168 + $0x78] sm:$0xff]
      %s209 = scalar_lea.vmem %s161, 144
      %v210 = vld [vmem:[%s209] sm:$0xff]
      %v211 = vld [vmem:[%s209 + $0x10] sm:$0xff]
      %v212 = vld [vmem:[%s209 + $0x20] sm:$0xff]
      %v213 = vld [vmem:[%s209 + $0x30] sm:$0xff]
      %v214 = vld [vmem:[%s209 + $0x40] sm:$0xff]
      %v215 = vld [vmem:[%s209 + $0x50] sm:$0xff]
      %v216 = vld [vmem:[%s209 + $0x60] sm:$0xff]
      %v217 = vld [vmem:[%s209 + $0x70] sm:$0xff]
      %v218 = vmax.f32 %v210, 0.0
      %v219 = vmax.f32 %v211, 0.0
      %v220 = vmax.f32 %v212, 0.0
      %v221 = vmax.f32 %v213, 0.0
      %v222 = vmax.f32 %v214, 0.0
      %v223 = vmax.f32 %v215, 0.0
      %v224 = vmax.f32 %v216, 0.0
      %v225 = vmax.f32 %v217, 0.0
      %s226 = scalar_lea.vmem %s168, 128
      %v227 = vld [vmem:[%s226] sm:$0xff]
      %v228 = vld [vmem:[%s226 + $0x8] sm:$0xff]
      %v229 = vld [vmem:[%s226 + $0x10] sm:$0xff]
      %v230 = vld [vmem:[%s226 + $0x18] sm:$0xff]
      %v231 = vld [vmem:[%s226 + $0x20] sm:$0xff]
      %v232 = vld [vmem:[%s226 + $0x28] sm:$0xff]
      %v233 = vld [vmem:[%s226 + $0x30] sm:$0xff]
      %v234 = vld [vmem:[%s226 + $0x38] sm:$0xff]
      %v235 = vld [vmem:[%s226 + $0x40] sm:$0xff]
      %v236 = vld [vmem:[%s226 + $0x48] sm:$0xff]
      %v237 = vld [vmem:[%s226 + $0x50] sm:$0xff]
      %v238 = vld [vmem:[%s226 + $0x58] sm:$0xff]
      %v239 = vld [vmem:[%s226 + $0x60] sm:$0xff]
      %v240 = vld [vmem:[%s226 + $0x68] sm:$0xff]
      %v241 = vld [vmem:[%s226 + $0x70] sm:$0xff]
      %v242 = vld [vmem:[%s226 + $0x78] sm:$0xff]
      %243 = vmatpush.msra.mxu0 %v242
      %244 = vmatpush.msra.mxu0 %v241
      %245 = vmatpush.msra.mxu0 %v240
      %246 = vmatpush.msra.mxu0 %v239
      %247 = vmatpush.msra.mxu0 %v238
      %248 = vmatpush.msra.mxu0 %v237
      %249 = vmatpush.msra.mxu0 %v236
      %250 = vmatpush.msra.mxu0 %v235
      %251 = vmatpush.msra.mxu0 %v234
      %252 = vmatpush.msra.mxu0 %v233
      %253 = vmatpush.msra.mxu0 %v232
      %254 = vmatpush.msra.mxu0 %v231
      %255 = vmatpush.msra.mxu0 %v230
      %256 = vmatpush.msra.mxu0 %v229
      %257 = vmatpush.msra.mxu0 %v228
      %258 = vmatpush.msra.mxu0 %v227
      %259 = vmatmul.f32.gmra.mxu0 %v218
      %v260 = vpop.f32.mrf.mxu0
      %v261 = vadd.f32 0.0, %v260
      %262 = vmatmul.f32.gmra.mxu0 %v219
      %v263 = vpop.f32.mrf.mxu0
      %v264 = vadd.f32 0.0, %v263
      %265 = vmatmul.f32.gmra.mxu0 %v220
      %v266 = vpop.f32.mrf.mxu0
      %v267 = vadd.f32 0.0, %v266
      %268 = vmatmul.f32.gmra.mxu0 %v221
      %v269 = vpop.f32.mrf.mxu0
      %v270 = vadd.f32 0.0, %v269
      %271 = vmatmul.f32.gmra.mxu0 %v222
      %v272 = vpop.f32.mrf.mxu0
      %v273 = vadd.f32 0.0, %v272
      %274 = vmatmul.f32.gmra.mxu0 %v223
      %v275 = vpop.f32.mrf.mxu0
      %v276 = vadd.f32 0.0, %v275
      %277 = vmatmul.f32.gmra.mxu0 %v224
      %v278 = vpop.f32.mrf.mxu0
      %v279 = vadd.f32 0.0, %v278
      %280 = vmatmul.f32.gmra.mxu0 %v225
      %v281 = vpop.f32.mrf.mxu0
      %v282 = vadd.f32 0.0, %v281
      %283 = vdwg.mxu0
      %284 = vmatpush.msra.mxu0 %v208
      %285 = vmatpush.msra.mxu0 %v207
      %286 = vmatpush.msra.mxu0 %v206
      %287 = vmatpush.msra.mxu0 %v205
      %288 = vmatpush.msra.mxu0 %v204
      %289 = vmatpush.msra.mxu0 %v203
      %290 = vmatpush.msra.mxu0 %v202
      %291 = vmatpush.msra.mxu0 %v201
      %292 = vmatpush.msra.mxu0 %v200
      %293 = vmatpush.msra.mxu0 %v199
      %294 = vmatpush.msra.mxu0 %v198
      %295 = vmatpush.msra.mxu0 %v197
      %296 = vmatpush.msra.mxu0 %v196
      %297 = vmatpush.msra.mxu0 %v195
      %298 = vmatpush.msra.mxu0 %v194
      %299 = vmatpush.msra.mxu0 %v193
      %300 = vmatmul.f32.gmra.mxu0 %v185
      %v301 = vpop.f32.mrf.mxu0
      %v302 = vadd.f32 %v261, %v301
      %303 = vmatmul.f32.gmra.mxu0 %v186
      %v304 = vpop.f32.mrf.mxu0
      %v305 = vadd.f32 %v264, %v304
      %306 = vmatmul.f32.gmra.mxu0 %v187
      %v307 = vpop.f32.mrf.mxu0
      %v308 = vadd.f32 %v267, %v307
      %309 = vmatmul.f32.gmra.mxu0 %v188
      %v310 = vpop.f32.mrf.mxu0
      %v311 = vadd.f32 %v270, %v310
      %312 = vmatmul.f32.gmra.mxu0 %v189
      %v313 = vpop.f32.mrf.mxu0
      %v314 = vadd.f32 %v273, %v313
      %315 = vmatmul.f32.gmra.mxu0 %v190
      %v316 = vpop.f32.mrf.mxu0
      %v317 = vadd.f32 %v276, %v316
      %318 = vmatmul.f32.gmra.mxu0 %v191
      %v319 = vpop.f32.mrf.mxu0
      %v320 = vadd.f32 %v279, %v319
      %321 = vmatmul.f32.gmra.mxu0 %v192
      %v322 = vpop.f32.mrf.mxu0
      %v323 = vadd.f32 %v282, %v322
      %324 = vdwg.mxu0
      %v325 = vld [vmem:[%s161 + $0x1] sm:$0xff]
      %v326 = vld [vmem:[%s161 + $0x11] sm:$0xff]
      %v327 = vld [vmem:[%s161 + $0x21] sm:$0xff]
      %v328 = vld [vmem:[%s161 + $0x31] sm:$0xff]
      %v329 = vld [vmem:[%s161 + $0x41] sm:$0xff]
      %v330 = vld [vmem:[%s161 + $0x51] sm:$0xff]
      %v331 = vld [vmem:[%s161 + $0x61] sm:$0xff]
      %v332 = vld [vmem:[%s161 + $0x71] sm:$0xff]
      %v333 = vmax.f32 %v325, 0.0
      %v334 = vmax.f32 %v326, 0.0
      %v335 = vmax.f32 %v327, 0.0
      %v336 = vmax.f32 %v328, 0.0
      %v337 = vmax.f32 %v329, 0.0
      %v338 = vmax.f32 %v330, 0.0
      %v339 = vmax.f32 %v331, 0.0
      %v340 = vmax.f32 %v332, 0.0
      %s341 = scalar_lea.vmem %s168, 256
      %v342 = vld [vmem:[%s341] sm:$0xff]
      %v343 = vld [vmem:[%s341 + $0x8] sm:$0xff]
      %v344 = vld [vmem:[%s341 + $0x10] sm:$0xff]
      %v345 = vld [vmem:[%s341 + $0x18] sm:$0xff]
      %v346 = vld [vmem:[%s341 + $0x20] sm:$0xff]
      %v347 = vld [vmem:[%s341 + $0x28] sm:$0xff]
      %v348 = vld [vmem:[%s341 + $0x30] sm:$0xff]
      %v349 = vld [vmem:[%s341 + $0x38] sm:$0xff]
      %v350 = vld [vmem:[%s341 + $0x40] sm:$0xff]
      %v351 = vld [vmem:[%s341 + $0x48] sm:$0xff]
      %v352 = vld [vmem:[%s341 + $0x50] sm:$0xff]
      %v353 = vld [vmem:[%s341 + $0x58] sm:$0xff]
      %v354 = vld [vmem:[%s341 + $0x60] sm:$0xff]
      %v355 = vld [vmem:[%s341 + $0x68] sm:$0xff]
      %v356 = vld [vmem:[%s341 + $0x70] sm:$0xff]
      %v357 = vld [vmem:[%s341 + $0x78] sm:$0xff]
      %358 = vmatpush.msra.mxu0 %v357
      %359 = vmatpush.msra.mxu0 %v356
      %360 = vmatpush.msra.mxu0 %v355
      %361 = vmatpush.msra.mxu0 %v354
      %362 = vmatpush.msra.mxu0 %v353
      %363 = vmatpush.msra.mxu0 %v352
      %364 = vmatpush.msra.mxu0 %v351
      %365 = vmatpush.msra.mxu0 %v350
      %366 = vmatpush.msra.mxu0 %v349
      %367 = vmatpush.msra.mxu0 %v348
      %368 = vmatpush.msra.mxu0 %v347
      %369 = vmatpush.msra.mxu0 %v346
      %370 = vmatpush.msra.mxu0 %v345
      %371 = vmatpush.msra.mxu0 %v344
      %372 = vmatpush.msra.mxu0 %v343
      %373 = vmatpush.msra.mxu0 %v342
      %374 = vmatmul.f32.gmra.mxu0 %v333
      %v375 = vpop.f32.mrf.mxu0
      %v376 = vadd.f32 0.0, %v375
      %377 = vmatmul.f32.gmra.mxu0 %v334
      %v378 = vpop.f32.mrf.mxu0
      %v379 = vadd.f32 0.0, %v378
      %380 = vmatmul.f32.gmra.mxu0 %v335
      %v381 = vpop.f32.mrf.mxu0
      %v382 = vadd.f32 0.0, %v381
      %383 = vmatmul.f32.gmra.mxu0 %v336
      %v384 = vpop.f32.mrf.mxu0
      %v385 = vadd.f32 0.0, %v384
      %386 = vmatmul.f32.gmra.mxu0 %v337
      %v387 = vpop.f32.mrf.mxu0
      %v388 = vadd.f32 0.0, %v387
      %389 = vmatmul.f32.gmra.mxu0 %v338
      %v390 = vpop.f32.mrf.mxu0
      %v391 = vadd.f32 0.0, %v390
      %392 = vmatmul.f32.gmra.mxu0 %v339
      %v393 = vpop.f32.mrf.mxu0
      %v394 = vadd.f32 0.0, %v393
      %395 = vmatmul.f32.gmra.mxu0 %v340
      %v396 = vpop.f32.mrf.mxu0
      %v397 = vadd.f32 0.0, %v396
      %398 = vdwg.mxu0
      %v399 = vadd.f32 %v302, %v376
      %v400 = vadd.f32 %v305, %v379
      %v401 = vadd.f32 %v308, %v382
      %v402 = vadd.f32 %v311, %v385
      %v403 = vadd.f32 %v314, %v388
      %v404 = vadd.f32 %v317, %v391
      %v405 = vadd.f32 %v320, %v394
      %v406 = vadd.f32 %v323, %v397
      %s407 = scalar_lea.vmem %s161, 288
      %v408 = vld [vmem:[%s407] sm:$0xff]
      %v409 = vld [vmem:[%s407 + $0x10] sm:$0xff]
      %v410 = vld [vmem:[%s407 + $0x20] sm:$0xff]
      %v411 = vld [vmem:[%s407 + $0x30] sm:$0xff]
      %v412 = vld [vmem:[%s407 + $0x40] sm:$0xff]
      %v413 = vld [vmem:[%s407 + $0x50] sm:$0xff]
      %v414 = vld [vmem:[%s407 + $0x60] sm:$0xff]
      %v415 = vld [vmem:[%s407 + $0x70] sm:$0xff]
      %v416 = vmax.f32 %v408, 0.0
      %v417 = vmax.f32 %v409, 0.0
      %v418 = vmax.f32 %v410, 0.0
      %v419 = vmax.f32 %v411, 0.0
      %v420 = vmax.f32 %v412, 0.0
      %v421 = vmax.f32 %v413, 0.0
      %v422 = vmax.f32 %v414, 0.0
      %v423 = vmax.f32 %v415, 0.0
      %s424 = scalar_lea.vmem %s168, 384
      %v425 = vld [vmem:[%s424] sm:$0xff]
      %v426 = vld [vmem:[%s424 + $0x8] sm:$0xff]
      %v427 = vld [vmem:[%s424 + $0x10] sm:$0xff]
      %v428 = vld [vmem:[%s424 + $0x18] sm:$0xff]
      %v429 = vld [vmem:[%s424 + $0x20] sm:$0xff]
      %v430 = vld [vmem:[%s424 + $0x28] sm:$0xff]
      %v431 = vld [vmem:[%s424 + $0x30] sm:$0xff]
      %v432 = vld [vmem:[%s424 + $0x38] sm:$0xff]
      %v433 = vld [vmem:[%s424 + $0x40] sm:$0xff]
      %v434 = vld [vmem:[%s424 + $0x48] sm:$0xff]
      %v435 = vld [vmem:[%s424 + $0x50] sm:$0xff]
      %v436 = vld [vmem:[%s424 + $0x58] sm:$0xff]
      %v437 = vld [vmem:[%s424 + $0x60] sm:$0xff]
      %v438 = vld [vmem:[%s424 + $0x68] sm:$0xff]
      %v439 = vld [vmem:[%s424 + $0x70] sm:$0xff]
      %v440 = vld [vmem:[%s424 + $0x78] sm:$0xff]
      %441 = vmatpush.msra.mxu0 %v440
      %442 = vmatpush.msra.mxu0 %v439
      %443 = vmatpush.msra.mxu0 %v438
      %444 = vmatpush.msra.mxu0 %v437
      %445 = vmatpush.msra.mxu0 %v436
      %446 = vmatpush.msra.mxu0 %v435
      %447 = vmatpush.msra.mxu0 %v434
      %448 = vmatpush.msra.mxu0 %v433
      %449 = vmatpush.msra.mxu0 %v432
      %450 = vmatpush.msra.mxu0 %v431
      %451 = vmatpush.msra.mxu0 %v430
      %452 = vmatpush.msra.mxu0 %v429
      %453 = vmatpush.msra.mxu0 %v428
      %454 = vmatpush.msra.mxu0 %v427
      %455 = vmatpush.msra.mxu0 %v426
      %456 = vmatpush.msra.mxu0 %v425
      %457 = vmatmul.f32.gmra.mxu0 %v416
      %v458 = vpop.f32.mrf.mxu0
      %v459 = vadd.f32 0.0, %v458
      %460 = vmatmul.f32.gmra.mxu0 %v417
      %v461 = vpop.f32.mrf.mxu0
      %v462 = vadd.f32 0.0, %v461
      %463 = vmatmul.f32.gmra.mxu0 %v418
      %v464 = vpop.f32.mrf.mxu0
      %v465 = vadd.f32 0.0, %v464
      %466 = vmatmul.f32.gmra.mxu0 %v419
      %v467 = vpop.f32.mrf.mxu0
      %v468 = vadd.f32 0.0, %v467
      %469 = vmatmul.f32.gmra.mxu0 %v420
      %v470 = vpop.f32.mrf.mxu0
      %v471 = vadd.f32 0.0, %v470
      %472 = vmatmul.f32.gmra.mxu0 %v421
      %v473 = vpop.f32.mrf.mxu0
      %v474 = vadd.f32 0.0, %v473
      %475 = vmatmul.f32.gmra.mxu0 %v422
      %v476 = vpop.f32.mrf.mxu0
      %v477 = vadd.f32 0.0, %v476
      %478 = vmatmul.f32.gmra.mxu0 %v423
      %v479 = vpop.f32.mrf.mxu0
      %v480 = vadd.f32 0.0, %v479
      %481 = vdwg.mxu0
      %v482 = vadd.f32 %v399, %v459
      %v483 = vadd.f32 %v400, %v462
      %v484 = vadd.f32 %v401, %v465
      %v485 = vadd.f32 %v402, %v468
      %v486 = vadd.f32 %v403, %v471
      %v487 = vadd.f32 %v404, %v474
      %v488 = vadd.f32 %v405, %v477
      %v489 = vadd.f32 %v406, %v480
      %s490 = scalar_lea.vmem %s161, 432
      %v491 = vld [vmem:[%s490] sm:$0xff]
      %v492 = vld [vmem:[%s490 + $0x10] sm:$0xff]
      %v493 = vld [vmem:[%s490 + $0x20] sm:$0xff]
      %v494 = vld [vmem:[%s490 + $0x30] sm:$0xff]
      %v495 = vld [vmem:[%s490 + $0x40] sm:$0xff]
      %v496 = vld [vmem:[%s490 + $0x50] sm:$0xff]
      %v497 = vld [vmem:[%s490 + $0x60] sm:$0xff]
      %v498 = vld [vmem:[%s490 + $0x70] sm:$0xff]
      %v499 = vmax.f32 %v491, 0.0
      %v500 = vmax.f32 %v492, 0.0
      %v501 = vmax.f32 %v493, 0.0
      %v502 = vmax.f32 %v494, 0.0
      %v503 = vmax.f32 %v495, 0.0
      %v504 = vmax.f32 %v496, 0.0
      %v505 = vmax.f32 %v497, 0.0
      %v506 = vmax.f32 %v498, 0.0
      %s507 = scalar_lea.vmem %s168, 512
      %v508 = vld [vmem:[%s507] sm:$0xff]
      %v509 = vld [vmem:[%s507 + $0x8] sm:$0xff]
      %v510 = vld [vmem:[%s507 + $0x10] sm:$0xff]
      %v511 = vld [vmem:[%s507 + $0x18] sm:$0xff]
      %v512 = vld [vmem:[%s507 + $0x20] sm:$0xff]
      %v513 = vld [vmem:[%s507 + $0x28] sm:$0xff]
      %v514 = vld [vmem:[%s507 + $0x30] sm:$0xff]
      %v515 = vld [vmem:[%s507 + $0x38] sm:$0xff]
      %v516 = vld [vmem:[%s507 + $0x40] sm:$0xff]
      %v517 = vld [vmem:[%s507 + $0x48] sm:$0xff]
      %v518 = vld [vmem:[%s507 + $0x50] sm:$0xff]
      %v519 = vld [vmem:[%s507 + $0x58] sm:$0xff]
      %v520 = vld [vmem:[%s507 + $0x60] sm:$0xff]
      %v521 = vld [vmem:[%s507 + $0x68] sm:$0xff]
      %v522 = vld [vmem:[%s507 + $0x70] sm:$0xff]
      %v523 = vld [vmem:[%s507 + $0x78] sm:$0xff]
      %524 = vmatpush.msra.mxu0 %v523
      %525 = vmatpush.msra.mxu0 %v522
      %526 = vmatpush.msra.mxu0 %v521
      %527 = vmatpush.msra.mxu0 %v520
      %528 = vmatpush.msra.mxu0 %v519
      %529 = vmatpush.msra.mxu0 %v518
      %530 = vmatpush.msra.mxu0 %v517
      %531 = vmatpush.msra.mxu0 %v516
      %532 = vmatpush.msra.mxu0 %v515
      %533 = vmatpush.msra.mxu0 %v514
      %534 = vmatpush.msra.mxu0 %v513
      %535 = vmatpush.msra.mxu0 %v512
      %536 = vmatpush.msra.mxu0 %v511
      %537 = vmatpush.msra.mxu0 %v510
      %538 = vmatpush.msra.mxu0 %v509
      %539 = vmatpush.msra.mxu0 %v508
      %540 = vmatmul.f32.gmra.mxu0 %v499
      %v541 = vpop.f32.mrf.mxu0
      %v542 = vadd.f32 0.0, %v541
      %543 = vmatmul.f32.gmra.mxu0 %v500
      %v544 = vpop.f32.mrf.mxu0
      %v545 = vadd.f32 0.0, %v544
      %546 = vmatmul.f32.gmra.mxu0 %v501
      %v547 = vpop.f32.mrf.mxu0
      %v548 = vadd.f32 0.0, %v547
      %549 = vmatmul.f32.gmra.mxu0 %v502
      %v550 = vpop.f32.mrf.mxu0
      %v551 = vadd.f32 0.0, %v550
      %552 = vmatmul.f32.gmra.mxu0 %v503
      %v553 = vpop.f32.mrf.mxu0
      %v554 = vadd.f32 0.0, %v553
      %555 = vmatmul.f32.gmra.mxu0 %v504
      %v556 = vpop.f32.mrf.mxu0
      %v557 = vadd.f32 0.0, %v556
      %558 = vmatmul.f32.gmra.mxu0 %v505
      %v559 = vpop.f32.mrf.mxu0
      %v560 = vadd.f32 0.0, %v559
      %561 = vmatmul.f32.gmra.mxu0 %v506
      %v562 = vpop.f32.mrf.mxu0
      %v563 = vadd.f32 0.0, %v562
      %564 = vdwg.mxu0
      %v565 = vadd.f32 %v482, %v542
      %v566 = vadd.f32 %v483, %v545
      %v567 = vadd.f32 %v484, %v548
      %v568 = vadd.f32 %v485, %v551
      %v569 = vadd.f32 %v486, %v554
      %v570 = vadd.f32 %v487, %v557
      %v571 = vadd.f32 %v488, %v560
      %v572 = vadd.f32 %v489, %v563
      %v573 = vld [vmem:[%s407 + $0x1] sm:$0xff]
      %v574 = vld [vmem:[%s407 + $0x11] sm:$0xff]
      %v575 = vld [vmem:[%s407 + $0x21] sm:$0xff]
      %v576 = vld [vmem:[%s407 + $0x31] sm:$0xff]
      %v577 = vld [vmem:[%s407 + $0x41] sm:$0xff]
      %v578 = vld [vmem:[%s407 + $0x51] sm:$0xff]
      %v579 = vld [vmem:[%s407 + $0x61] sm:$0xff]
      %v580 = vld [vmem:[%s407 + $0x71] sm:$0xff]
      %v581 = vmax.f32 %v573, 0.0
      %v582 = vmax.f32 %v574, 0.0
      %v583 = vmax.f32 %v575, 0.0
      %v584 = vmax.f32 %v576, 0.0
      %v585 = vmax.f32 %v577, 0.0
      %v586 = vmax.f32 %v578, 0.0
      %v587 = vmax.f32 %v579, 0.0
      %v588 = vmax.f32 %v580, 0.0
      %s589 = scalar_lea.vmem %s168, 640
      %v590 = vld [vmem:[%s589] sm:$0xff]
      %v591 = vld [vmem:[%s589 + $0x8] sm:$0xff]
      %v592 = vld [vmem:[%s589 + $0x10] sm:$0xff]
      %v593 = vld [vmem:[%s589 + $0x18] sm:$0xff]
      %v594 = vld [vmem:[%s589 + $0x20] sm:$0xff]
      %v595 = vld [vmem:[%s589 + $0x28] sm:$0xff]
      %v596 = vld [vmem:[%s589 + $0x30] sm:$0xff]
      %v597 = vld [vmem:[%s589 + $0x38] sm:$0xff]
      %v598 = vld [vmem:[%s589 + $0x40] sm:$0xff]
      %v599 = vld [vmem:[%s589 + $0x48] sm:$0xff]
      %v600 = vld [vmem:[%s589 + $0x50] sm:$0xff]
      %v601 = vld [vmem:[%s589 + $0x58] sm:$0xff]
      %v602 = vld [vmem:[%s589 + $0x60] sm:$0xff]
      %v603 = vld [vmem:[%s589 + $0x68] sm:$0xff]
      %v604 = vld [vmem:[%s589 + $0x70] sm:$0xff]
      %v605 = vld [vmem:[%s589 + $0x78] sm:$0xff]
      %606 = vmatpush.msra.mxu0 %v605
      %607 = vmatpush.msra.mxu0 %v604
      %608 = vmatpush.msra.mxu0 %v603
      %609 = vmatpush.msra.mxu0 %v602
      %610 = vmatpush.msra.mxu0 %v601
      %611 = vmatpush.msra.mxu0 %v600
      %612 = vmatpush.msra.mxu0 %v599
      %613 = vmatpush.msra.mxu0 %v598
      %614 = vmatpush.msra.mxu0 %v597
      %615 = vmatpush.msra.mxu0 %v596
      %616 = vmatpush.msra.mxu0 %v595
      %617 = vmatpush.msra.mxu0 %v594
      %618 = vmatpush.msra.mxu0 %v593
      %619 = vmatpush.msra.mxu0 %v592
      %620 = vmatpush.msra.mxu0 %v591
      %621 = vmatpush.msra.mxu0 %v590
      %622 = vmatmul.f32.gmra.mxu0 %v581
      %v623 = vpop.f32.mrf.mxu0
      %v624 = vadd.f32 0.0, %v623
      %625 = vmatmul.f32.gmra.mxu0 %v582
      %v626 = vpop.f32.mrf.mxu0
      %v627 = vadd.f32 0.0, %v626
      %628 = vmatmul.f32.gmra.mxu0 %v583
      %v629 = vpop.f32.mrf.mxu0
      %v630 = vadd.f32 0.0, %v629
      %631 = vmatmul.f32.gmra.mxu0 %v584
      %v632 = vpop.f32.mrf.mxu0
      %v633 = vadd.f32 0.0, %v632
      %634 = vmatmul.f32.gmra.mxu0 %v585
      %v635 = vpop.f32.mrf.mxu0
      %v636 = vadd.f32 0.0, %v635
      %637 = vmatmul.f32.gmra.mxu0 %v586
      %v638 = vpop.f32.mrf.mxu0
      %v639 = vadd.f32 0.0, %v638
      %640 = vmatmul.f32.gmra.mxu0 %v587
      %v641 = vpop.f32.mrf.mxu0
      %v642 = vadd.f32 0.0, %v641
      %643 = vmatmul.f32.gmra.mxu0 %v588
      %v644 = vpop.f32.mrf.mxu0
      %v645 = vadd.f32 0.0, %v644
      %646 = vdwg.mxu0
      %v647 = vadd.f32 %v565, %v624
      %v648 = vadd.f32 %v566, %v627
      %v649 = vadd.f32 %v567, %v630
      %v650 = vadd.f32 %v568, %v633
      %v651 = vadd.f32 %v569, %v636
      %v652 = vadd.f32 %v570, %v639
      %v653 = vadd.f32 %v571, %v642
      %v654 = vadd.f32 %v572, %v645
      %s655 = scalar_lea.vmem %s161, 16
      %v656 = vld [vmem:[%s655] sm:$0xff]
      %v657 = vld [vmem:[%s655 + $0x10] sm:$0xff]
      %v658 = vld [vmem:[%s655 + $0x20] sm:$0xff]
      %v659 = vld [vmem:[%s655 + $0x30] sm:$0xff]
      %v660 = vld [vmem:[%s655 + $0x40] sm:$0xff]
      %v661 = vld [vmem:[%s655 + $0x50] sm:$0xff]
      %v662 = vld [vmem:[%s655 + $0x60] sm:$0xff]
      %v663 = vld [vmem:[%s655 + $0x70] sm:$0xff]
      %v664 = vmax.f32 %v656, 0.0
      %v665 = vmax.f32 %v657, 0.0
      %v666 = vmax.f32 %v658, 0.0
      %v667 = vmax.f32 %v659, 0.0
      %v668 = vmax.f32 %v660, 0.0
      %v669 = vmax.f32 %v661, 0.0
      %v670 = vmax.f32 %v662, 0.0
      %v671 = vmax.f32 %v663, 0.0
      %s672 = scalar_lea.vmem %s168, 768
      %v673 = vld [vmem:[%s672] sm:$0xff]
      %v674 = vld [vmem:[%s672 + $0x8] sm:$0xff]
      %v675 = vld [vmem:[%s672 + $0x10] sm:$0xff]
      %v676 = vld [vmem:[%s672 + $0x18] sm:$0xff]
      %v677 = vld [vmem:[%s672 + $0x20] sm:$0xff]
      %v678 = vld [vmem:[%s672 + $0x28] sm:$0xff]
      %v679 = vld [vmem:[%s672 + $0x30] sm:$0xff]
      %v680 = vld [vmem:[%s672 + $0x38] sm:$0xff]
      %v681 = vld [vmem:[%s672 + $0x40] sm:$0xff]
      %v682 = vld [vmem:[%s672 + $0x48] sm:$0xff]
      %v683 = vld [vmem:[%s672 + $0x50] sm:$0xff]
      %v684 = vld [vmem:[%s672 + $0x58] sm:$0xff]
      %v685 = vld [vmem:[%s672 + $0x60] sm:$0xff]
      %v686 = vld [vmem:[%s672 + $0x68] sm:$0xff]
      %v687 = vld [vmem:[%s672 + $0x70] sm:$0xff]
      %v688 = vld [vmem:[%s672 + $0x78] sm:$0xff]
      %689 = vmatpush.msra.mxu0 %v688
      %690 = vmatpush.msra.mxu0 %v687
      %691 = vmatpush.msra.mxu0 %v686
      %692 = vmatpush.msra.mxu0 %v685
      %693 = vmatpush.msra.mxu0 %v684
      %694 = vmatpush.msra.mxu0 %v683
      %695 = vmatpush.msra.mxu0 %v682
      %696 = vmatpush.msra.mxu0 %v681
      %697 = vmatpush.msra.mxu0 %v680
      %698 = vmatpush.msra.mxu0 %v679
      %699 = vmatpush.msra.mxu0 %v678
      %700 = vmatpush.msra.mxu0 %v677
      %701 = vmatpush.msra.mxu0 %v676
      %702 = vmatpush.msra.mxu0 %v675
      %703 = vmatpush.msra.mxu0 %v674
      %704 = vmatpush.msra.mxu0 %v673
      %705 = vmatmul.f32.gmra.mxu0 %v664
      %v706 = vpop.f32.mrf.mxu0
      %v707 = vadd.f32 0.0, %v706
      %708 = vmatmul.f32.gmra.mxu0 %v665
      %v709 = vpop.f32.mrf.mxu0
      %v710 = vadd.f32 0.0, %v709
      %711 = vmatmul.f32.gmra.mxu0 %v666
      %v712 = vpop.f32.mrf.mxu0
      %v713 = vadd.f32 0.0, %v712
      %714 = vmatmul.f32.gmra.mxu0 %v667
      %v715 = vpop.f32.mrf.mxu0
      %v716 = vadd.f32 0.0, %v715
      %717 = vmatmul.f32.gmra.mxu0 %v668
      %v718 = vpop.f32.mrf.mxu0
      %v719 = vadd.f32 0.0, %v718
      %720 = vmatmul.f32.gmra.mxu0 %v669
      %v721 = vpop.f32.mrf.mxu0
      %v722 = vadd.f32 0.0, %v721
      %723 = vmatmul.f32.gmra.mxu0 %v670
      %v724 = vpop.f32.mrf.mxu0
      %v725 = vadd.f32 0.0, %v724
      %726 = vmatmul.f32.gmra.mxu0 %v671
      %v727 = vpop.f32.mrf.mxu0
      %v728 = vadd.f32 0.0, %v727
      %729 = vdwg.mxu0
      %v730 = vadd.f32 %v647, %v707
      %v731 = vadd.f32 %v648, %v710
      %v732 = vadd.f32 %v649, %v713
      %v733 = vadd.f32 %v650, %v716
      %v734 = vadd.f32 %v651, %v719
      %v735 = vadd.f32 %v652, %v722
      %v736 = vadd.f32 %v653, %v725
      %v737 = vadd.f32 %v654, %v728
      %s738 = scalar_lea.vmem %s161, 160
      %v739 = vld [vmem:[%s738] sm:$0xff]
      %v740 = vld [vmem:[%s738 + $0x10] sm:$0xff]
      %v741 = vld [vmem:[%s738 + $0x20] sm:$0xff]
      %v742 = vld [vmem:[%s738 + $0x30] sm:$0xff]
      %v743 = vld [vmem:[%s738 + $0x40] sm:$0xff]
      %v744 = vld [vmem:[%s738 + $0x50] sm:$0xff]
      %v745 = vld [vmem:[%s738 + $0x60] sm:$0xff]
      %v746 = vld [vmem:[%s738 + $0x70] sm:$0xff]
      %v747 = vmax.f32 %v739, 0.0
      %v748 = vmax.f32 %v740, 0.0
      %v749 = vmax.f32 %v741, 0.0
      %v750 = vmax.f32 %v742, 0.0
      %v751 = vmax.f32 %v743, 0.0
      %v752 = vmax.f32 %v744, 0.0
      %v753 = vmax.f32 %v745, 0.0
      %v754 = vmax.f32 %v746, 0.0
      %s755 = scalar_lea.vmem %s168, 896
      %v756 = vld [vmem:[%s755] sm:$0xff]
      %v757 = vld [vmem:[%s755 + $0x8] sm:$0xff]
      %v758 = vld [vmem:[%s755 + $0x10] sm:$0xff]
      %v759 = vld [vmem:[%s755 + $0x18] sm:$0xff]
      %v760 = vld [vmem:[%s755 + $0x20] sm:$0xff]
      %v761 = vld [vmem:[%s755 + $0x28] sm:$0xff]
      %v762 = vld [vmem:[%s755 + $0x30] sm:$0xff]
      %v763 = vld [vmem:[%s755 + $0x38] sm:$0xff]
      %v764 = vld [vmem:[%s755 + $0x40] sm:$0xff]
      %v765 = vld [vmem:[%s755 + $0x48] sm:$0xff]
      %v766 = vld [vmem:[%s755 + $0x50] sm:$0xff]
      %v767 = vld [vmem:[%s755 + $0x58] sm:$0xff]
      %v768 = vld [vmem:[%s755 + $0x60] sm:$0xff]
      %v769 = vld [vmem:[%s755 + $0x68] sm:$0xff]
      %v770 = vld [vmem:[%s755 + $0x70] sm:$0xff]
      %v771 = vld [vmem:[%s755 + $0x78] sm:$0xff]
      %772 = vmatpush.msra.mxu0 %v771
      %773 = vmatpush.msra.mxu0 %v770
      %774 = vmatpush.msra.mxu0 %v769
      %775 = vmatpush.msra.mxu0 %v768
      %776 = vmatpush.msra.mxu0 %v767
      %777 = vmatpush.msra.mxu0 %v766
      %778 = vmatpush.msra.mxu0 %v765
      %779 = vmatpush.msra.mxu0 %v764
      %780 = vmatpush.msra.mxu0 %v763
      %781 = vmatpush.msra.mxu0 %v762
      %782 = vmatpush.msra.mxu0 %v761
      %783 = vmatpush.msra.mxu0 %v760
      %784 = vmatpush.msra.mxu0 %v759
      %785 = vmatpush.msra.mxu0 %v758
      %786 = vmatpush.msra.mxu0 %v757
      %787 = vmatpush.msra.mxu0 %v756
      %788 = vmatmul.f32.gmra.mxu0 %v747
      %v789 = vpop.f32.mrf.mxu0
      %v790 = vadd.f32 0.0, %v789
      %791 = vmatmul.f32.gmra.mxu0 %v748
      %v792 = vpop.f32.mrf.mxu0
      %v793 = vadd.f32 0.0, %v792
      %794 = vmatmul.f32.gmra.mxu0 %v749
      %v795 = vpop.f32.mrf.mxu0
      %v796 = vadd.f32 0.0, %v795
      %797 = vmatmul.f32.gmra.mxu0 %v750
      %v798 = vpop.f32.mrf.mxu0
      %v799 = vadd.f32 0.0, %v798
      %800 = vmatmul.f32.gmra.mxu0 %v751
      %v801 = vpop.f32.mrf.mxu0
      %v802 = vadd.f32 0.0, %v801
      %803 = vmatmul.f32.gmra.mxu0 %v752
      %v804 = vpop.f32.mrf.mxu0
      %v805 = vadd.f32 0.0, %v804
      %806 = vmatmul.f32.gmra.mxu0 %v753
      %v807 = vpop.f32.mrf.mxu0
      %v808 = vadd.f32 0.0, %v807
      %809 = vmatmul.f32.gmra.mxu0 %v754
      %v810 = vpop.f32.mrf.mxu0
      %v811 = vadd.f32 0.0, %v810
      %812 = vdwg.mxu0
      %v813 = vadd.f32 %v730, %v790
      %v814 = vadd.f32 %v731, %v793
      %v815 = vadd.f32 %v732, %v796
      %v816 = vadd.f32 %v733, %v799
      %v817 = vadd.f32 %v734, %v802
      %v818 = vadd.f32 %v735, %v805
      %v819 = vadd.f32 %v736, %v808
      %v820 = vadd.f32 %v737, %v811
      %v821 = vld [vmem:[%s655 + $0x1] sm:$0xff]
      %v822 = vld [vmem:[%s655 + $0x11] sm:$0xff]
      %v823 = vld [vmem:[%s655 + $0x21] sm:$0xff]
      %v824 = vld [vmem:[%s655 + $0x31] sm:$0xff]
      %v825 = vld [vmem:[%s655 + $0x41] sm:$0xff]
      %v826 = vld [vmem:[%s655 + $0x51] sm:$0xff]
      %v827 = vld [vmem:[%s655 + $0x61] sm:$0xff]
      %v828 = vld [vmem:[%s655 + $0x71] sm:$0xff]
      %v829 = vmax.f32 %v821, 0.0
      %v830 = vmax.f32 %v822, 0.0
      %v831 = vmax.f32 %v823, 0.0
      %v832 = vmax.f32 %v824, 0.0
      %v833 = vmax.f32 %v825, 0.0
      %v834 = vmax.f32 %v826, 0.0
      %v835 = vmax.f32 %v827, 0.0
      %v836 = vmax.f32 %v828, 0.0
      %s837 = scalar_lea.vmem %s168, 1024
      %v838 = vld [vmem:[%s837] sm:$0xff]
      %v839 = vld [vmem:[%s837 + $0x8] sm:$0xff]
      %v840 = vld [vmem:[%s837 + $0x10] sm:$0xff]
      %v841 = vld [vmem:[%s837 + $0x18] sm:$0xff]
      %v842 = vld [vmem:[%s837 + $0x20] sm:$0xff]
      %v843 = vld [vmem:[%s837 + $0x28] sm:$0xff]
      %v844 = vld [vmem:[%s837 + $0x30] sm:$0xff]
      %v845 = vld [vmem:[%s837 + $0x38] sm:$0xff]
      %v846 = vld [vmem:[%s837 + $0x40] sm:$0xff]
      %v847 = vld [vmem:[%s837 + $0x48] sm:$0xff]
      %v848 = vld [vmem:[%s837 + $0x50] sm:$0xff]
      %v849 = vld [vmem:[%s837 + $0x58] sm:$0xff]
      %v850 = vld [vmem:[%s837 + $0x60] sm:$0xff]
      %v851 = vld [vmem:[%s837 + $0x68] sm:$0xff]
      %v852 = vld [vmem:[%s837 + $0x70] sm:$0xff]
      %v853 = vld [vmem:[%s837 + $0x78] sm:$0xff]
      %854 = vmatpush.msra.mxu0 %v853
      %855 = vmatpush.msra.mxu0 %v852
      %856 = vmatpush.msra.mxu0 %v851
      %857 = vmatpush.msra.mxu0 %v850
      %858 = vmatpush.msra.mxu0 %v849
      %859 = vmatpush.msra.mxu0 %v848
      %860 = vmatpush.msra.mxu0 %v847
      %861 = vmatpush.msra.mxu0 %v846
      %862 = vmatpush.msra.mxu0 %v845
      %863 = vmatpush.msra.mxu0 %v844
      %864 = vmatpush.msra.mxu0 %v843
      %865 = vmatpush.msra.mxu0 %v842
      %866 = vmatpush.msra.mxu0 %v841
      %867 = vmatpush.msra.mxu0 %v840
      %868 = vmatpush.msra.mxu0 %v839
      %869 = vmatpush.msra.mxu0 %v838
      %870 = vmatmul.f32.gmra.mxu0 %v829
      %v871 = vpop.f32.mrf.mxu0
      %v872 = vadd.f32 0.0, %v871
      %873 = vmatmul.f32.gmra.mxu0 %v830
      %v874 = vpop.f32.mrf.mxu0
      %v875 = vadd.f32 0.0, %v874
      %876 = vmatmul.f32.gmra.mxu0 %v831
      %v877 = vpop.f32.mrf.mxu0
      %v878 = vadd.f32 0.0, %v877
      %879 = vmatmul.f32.gmra.mxu0 %v832
      %v880 = vpop.f32.mrf.mxu0
      %v881 = vadd.f32 0.0, %v880
      %882 = vmatmul.f32.gmra.mxu0 %v833
      %v883 = vpop.f32.mrf.mxu0
      %v884 = vadd.f32 0.0, %v883
      %885 = vmatmul.f32.gmra.mxu0 %v834
      %v886 = vpop.f32.mrf.mxu0
      %v887 = vadd.f32 0.0, %v886
      %888 = vmatmul.f32.gmra.mxu0 %v835
      %v889 = vpop.f32.mrf.mxu0
      %v890 = vadd.f32 0.0, %v889
      %891 = vmatmul.f32.gmra.mxu0 %v836
      %v892 = vpop.f32.mrf.mxu0
      %v893 = vadd.f32 0.0, %v892
      %894 = vdwg.mxu0
      %v895 = vadd.f32 %v813, %v872
      %v896 = vadd.f32 %v814, %v875
      %v897 = vadd.f32 %v815, %v878
      %v898 = vadd.f32 %v816, %v881
      %v899 = vadd.f32 %v817, %v884
      %v900 = vadd.f32 %v818, %v887
      %v901 = vadd.f32 %v819, %v890
      %v902 = vadd.f32 %v820, %v893
      %903 = vst [vmem:[%s175] sm:$0xff] %v895
      %904 = vst [vmem:[%s175 + $0x8] sm:$0xff] %v896
      %905 = vst [vmem:[%s175 + $0x10] sm:$0xff] %v897
      %906 = vst [vmem:[%s175 + $0x18] sm:$0xff] %v898
      %907 = vst [vmem:[%s175 + $0x20] sm:$0xff] %v899
      %908 = vst [vmem:[%s175 + $0x28] sm:$0xff] %v900
      %909 = vst [vmem:[%s175 + $0x30] sm:$0xff] %v901
      %910 = vst [vmem:[%s175 + $0x38] sm:$0xff] %v902
      %s911 = scalar_lea.vmem %s161, 576
      %v912 = vld [vmem:[%s911] sm:$0xff]
      %v913 = vld [vmem:[%s911 + $0x10] sm:$0xff]
      %v914 = vld [vmem:[%s911 + $0x20] sm:$0xff]
      %v915 = vld [vmem:[%s911 + $0x30] sm:$0xff]
      %v916 = vld [vmem:[%s911 + $0x40] sm:$0xff]
      %v917 = vld [vmem:[%s911 + $0x50] sm:$0xff]
      %v918 = vld [vmem:[%s911 + $0x60] sm:$0xff]
      %v919 = vld [vmem:[%s911 + $0x70] sm:$0xff]
      %v920 = vmax.f32 %v912, 0.0
      %v921 = vmax.f32 %v913, 0.0
      %v922 = vmax.f32 %v914, 0.0
      %v923 = vmax.f32 %v915, 0.0
      %v924 = vmax.f32 %v916, 0.0
      %v925 = vmax.f32 %v917, 0.0
      %v926 = vmax.f32 %v918, 0.0
      %v927 = vmax.f32 %v919, 0.0
      %s928 = scalar_lea.vmem %s168, 1152
      %v929 = vld [vmem:[%s928] sm:$0xff]
      %v930 = vld [vmem:[%s928 + $0x8] sm:$0xff]
      %v931 = vld [vmem:[%s928 + $0x10] sm:$0xff]
      %v932 = vld [vmem:[%s928 + $0x18] sm:$0xff]
      %v933 = vld [vmem:[%s928 + $0x20] sm:$0xff]
      %v934 = vld [vmem:[%s928 + $0x28] sm:$0xff]
      %v935 = vld [vmem:[%s928 + $0x30] sm:$0xff]
      %v936 = vld [vmem:[%s928 + $0x38] sm:$0xff]
      %v937 = vld [vmem:[%s928 + $0x40] sm:$0xff]
      %v938 = vld [vmem:[%s928 + $0x48] sm:$0xff]
      %v939 = vld [vmem:[%s928 + $0x50] sm:$0xff]
      %v940 = vld [vmem:[%s928 + $0x58] sm:$0xff]
      %v941 = vld [vmem:[%s928 + $0x60] sm:$0xff]
      %v942 = vld [vmem:[%s928 + $0x68] sm:$0xff]
      %v943 = vld [vmem:[%s928 + $0x70] sm:$0xff]
      %v944 = vld [vmem:[%s928 + $0x78] sm:$0xff]
      %s945 = scalar_lea.vmem %s161, 720
      %v946 = vld [vmem:[%s945] sm:$0xff]
      %v947 = vld [vmem:[%s945 + $0x10] sm:$0xff]
      %v948 = vld [vmem:[%s945 + $0x20] sm:$0xff]
      %v949 = vld [vmem:[%s945 + $0x30] sm:$0xff]
      %v950 = vld [vmem:[%s945 + $0x40] sm:$0xff]
      %v951 = vld [vmem:[%s945 + $0x50] sm:$0xff]
      %v952 = vld [vmem:[%s945 + $0x60] sm:$0xff]
      %v953 = vld [vmem:[%s945 + $0x70] sm:$0xff]
      %v954 = vmax.f32 %v946, 0.0
      %v955 = vmax.f32 %v947, 0.0
      %v956 = vmax.f32 %v948, 0.0
      %v957 = vmax.f32 %v949, 0.0
      %v958 = vmax.f32 %v950, 0.0
      %v959 = vmax.f32 %v951, 0.0
      %v960 = vmax.f32 %v952, 0.0
      %v961 = vmax.f32 %v953, 0.0
      %s962 = scalar_lea.vmem %s168, 1280
      %v963 = vld [vmem:[%s962] sm:$0xff]
      %v964 = vld [vmem:[%s962 + $0x8] sm:$0xff]
      %v965 = vld [vmem:[%s962 + $0x10] sm:$0xff]
      %v966 = vld [vmem:[%s962 + $0x18] sm:$0xff]
      %v967 = vld [vmem:[%s962 + $0x20] sm:$0xff]
      %v968 = vld [vmem:[%s962 + $0x28] sm:$0xff]
      %v969 = vld [vmem:[%s962 + $0x30] sm:$0xff]
      %v970 = vld [vmem:[%s962 + $0x38] sm:$0xff]
      %v971 = vld [vmem:[%s962 + $0x40] sm:$0xff]
      %v972 = vld [vmem:[%s962 + $0x48] sm:$0xff]
      %v973 = vld [vmem:[%s962 + $0x50] sm:$0xff]
      %v974 = vld [vmem:[%s962 + $0x58] sm:$0xff]
      %v975 = vld [vmem:[%s962 + $0x60] sm:$0xff]
      %v976 = vld [vmem:[%s962 + $0x68] sm:$0xff]
      %v977 = vld [vmem:[%s962 + $0x70] sm:$0xff]
      %v978 = vld [vmem:[%s962 + $0x78] sm:$0xff]
      %979 = vmatpush.msra.mxu0 %v978
      %980 = vmatpush.msra.mxu0 %v977
      %981 = vmatpush.msra.mxu0 %v976
      %982 = vmatpush.msra.mxu0 %v975
      %983 = vmatpush.msra.mxu0 %v974
      %984 = vmatpush.msra.mxu0 %v973
      %985 = vmatpush.msra.mxu0 %v972
      %986 = vmatpush.msra.mxu0 %v971
      %987 = vmatpush.msra.mxu0 %v970
      %988 = vmatpush.msra.mxu0 %v969
      %989 = vmatpush.msra.mxu0 %v968
      %990 = vmatpush.msra.mxu0 %v967
      %991 = vmatpush.msra.mxu0 %v966
      %992 = vmatpush.msra.mxu0 %v965
      %993 = vmatpush.msra.mxu0 %v964
      %994 = vmatpush.msra.mxu0 %v963
      %995 = vmatmul.f32.gmra.mxu0 %v954
      %v996 = vpop.f32.mrf.mxu0
      %v997 = vadd.f32 0.0, %v996
      %998 = vmatmul.f32.gmra.mxu0 %v955
      %v999 = vpop.f32.mrf.mxu0
      %v1000 = vadd.f32 0.0, %v999
      %1001 = vmatmul.f32.gmra.mxu0 %v956
      %v1002 = vpop.f32.mrf.mxu0
      %v1003 = vadd.f32 0.0, %v1002
      %1004 = vmatmul.f32.gmra.mxu0 %v957
      %v1005 = vpop.f32.mrf.mxu0
      %v1006 = vadd.f32 0.0, %v1005
      %1007 = vmatmul.f32.gmra.mxu0 %v958
      %v1008 = vpop.f32.mrf.mxu0
      %v1009 = vadd.f32 0.0, %v1008
      %1010 = vmatmul.f32.gmra.mxu0 %v959
      %v1011 = vpop.f32.mrf.mxu0
      %v1012 = vadd.f32 0.0, %v1011
      %1013 = vmatmul.f32.gmra.mxu0 %v960
      %v1014 = vpop.f32.mrf.mxu0
      %v1015 = vadd.f32 0.0, %v1014
      %1016 = vmatmul.f32.gmra.mxu0 %v961
      %v1017 = vpop.f32.mrf.mxu0
      %v1018 = vadd.f32 0.0, %v1017
      %1019 = vdwg.mxu0
      %1020 = vmatpush.msra.mxu0 %v944
      %1021 = vmatpush.msra.mxu0 %v943
      %1022 = vmatpush.msra.mxu0 %v942
      %1023 = vmatpush.msra.mxu0 %v941
      %1024 = vmatpush.msra.mxu0 %v940
      %1025 = vmatpush.msra.mxu0 %v939
      %1026 = vmatpush.msra.mxu0 %v938
      %1027 = vmatpush.msra.mxu0 %v937
      %1028 = vmatpush.msra.mxu0 %v936
      %1029 = vmatpush.msra.mxu0 %v935
      %1030 = vmatpush.msra.mxu0 %v934
      %1031 = vmatpush.msra.mxu0 %v933
      %1032 = vmatpush.msra.mxu0 %v932
      %1033 = vmatpush.msra.mxu0 %v931
      %1034 = vmatpush.msra.mxu0 %v930
      %1035 = vmatpush.msra.mxu0 %v929
      %1036 = vmatmul.f32.gmra.mxu0 %v920
      %v1037 = vpop.f32.mrf.mxu0
      %v1038 = vadd.f32 %v997, %v1037
      %1039 = vmatmul.f32.gmra.mxu0 %v921
      %v1040 = vpop.f32.mrf.mxu0
      %v1041 = vadd.f32 %v1000, %v1040
      %1042 = vmatmul.f32.gmra.mxu0 %v922
      %v1043 = vpop.f32.mrf.mxu0
      %v1044 = vadd.f32 %v1003, %v1043
      %1045 = vmatmul.f32.gmra.mxu0 %v923
      %v1046 = vpop.f32.mrf.mxu0
      %v1047 = vadd.f32 %v1006, %v1046
      %1048 = vmatmul.f32.gmra.mxu0 %v924
      %v1049 = vpop.f32.mrf.mxu0
      %v1050 = vadd.f32 %v1009, %v1049
      %1051 = vmatmul.f32.gmra.mxu0 %v925
      %v1052 = vpop.f32.mrf.mxu0
      %v1053 = vadd.f32 %v1012, %v1052
      %1054 = vmatmul.f32.gmra.mxu0 %v926
      %v1055 = vpop.f32.mrf.mxu0
      %v1056 = vadd.f32 %v1015, %v1055
      %1057 = vmatmul.f32.gmra.mxu0 %v927
      %v1058 = vpop.f32.mrf.mxu0
      %v1059 = vadd.f32 %v1018, %v1058
      %1060 = vdwg.mxu0
      %v1061 = vld [vmem:[%s911 + $0x1] sm:$0xff]
      %v1062 = vld [vmem:[%s911 + $0x11] sm:$0xff]
      %v1063 = vld [vmem:[%s911 + $0x21] sm:$0xff]
      %v1064 = vld [vmem:[%s911 + $0x31] sm:$0xff]
      %v1065 = vld [vmem:[%s911 + $0x41] sm:$0xff]
      %v1066 = vld [vmem:[%s911 + $0x51] sm:$0xff]
      %v1067 = vld [vmem:[%s911 + $0x61] sm:$0xff]
      %v1068 = vld [vmem:[%s911 + $0x71] sm:$0xff]
      %v1069 = vmax.f32 %v1061, 0.0
      %v1070 = vmax.f32 %v1062, 0.0
      %v1071 = vmax.f32 %v1063, 0.0
      %v1072 = vmax.f32 %v1064, 0.0
      %v1073 = vmax.f32 %v1065, 0.0
      %v1074 = vmax.f32 %v1066, 0.0
      %v1075 = vmax.f32 %v1067, 0.0
      %v1076 = vmax.f32 %v1068, 0.0
      %s1077 = scalar_lea.vmem %s168, 1408
      %v1078 = vld [vmem:[%s1077] sm:$0xff]
      %v1079 = vld [vmem:[%s1077 + $0x8] sm:$0xff]
      %v1080 = vld [vmem:[%s1077 + $0x10] sm:$0xff]
      %v1081 = vld [vmem:[%s1077 + $0x18] sm:$0xff]
      %v1082 = vld [vmem:[%s1077 + $0x20] sm:$0xff]
      %v1083 = vld [vmem:[%s1077 + $0x28] sm:$0xff]
      %v1084 = vld [vmem:[%s1077 + $0x30] sm:$0xff]
      %v1085 = vld [vmem:[%s1077 + $0x38] sm:$0xff]
      %v1086 = vld [vmem:[%s1077 + $0x40] sm:$0xff]
      %v1087 = vld [vmem:[%s1077 + $0x48] sm:$0xff]
      %v1088 = vld [vmem:[%s1077 + $0x50] sm:$0xff]
      %v1089 = vld [vmem:[%s1077 + $0x58] sm:$0xff]
      %v1090 = vld [vmem:[%s1077 + $0x60] sm:$0xff]
      %v1091 = vld [vmem:[%s1077 + $0x68] sm:$0xff]
      %v1092 = vld [vmem:[%s1077 + $0x70] sm:$0xff]
      %v1093 = vld [vmem:[%s1077 + $0x78] sm:$0xff]
      %1094 = vmatpush.msra.mxu0 %v1093
      %1095 = vmatpush.msra.mxu0 %v1092
      %1096 = vmatpush.msra.mxu0 %v1091
      %1097 = vmatpush.msra.mxu0 %v1090
      %1098 = vmatpush.msra.mxu0 %v1089
      %1099 = vmatpush.msra.mxu0 %v1088
      %1100 = vmatpush.msra.mxu0 %v1087
      %1101 = vmatpush.msra.mxu0 %v1086
      %1102 = vmatpush.msra.mxu0 %v1085
      %1103 = vmatpush.msra.mxu0 %v1084
      %1104 = vmatpush.msra.mxu0 %v1083
      %1105 = vmatpush.msra.mxu0 %v1082
      %1106 = vmatpush.msra.mxu0 %v1081
      %1107 = vmatpush.msra.mxu0 %v1080
      %1108 = vmatpush.msra.mxu0 %v1079
      %1109 = vmatpush.msra.mxu0 %v1078
      %1110 = vmatmul.f32.gmra.mxu0 %v1069
      %v1111 = vpop.f32.mrf.mxu0
      %v1112 = vadd.f32 0.0, %v1111
      %1113 = vmatmul.f32.gmra.mxu0 %v1070
      %v1114 = vpop.f32.mrf.mxu0
      %v1115 = vadd.f32 0.0, %v1114
      %1116 = vmatmul.f32.gmra.mxu0 %v1071
      %v1117 = vpop.f32.mrf.mxu0
      %v1118 = vadd.f32 0.0, %v1117
      %1119 = vmatmul.f32.gmra.mxu0 %v1072
      %v1120 = vpop.f32.mrf.mxu0
      %v1121 = vadd.f32 0.0, %v1120
      %1122 = vmatmul.f32.gmra.mxu0 %v1073
      %v1123 = vpop.f32.mrf.mxu0
      %v1124 = vadd.f32 0.0, %v1123
      %1125 = vmatmul.f32.gmra.mxu0 %v1074
      %v1126 = vpop.f32.mrf.mxu0
      %v1127 = vadd.f32 0.0, %v1126
      %1128 = vmatmul.f32.gmra.mxu0 %v1075
      %v1129 = vpop.f32.mrf.mxu0
      %v1130 = vadd.f32 0.0, %v1129
      %1131 = vmatmul.f32.gmra.mxu0 %v1076
      %v1132 = vpop.f32.mrf.mxu0
      %v1133 = vadd.f32 0.0, %v1132
      %1134 = vdwg.mxu0
      %v1135 = vadd.f32 %v1038, %v1112
      %v1136 = vadd.f32 %v1041, %v1115
      %v1137 = vadd.f32 %v1044, %v1118
      %v1138 = vadd.f32 %v1047, %v1121
      %v1139 = vadd.f32 %v1050, %v1124
      %v1140 = vadd.f32 %v1053, %v1127
      %v1141 = vadd.f32 %v1056, %v1130
      %v1142 = vadd.f32 %v1059, %v1133
      %s1143 = scalar_lea.vmem %s161, 864
      %v1144 = vld [vmem:[%s1143] sm:$0xff]
      %v1145 = vld [vmem:[%s1143 + $0x10] sm:$0xff]
      %v1146 = vld [vmem:[%s1143 + $0x20] sm:$0xff]
      %v1147 = vld [vmem:[%s1143 + $0x30] sm:$0xff]
      %v1148 = vld [vmem:[%s1143 + $0x40] sm:$0xff]
      %v1149 = vld [vmem:[%s1143 + $0x50] sm:$0xff]
      %v1150 = vld [vmem:[%s1143 + $0x60] sm:$0xff]
      %v1151 = vld [vmem:[%s1143 + $0x70] sm:$0xff]
      %v1152 = vmax.f32 %v1144, 0.0
      %v1153 = vmax.f32 %v1145, 0.0
      %v1154 = vmax.f32 %v1146, 0.0
      %v1155 = vmax.f32 %v1147, 0.0
      %v1156 = vmax.f32 %v1148, 0.0
      %v1157 = vmax.f32 %v1149, 0.0
      %v1158 = vmax.f32 %v1150, 0.0
      %v1159 = vmax.f32 %v1151, 0.0
      %s1160 = scalar_lea.vmem %s168, 1536
      %v1161 = vld [vmem:[%s1160] sm:$0xff]
      %v1162 = vld [vmem:[%s1160 + $0x8] sm:$0xff]
      %v1163 = vld [vmem:[%s1160 + $0x10] sm:$0xff]
      %v1164 = vld [vmem:[%s1160 + $0x18] sm:$0xff]
      %v1165 = vld [vmem:[%s1160 + $0x20] sm:$0xff]
      %v1166 = vld [vmem:[%s1160 + $0x28] sm:$0xff]
      %v1167 = vld [vmem:[%s1160 + $0x30] sm:$0xff]
      %v1168 = vld [vmem:[%s1160 + $0x38] sm:$0xff]
      %v1169 = vld [vmem:[%s1160 + $0x40] sm:$0xff]
      %v1170 = vld [vmem:[%s1160 + $0x48] sm:$0xff]
      %v1171 = vld [vmem:[%s1160 + $0x50] sm:$0xff]
      %v1172 = vld [vmem:[%s1160 + $0x58] sm:$0xff]
      %v1173 = vld [vmem:[%s1160 + $0x60] sm:$0xff]
      %v1174 = vld [vmem:[%s1160 + $0x68] sm:$0xff]
      %v1175 = vld [vmem:[%s1160 + $0x70] sm:$0xff]
      %v1176 = vld [vmem:[%s1160 + $0x78] sm:$0xff]
      %1177 = vmatpush.msra.mxu0 %v1176
      %1178 = vmatpush.msra.mxu0 %v1175
      %1179 = vmatpush.msra.mxu0 %v1174
      %1180 = vmatpush.msra.mxu0 %v1173
      %1181 = vmatpush.msra.mxu0 %v1172
      %1182 = vmatpush.msra.mxu0 %v1171
      %1183 = vmatpush.msra.mxu0 %v1170
      %1184 = vmatpush.msra.mxu0 %v1169
      %1185 = vmatpush.msra.mxu0 %v1168
      %1186 = vmatpush.msra.mxu0 %v1167
      %1187 = vmatpush.msra.mxu0 %v1166
      %1188 = vmatpush.msra.mxu0 %v1165
      %1189 = vmatpush.msra.mxu0 %v1164
      %1190 = vmatpush.msra.mxu0 %v1163
      %1191 = vmatpush.msra.mxu0 %v1162
      %1192 = vmatpush.msra.mxu0 %v1161
      %1193 = vmatmul.f32.gmra.mxu0 %v1152
      %v1194 = vpop.f32.mrf.mxu0
      %v1195 = vadd.f32 0.0, %v1194
      %1196 = vmatmul.f32.gmra.mxu0 %v1153
      %v1197 = vpop.f32.mrf.mxu0
      %v1198 = vadd.f32 0.0, %v1197
      %1199 = vmatmul.f32.gmra.mxu0 %v1154
      %v1200 = vpop.f32.mrf.mxu0
      %v1201 = vadd.f32 0.0, %v1200
      %1202 = vmatmul.f32.gmra.mxu0 %v1155
      %v1203 = vpop.f32.mrf.mxu0
      %v1204 = vadd.f32 0.0, %v1203
      %1205 = vmatmul.f32.gmra.mxu0 %v1156
      %v1206 = vpop.f32.mrf.mxu0
      %v1207 = vadd.f32 0.0, %v1206
      %1208 = vmatmul.f32.gmra.mxu0 %v1157
      %v1209 = vpop.f32.mrf.mxu0
      %v1210 = vadd.f32 0.0, %v1209
      %1211 = vmatmul.f32.gmra.mxu0 %v1158
      %v1212 = vpop.f32.mrf.mxu0
      %v1213 = vadd.f32 0.0, %v1212
      %1214 = vmatmul.f32.gmra.mxu0 %v1159
      %v1215 = vpop.f32.mrf.mxu0
      %v1216 = vadd.f32 0.0, %v1215
      %1217 = vdwg.mxu0
      %v1218 = vadd.f32 %v1135, %v1195
      %v1219 = vadd.f32 %v1136, %v1198
      %v1220 = vadd.f32 %v1137, %v1201
      %v1221 = vadd.f32 %v1138, %v1204
      %v1222 = vadd.f32 %v1139, %v1207
      %v1223 = vadd.f32 %v1140, %v1210
      %v1224 = vadd.f32 %v1141, %v1213
      %v1225 = vadd.f32 %v1142, %v1216
      %s1226 = scalar_lea.vmem %s161, 1008
      %v1227 = vld [vmem:[%s1226] sm:$0xff]
      %v1228 = vld [vmem:[%s1226 + $0x10] sm:$0xff]
      %v1229 = vld [vmem:[%s1226 + $0x20] sm:$0xff]
      %v1230 = vld [vmem:[%s1226 + $0x30] sm:$0xff]
      %v1231 = vld [vmem:[%s1226 + $0x40] sm:$0xff]
      %v1232 = vld [vmem:[%s1226 + $0x50] sm:$0xff]
      %v1233 = vld [vmem:[%s1226 + $0x60] sm:$0xff]
      %v1234 = vld [vmem:[%s1226 + $0x70] sm:$0xff]
      %v1235 = vmax.f32 %v1227, 0.0
      %v1236 = vmax.f32 %v1228, 0.0
      %v1237 = vmax.f32 %v1229, 0.0
      %v1238 = vmax.f32 %v1230, 0.0
      %v1239 = vmax.f32 %v1231, 0.0
      %v1240 = vmax.f32 %v1232, 0.0
      %v1241 = vmax.f32 %v1233, 0.0
      %v1242 = vmax.f32 %v1234, 0.0
      %s1243 = scalar_lea.vmem %s168, 1664
      %v1244 = vld [vmem:[%s1243] sm:$0xff]
      %v1245 = vld [vmem:[%s1243 + $0x8] sm:$0xff]
      %v1246 = vld [vmem:[%s1243 + $0x10] sm:$0xff]
      %v1247 = vld [vmem:[%s1243 + $0x18] sm:$0xff]
      %v1248 = vld [vmem:[%s1243 + $0x20] sm:$0xff]
      %v1249 = vld [vmem:[%s1243 + $0x28] sm:$0xff]
      %v1250 = vld [vmem:[%s1243 + $0x30] sm:$0xff]
      %v1251 = vld [vmem:[%s1243 + $0x38] sm:$0xff]
      %v1252 = vld [vmem:[%s1243 + $0x40] sm:$0xff]
      %v1253 = vld [vmem:[%s1243 + $0x48] sm:$0xff]
      %v1254 = vld [vmem:[%s1243 + $0x50] sm:$0xff]
      %v1255 = vld [vmem:[%s1243 + $0x58] sm:$0xff]
      %v1256 = vld [vmem:[%s1243 + $0x60] sm:$0xff]
      %v1257 = vld [vmem:[%s1243 + $0x68] sm:$0xff]
      %v1258 = vld [vmem:[%s1243 + $0x70] sm:$0xff]
      %v1259 = vld [vmem:[%s1243 + $0x78] sm:$0xff]
      %1260 = vmatpush.msra.mxu0 %v1259
      %1261 = vmatpush.msra.mxu0 %v1258
      %1262 = vmatpush.msra.mxu0 %v1257
      %1263 = vmatpush.msra.mxu0 %v1256
      %1264 = vmatpush.msra.mxu0 %v1255
      %1265 = vmatpush.msra.mxu0 %v1254
      %1266 = vmatpush.msra.mxu0 %v1253
      %1267 = vmatpush.msra.mxu0 %v1252
      %1268 = vmatpush.msra.mxu0 %v1251
      %1269 = vmatpush.msra.mxu0 %v1250
      %1270 = vmatpush.msra.mxu0 %v1249
      %1271 = vmatpush.msra.mxu0 %v1248
      %1272 = vmatpush.msra.mxu0 %v1247
      %1273 = vmatpush.msra.mxu0 %v1246
      %1274 = vmatpush.msra.mxu0 %v1245
      %1275 = vmatpush.msra.mxu0 %v1244
      %1276 = vmatmul.f32.gmra.mxu0 %v1235
      %v1277 = vpop.f32.mrf.mxu0
      %v1278 = vadd.f32 0.0, %v1277
      %1279 = vmatmul.f32.gmra.mxu0 %v1236
      %v1280 = vpop.f32.mrf.mxu0
      %v1281 = vadd.f32 0.0, %v1280
      %1282 = vmatmul.f32.gmra.mxu0 %v1237
      %v1283 = vpop.f32.mrf.mxu0
      %v1284 = vadd.f32 0.0, %v1283
      %1285 = vmatmul.f32.gmra.mxu0 %v1238
      %v1286 = vpop.f32.mrf.mxu0
      %v1287 = vadd.f32 0.0, %v1286
      %1288 = vmatmul.f32.gmra.mxu0 %v1239
      %v1289 = vpop.f32.mrf.mxu0
      %v1290 = vadd.f32 0.0, %v1289
      %1291 = vmatmul.f32.gmra.mxu0 %v1240
      %v1292 = vpop.f32.mrf.mxu0
      %v1293 = vadd.f32 0.0, %v1292
      %1294 = vmatmul.f32.gmra.mxu0 %v1241
      %v1295 = vpop.f32.mrf.mxu0
      %v1296 = vadd.f32 0.0, %v1295
      %1297 = vmatmul.f32.gmra.mxu0 %v1242
      %v1298 = vpop.f32.mrf.mxu0
      %v1299 = vadd.f32 0.0, %v1298
      %1300 = vdwg.mxu0
      %v1301 = vadd.f32 %v1218, %v1278
      %v1302 = vadd.f32 %v1219, %v1281
      %v1303 = vadd.f32 %v1220, %v1284
      %v1304 = vadd.f32 %v1221, %v1287
      %v1305 = vadd.f32 %v1222, %v1290
      %v1306 = vadd.f32 %v1223, %v1293
      %v1307 = vadd.f32 %v1224, %v1296
      %v1308 = vadd.f32 %v1225, %v1299
      %v1309 = vld [vmem:[%s1143 + $0x1] sm:$0xff]
      %v1310 = vld [vmem:[%s1143 + $0x11] sm:$0xff]
      %v1311 = vld [vmem:[%s1143 + $0x21] sm:$0xff]
      %v1312 = vld [vmem:[%s1143 + $0x31] sm:$0xff]
      %v1313 = vld [vmem:[%s1143 + $0x41] sm:$0xff]
      %v1314 = vld [vmem:[%s1143 + $0x51] sm:$0xff]
      %v1315 = vld [vmem:[%s1143 + $0x61] sm:$0xff]
      %v1316 = vld [vmem:[%s1143 + $0x71] sm:$0xff]
      %v1317 = vmax.f32 %v1309, 0.0
      %v1318 = vmax.f32 %v1310, 0.0
      %v1319 = vmax.f32 %v1311, 0.0
      %v1320 = vmax.f32 %v1312, 0.0
      %v1321 = vmax.f32 %v1313, 0.0
      %v1322 = vmax.f32 %v1314, 0.0
      %v1323 = vmax.f32 %v1315, 0.0
      %v1324 = vmax.f32 %v1316, 0.0
      %s1325 = scalar_lea.vmem %s168, 1792
      %v1326 = vld [vmem:[%s1325] sm:$0xff]
      %v1327 = vld [vmem:[%s1325 + $0x8] sm:$0xff]
      %v1328 = vld [vmem:[%s1325 + $0x10] sm:$0xff]
      %v1329 = vld [vmem:[%s1325 + $0x18] sm:$0xff]
      %v1330 = vld [vmem:[%s1325 + $0x20] sm:$0xff]
      %v1331 = vld [vmem:[%s1325 + $0x28] sm:$0xff]
      %v1332 = vld [vmem:[%s1325 + $0x30] sm:$0xff]
      %v1333 = vld [vmem:[%s1325 + $0x38] sm:$0xff]
      %v1334 = vld [vmem:[%s1325 + $0x40] sm:$0xff]
      %v1335 = vld [vmem:[%s1325 + $0x48] sm:$0xff]
      %v1336 = vld [vmem:[%s1325 + $0x50] sm:$0xff]
      %v1337 = vld [vmem:[%s1325 + $0x58] sm:$0xff]
      %v1338 = vld [vmem:[%s1325 + $0x60] sm:$0xff]
      %v1339 = vld [vmem:[%s1325 + $0x68] sm:$0xff]
      %v1340 = vld [vmem:[%s1325 + $0x70] sm:$0xff]
      %v1341 = vld [vmem:[%s1325 + $0x78] sm:$0xff]
      %1342 = vmatpush.msra.mxu0 %v1341
      %1343 = vmatpush.msra.mxu0 %v1340
      %1344 = vmatpush.msra.mxu0 %v1339
      %1345 = vmatpush.msra.mxu0 %v1338
      %1346 = vmatpush.msra.mxu0 %v1337
      %1347 = vmatpush.msra.mxu0 %v1336
      %1348 = vmatpush.msra.mxu0 %v1335
      %1349 = vmatpush.msra.mxu0 %v1334
      %1350 = vmatpush.msra.mxu0 %v1333
      %1351 = vmatpush.msra.mxu0 %v1332
      %1352 = vmatpush.msra.mxu0 %v1331
      %1353 = vmatpush.msra.mxu0 %v1330
      %1354 = vmatpush.msra.mxu0 %v1329
      %1355 = vmatpush.msra.mxu0 %v1328
      %1356 = vmatpush.msra.mxu0 %v1327
      %1357 = vmatpush.msra.mxu0 %v1326
      %1358 = vmatmul.f32.gmra.mxu0 %v1317
      %v1359 = vpop.f32.mrf.mxu0
      %v1360 = vadd.f32 0.0, %v1359
      %1361 = vmatmul.f32.gmra.mxu0 %v1318
      %v1362 = vpop.f32.mrf.mxu0
      %v1363 = vadd.f32 0.0, %v1362
      %1364 = vmatmul.f32.gmra.mxu0 %v1319
      %v1365 = vpop.f32.mrf.mxu0
      %v1366 = vadd.f32 0.0, %v1365
      %1367 = vmatmul.f32.gmra.mxu0 %v1320
      %v1368 = vpop.f32.mrf.mxu0
      %v1369 = vadd.f32 0.0, %v1368
      %1370 = vmatmul.f32.gmra.mxu0 %v1321
      %v1371 = vpop.f32.mrf.mxu0
      %v1372 = vadd.f32 0.0, %v1371
      %1373 = vmatmul.f32.gmra.mxu0 %v1322
      %v1374 = vpop.f32.mrf.mxu0
      %v1375 = vadd.f32 0.0, %v1374
      %1376 = vmatmul.f32.gmra.mxu0 %v1323
      %v1377 = vpop.f32.mrf.mxu0
      %v1378 = vadd.f32 0.0, %v1377
      %1379 = vmatmul.f32.gmra.mxu0 %v1324
      %v1380 = vpop.f32.mrf.mxu0
      %v1381 = vadd.f32 0.0, %v1380
      %1382 = vdwg.mxu0
      %v1383 = vadd.f32 %v1301, %v1360
      %v1384 = vadd.f32 %v1302, %v1363
      %v1385 = vadd.f32 %v1303, %v1366
      %v1386 = vadd.f32 %v1304, %v1369
      %v1387 = vadd.f32 %v1305, %v1372
      %v1388 = vadd.f32 %v1306, %v1375
      %v1389 = vadd.f32 %v1307, %v1378
      %v1390 = vadd.f32 %v1308, %v1381
      %s1391 = scalar_lea.vmem %s161, 592
      %v1392 = vld [vmem:[%s1391] sm:$0xff]
      %v1393 = vld [vmem:[%s1391 + $0x10] sm:$0xff]
      %v1394 = vld [vmem:[%s1391 + $0x20] sm:$0xff]
      %v1395 = vld [vmem:[%s1391 + $0x30] sm:$0xff]
      %v1396 = vld [vmem:[%s1391 + $0x40] sm:$0xff]
      %v1397 = vld [vmem:[%s1391 + $0x50] sm:$0xff]
      %v1398 = vld [vmem:[%s1391 + $0x60] sm:$0xff]
      %v1399 = vld [vmem:[%s1391 + $0x70] sm:$0xff]
      %v1400 = vmax.f32 %v1392, 0.0
      %v1401 = vmax.f32 %v1393, 0.0
      %v1402 = vmax.f32 %v1394, 0.0
      %v1403 = vmax.f32 %v1395, 0.0
      %v1404 = vmax.f32 %v1396, 0.0
      %v1405 = vmax.f32 %v1397, 0.0
      %v1406 = vmax.f32 %v1398, 0.0
      %v1407 = vmax.f32 %v1399, 0.0
      %s1408 = scalar_lea.vmem %s168, 1920
      %v1409 = vld [vmem:[%s1408] sm:$0xff]
      %v1410 = vld [vmem:[%s1408 + $0x8] sm:$0xff]
      %v1411 = vld [vmem:[%s1408 + $0x10] sm:$0xff]
      %v1412 = vld [vmem:[%s1408 + $0x18] sm:$0xff]
      %v1413 = vld [vmem:[%s1408 + $0x20] sm:$0xff]
      %v1414 = vld [vmem:[%s1408 + $0x28] sm:$0xff]
      %v1415 = vld [vmem:[%s1408 + $0x30] sm:$0xff]
      %v1416 = vld [vmem:[%s1408 + $0x38] sm:$0xff]
      %v1417 = vld [vmem:[%s1408 + $0x40] sm:$0xff]
      %v1418 = vld [vmem:[%s1408 + $0x48] sm:$0xff]
      %v1419 = vld [vmem:[%s1408 + $0x50] sm:$0xff]
      %v1420 = vld [vmem:[%s1408 + $0x58] sm:$0xff]
      %v1421 = vld [vmem:[%s1408 + $0x60] sm:$0xff]
      %v1422 = vld [vmem:[%s1408 + $0x68] sm:$0xff]
      %v1423 = vld [vmem:[%s1408 + $0x70] sm:$0xff]
      %v1424 = vld [vmem:[%s1408 + $0x78] sm:$0xff]
      %1425 = vmatpush.msra.mxu0 %v1424
      %1426 = vmatpush.msra.mxu0 %v1423
      %1427 = vmatpush.msra.mxu0 %v1422
      %1428 = vmatpush.msra.mxu0 %v1421
      %1429 = vmatpush.msra.mxu0 %v1420
      %1430 = vmatpush.msra.mxu0 %v1419
      %1431 = vmatpush.msra.mxu0 %v1418
      %1432 = vmatpush.msra.mxu0 %v1417
      %1433 = vmatpush.msra.mxu0 %v1416
      %1434 = vmatpush.msra.mxu0 %v1415
      %1435 = vmatpush.msra.mxu0 %v1414
      %1436 = vmatpush.msra.mxu0 %v1413
      %1437 = vmatpush.msra.mxu0 %v1412
      %1438 = vmatpush.msra.mxu0 %v1411
      %1439 = vmatpush.msra.mxu0 %v1410
      %1440 = vmatpush.msra.mxu0 %v1409
      %1441 = vmatmul.f32.gmra.mxu0 %v1400
      %v1442 = vpop.f32.mrf.mxu0
      %v1443 = vadd.f32 0.0, %v1442
      %1444 = vmatmul.f32.gmra.mxu0 %v1401
      %v1445 = vpop.f32.mrf.mxu0
      %v1446 = vadd.f32 0.0, %v1445
      %1447 = vmatmul.f32.gmra.mxu0 %v1402
      %v1448 = vpop.f32.mrf.mxu0
      %v1449 = vadd.f32 0.0, %v1448
      %1450 = vmatmul.f32.gmra.mxu0 %v1403
      %v1451 = vpop.f32.mrf.mxu0
      %v1452 = vadd.f32 0.0, %v1451
      %1453 = vmatmul.f32.gmra.mxu0 %v1404
      %v1454 = vpop.f32.mrf.mxu0
      %v1455 = vadd.f32 0.0, %v1454
      %1456 = vmatmul.f32.gmra.mxu0 %v1405
      %v1457 = vpop.f32.mrf.mxu0
      %v1458 = vadd.f32 0.0, %v1457
      %1459 = vmatmul.f32.gmra.mxu0 %v1406
      %v1460 = vpop.f32.mrf.mxu0
      %v1461 = vadd.f32 0.0, %v1460
      %1462 = vmatmul.f32.gmra.mxu0 %v1407
      %v1463 = vpop.f32.mrf.mxu0
      %v1464 = vadd.f32 0.0, %v1463
      %1465 = vdwg.mxu0
      %v1466 = vadd.f32 %v1383, %v1443
      %v1467 = vadd.f32 %v1384, %v1446
      %v1468 = vadd.f32 %v1385, %v1449
      %v1469 = vadd.f32 %v1386, %v1452
      %v1470 = vadd.f32 %v1387, %v1455
      %v1471 = vadd.f32 %v1388, %v1458
      %v1472 = vadd.f32 %v1389, %v1461
      %v1473 = vadd.f32 %v1390, %v1464
      %s1474 = scalar_lea.vmem %s161, 736
      %v1475 = vld [vmem:[%s1474] sm:$0xff]
      %v1476 = vld [vmem:[%s1474 + $0x10] sm:$0xff]
      %v1477 = vld [vmem:[%s1474 + $0x20] sm:$0xff]
      %v1478 = vld [vmem:[%s1474 + $0x30] sm:$0xff]
      %v1479 = vld [vmem:[%s1474 + $0x40] sm:$0xff]
      %v1480 = vld [vmem:[%s1474 + $0x50] sm:$0xff]
      %v1481 = vld [vmem:[%s1474 + $0x60] sm:$0xff]
      %v1482 = vld [vmem:[%s1474 + $0x70] sm:$0xff]
      %v1483 = vmax.f32 %v1475, 0.0
      %v1484 = vmax.f32 %v1476, 0.0
      %v1485 = vmax.f32 %v1477, 0.0
      %v1486 = vmax.f32 %v1478, 0.0
      %v1487 = vmax.f32 %v1479, 0.0
      %v1488 = vmax.f32 %v1480, 0.0
      %v1489 = vmax.f32 %v1481, 0.0
      %v1490 = vmax.f32 %v1482, 0.0
      %s1491 = scalar_lea.vmem %s168, 2048
      %v1492 = vld [vmem:[%s1491] sm:$0xff]
      %v1493 = vld [vmem:[%s1491 + $0x8] sm:$0xff]
      %v1494 = vld [vmem:[%s1491 + $0x10] sm:$0xff]
      %v1495 = vld [vmem:[%s1491 + $0x18] sm:$0xff]
      %v1496 = vld [vmem:[%s1491 + $0x20] sm:$0xff]
      %v1497 = vld [vmem:[%s1491 + $0x28] sm:$0xff]
      %v1498 = vld [vmem:[%s1491 + $0x30] sm:$0xff]
      %v1499 = vld [vmem:[%s1491 + $0x38] sm:$0xff]
      %v1500 = vld [vmem:[%s1491 + $0x40] sm:$0xff]
      %v1501 = vld [vmem:[%s1491 + $0x48] sm:$0xff]
      %v1502 = vld [vmem:[%s1491 + $0x50] sm:$0xff]
      %v1503 = vld [vmem:[%s1491 + $0x58] sm:$0xff]
      %v1504 = vld [vmem:[%s1491 + $0x60] sm:$0xff]
      %v1505 = vld [vmem:[%s1491 + $0x68] sm:$0xff]
      %v1506 = vld [vmem:[%s1491 + $0x70] sm:$0xff]
      %v1507 = vld [vmem:[%s1491 + $0x78] sm:$0xff]
      %1508 = vmatpush.msra.mxu0 %v1507
      %1509 = vmatpush.msra.mxu0 %v1506
      %1510 = vmatpush.msra.mxu0 %v1505
      %1511 = vmatpush.msra.mxu0 %v1504
      %1512 = vmatpush.msra.mxu0 %v1503
      %1513 = vmatpush.msra.mxu0 %v1502
      %1514 = vmatpush.msra.mxu0 %v1501
      %1515 = vmatpush.msra.mxu0 %v1500
      %1516 = vmatpush.msra.mxu0 %v1499
      %1517 = vmatpush.msra.mxu0 %v1498
      %1518 = vmatpush.msra.mxu0 %v1497
      %1519 = vmatpush.msra.mxu0 %v1496
      %1520 = vmatpush.msra.mxu0 %v1495
      %1521 = vmatpush.msra.mxu0 %v1494
      %1522 = vmatpush.msra.mxu0 %v1493
      %1523 = vmatpush.msra.mxu0 %v1492
      %1524 = vmatmul.f32.gmra.mxu0 %v1483
      %v1525 = vpop.f32.mrf.mxu0
      %v1526 = vadd.f32 0.0, %v1525
      %1527 = vmatmul.f32.gmra.mxu0 %v1484
      %v1528 = vpop.f32.mrf.mxu0
      %v1529 = vadd.f32 0.0, %v1528
      %1530 = vmatmul.f32.gmra.mxu0 %v1485
      %v1531 = vpop.f32.mrf.mxu0
      %v1532 = vadd.f32 0.0, %v1531
      %1533 = vmatmul.f32.gmra.mxu0 %v1486
      %v1534 = vpop.f32.mrf.mxu0
      %v1535 = vadd.f32 0.0, %v1534
      %1536 = vmatmul.f32.gmra.mxu0 %v1487
      %v1537 = vpop.f32.mrf.mxu0
      %v1538 = vadd.f32 0.0, %v1537
      %1539 = vmatmul.f32.gmra.mxu0 %v1488
      %v1540 = vpop.f32.mrf.mxu0
      %v1541 = vadd.f32 0.0, %v1540
      %1542 = vmatmul.f32.gmra.mxu0 %v1489
      %v1543 = vpop.f32.mrf.mxu0
      %v1544 = vadd.f32 0.0, %v1543
      %1545 = vmatmul.f32.gmra.mxu0 %v1490
      %v1546 = vpop.f32.mrf.mxu0
      %v1547 = vadd.f32 0.0, %v1546
      %1548 = vdwg.mxu0
      %v1549 = vadd.f32 %v1466, %v1526
      %v1550 = vadd.f32 %v1467, %v1529
      %v1551 = vadd.f32 %v1468, %v1532
      %v1552 = vadd.f32 %v1469, %v1535
      %v1553 = vadd.f32 %v1470, %v1538
      %v1554 = vadd.f32 %v1471, %v1541
      %v1555 = vadd.f32 %v1472, %v1544
      %v1556 = vadd.f32 %v1473, %v1547
      %v1557 = vld [vmem:[%s1391 + $0x1] sm:$0xff]
      %v1558 = vld [vmem:[%s1391 + $0x11] sm:$0xff]
      %v1559 = vld [vmem:[%s1391 + $0x21] sm:$0xff]
      %v1560 = vld [vmem:[%s1391 + $0x31] sm:$0xff]
      %v1561 = vld [vmem:[%s1391 + $0x41] sm:$0xff]
      %v1562 = vld [vmem:[%s1391 + $0x51] sm:$0xff]
      %v1563 = vld [vmem:[%s1391 + $0x61] sm:$0xff]
      %v1564 = vld [vmem:[%s1391 + $0x71] sm:$0xff]
      %v1565 = vmax.f32 %v1557, 0.0
      %v1566 = vmax.f32 %v1558, 0.0
      %v1567 = vmax.f32 %v1559, 0.0
      %v1568 = vmax.f32 %v1560, 0.0
      %v1569 = vmax.f32 %v1561, 0.0
      %v1570 = vmax.f32 %v1562, 0.0
      %v1571 = vmax.f32 %v1563, 0.0
      %v1572 = vmax.f32 %v1564, 0.0
      %s1573 = scalar_lea.vmem %s168, 2176
      %v1574 = vld [vmem:[%s1573] sm:$0xff]
      %v1575 = vld [vmem:[%s1573 + $0x8] sm:$0xff]
      %v1576 = vld [vmem:[%s1573 + $0x10] sm:$0xff]
      %v1577 = vld [vmem:[%s1573 + $0x18] sm:$0xff]
      %v1578 = vld [vmem:[%s1573 + $0x20] sm:$0xff]
      %v1579 = vld [vmem:[%s1573 + $0x28] sm:$0xff]
      %v1580 = vld [vmem:[%s1573 + $0x30] sm:$0xff]
      %v1581 = vld [vmem:[%s1573 + $0x38] sm:$0xff]
      %v1582 = vld [vmem:[%s1573 + $0x40] sm:$0xff]
      %v1583 = vld [vmem:[%s1573 + $0x48] sm:$0xff]
      %v1584 = vld [vmem:[%s1573 + $0x50] sm:$0xff]
      %v1585 = vld [vmem:[%s1573 + $0x58] sm:$0xff]
      %v1586 = vld [vmem:[%s1573 + $0x60] sm:$0xff]
      %v1587 = vld [vmem:[%s1573 + $0x68] sm:$0xff]
      %v1588 = vld [vmem:[%s1573 + $0x70] sm:$0xff]
      %v1589 = vld [vmem:[%s1573 + $0x78] sm:$0xff]
      %1590 = vmatpush.msra.mxu0 %v1589
      %1591 = vmatpush.msra.mxu0 %v1588
      %1592 = vmatpush.msra.mxu0 %v1587
      %1593 = vmatpush.msra.mxu0 %v1586
      %1594 = vmatpush.msra.mxu0 %v1585
      %1595 = vmatpush.msra.mxu0 %v1584
      %1596 = vmatpush.msra.mxu0 %v1583
      %1597 = vmatpush.msra.mxu0 %v1582
      %1598 = vmatpush.msra.mxu0 %v1581
      %1599 = vmatpush.msra.mxu0 %v1580
      %1600 = vmatpush.msra.mxu0 %v1579
      %1601 = vmatpush.msra.mxu0 %v1578
      %1602 = vmatpush.msra.mxu0 %v1577
      %1603 = vmatpush.msra.mxu0 %v1576
      %1604 = vmatpush.msra.mxu0 %v1575
      %1605 = vmatpush.msra.mxu0 %v1574
      %1606 = vmatmul.f32.gmra.mxu0 %v1565
      %v1607 = vpop.f32.mrf.mxu0
      %v1608 = vadd.f32 0.0, %v1607
      %1609 = vmatmul.f32.gmra.mxu0 %v1566
      %v1610 = vpop.f32.mrf.mxu0
      %v1611 = vadd.f32 0.0, %v1610
      %1612 = vmatmul.f32.gmra.mxu0 %v1567
      %v1613 = vpop.f32.mrf.mxu0
      %v1614 = vadd.f32 0.0, %v1613
      %1615 = vmatmul.f32.gmra.mxu0 %v1568
      %v1616 = vpop.f32.mrf.mxu0
      %v1617 = vadd.f32 0.0, %v1616
      %1618 = vmatmul.f32.gmra.mxu0 %v1569
      %v1619 = vpop.f32.mrf.mxu0
      %v1620 = vadd.f32 0.0, %v1619
      %1621 = vmatmul.f32.gmra.mxu0 %v1570
      %v1622 = vpop.f32.mrf.mxu0
      %v1623 = vadd.f32 0.0, %v1622
      %1624 = vmatmul.f32.gmra.mxu0 %v1571
      %v1625 = vpop.f32.mrf.mxu0
      %v1626 = vadd.f32 0.0, %v1625
      %1627 = vmatmul.f32.gmra.mxu0 %v1572
      %v1628 = vpop.f32.mrf.mxu0
      %v1629 = vadd.f32 0.0, %v1628
      %1630 = vdwg.mxu0
      %v1631 = vadd.f32 %v1549, %v1608
      %v1632 = vadd.f32 %v1550, %v1611
      %v1633 = vadd.f32 %v1551, %v1614
      %v1634 = vadd.f32 %v1552, %v1617
      %v1635 = vadd.f32 %v1553, %v1620
      %v1636 = vadd.f32 %v1554, %v1623
      %v1637 = vadd.f32 %v1555, %v1626
      %v1638 = vadd.f32 %v1556, %v1629
      %s1639 = scalar_lea.vmem %s175, 64
      %1640 = vst [vmem:[%s1639] sm:$0xff] %v1631
      %1641 = vst [vmem:[%s1639 + $0x8] sm:$0xff] %v1632
      %1642 = vst [vmem:[%s1639 + $0x10] sm:$0xff] %v1633
      %1643 = vst [vmem:[%s1639 + $0x18] sm:$0xff] %v1634
      %1644 = vst [vmem:[%s1639 + $0x20] sm:$0xff] %v1635
      %1645 = vst [vmem:[%s1639 + $0x28] sm:$0xff] %v1636
      %1646 = vst [vmem:[%s1639 + $0x30] sm:$0xff] %v1637
      %1647 = vst [vmem:[%s1639 + $0x38] sm:$0xff] %v1638
      %s1648 = scalar_lea.vmem %s161, 1152
      %v1649 = vld [vmem:[%s1648] sm:$0xff]
      %v1650 = vld [vmem:[%s1648 + $0x10] sm:$0xff]
      %v1651 = vld [vmem:[%s1648 + $0x20] sm:$0xff]
      %v1652 = vld [vmem:[%s1648 + $0x30] sm:$0xff]
      %v1653 = vld [vmem:[%s1648 + $0x40] sm:$0xff]
      %v1654 = vld [vmem:[%s1648 + $0x50] sm:$0xff]
      %v1655 = vld [vmem:[%s1648 + $0x60] sm:$0xff]
      %v1656 = vld [vmem:[%s1648 + $0x70] sm:$0xff]
      %v1657 = vmax.f32 %v1649, 0.0
      %v1658 = vmax.f32 %v1650, 0.0
      %v1659 = vmax.f32 %v1651, 0.0
      %v1660 = vmax.f32 %v1652, 0.0
      %v1661 = vmax.f32 %v1653, 0.0
      %v1662 = vmax.f32 %v1654, 0.0
      %v1663 = vmax.f32 %v1655, 0.0
      %v1664 = vmax.f32 %v1656, 0.0
      %s1665 = scalar_lea.vmem %s168, 2304
      %v1666 = vld [vmem:[%s1665] sm:$0xff]
      %v1667 = vld [vmem:[%s1665 + $0x8] sm:$0xff]
      %v1668 = vld [vmem:[%s1665 + $0x10] sm:$0xff]
      %v1669 = vld [vmem:[%s1665 + $0x18] sm:$0xff]
      %v1670 = vld [vmem:[%s1665 + $0x20] sm:$0xff]
      %v1671 = vld [vmem:[%s1665 + $0x28] sm:$0xff]
      %v1672 = vld [vmem:[%s1665 + $0x30] sm:$0xff]
      %v1673 = vld [vmem:[%s1665 + $0x38] sm:$0xff]
      %v1674 = vld [vmem:[%s1665 + $0x40] sm:$0xff]
      %v1675 = vld [vmem:[%s1665 + $0x48] sm:$0xff]
      %v1676 = vld [vmem:[%s1665 + $0x50] sm:$0xff]
      %v1677 = vld [vmem:[%s1665 + $0x58] sm:$0xff]
      %v1678 = vld [vmem:[%s1665 + $0x60] sm:$0xff]
      %v1679 = vld [vmem:[%s1665 + $0x68] sm:$0xff]
      %v1680 = vld [vmem:[%s1665 + $0x70] sm:$0xff]
      %v1681 = vld [vmem:[%s1665 + $0x78] sm:$0xff]
      %s1682 = scalar_lea.vmem %s161, 1296
      %v1683 = vld [vmem:[%s1682] sm:$0xff]
      %v1684 = vld [vmem:[%s1682 + $0x10] sm:$0xff]
      %v1685 = vld [vmem:[%s1682 + $0x20] sm:$0xff]
      %v1686 = vld [vmem:[%s1682 + $0x30] sm:$0xff]
      %v1687 = vld [vmem:[%s1682 + $0x40] sm:$0xff]
      %v1688 = vld [vmem:[%s1682 + $0x50] sm:$0xff]
      %v1689 = vld [vmem:[%s1682 + $0x60] sm:$0xff]
      %v1690 = vld [vmem:[%s1682 + $0x70] sm:$0xff]
      %v1691 = vmax.f32 %v1683, 0.0
      %v1692 = vmax.f32 %v1684, 0.0
      %v1693 = vmax.f32 %v1685, 0.0
      %v1694 = vmax.f32 %v1686, 0.0
      %v1695 = vmax.f32 %v1687, 0.0
      %v1696 = vmax.f32 %v1688, 0.0
      %v1697 = vmax.f32 %v1689, 0.0
      %v1698 = vmax.f32 %v1690, 0.0
      %s1699 = scalar_lea.vmem %s168, 2432
      %v1700 = vld [vmem:[%s1699] sm:$0xff]
      %v1701 = vld [vmem:[%s1699 + $0x8] sm:$0xff]
      %v1702 = vld [vmem:[%s1699 + $0x10] sm:$0xff]
      %v1703 = vld [vmem:[%s1699 + $0x18] sm:$0xff]
      %v1704 = vld [vmem:[%s1699 + $0x20] sm:$0xff]
      %v1705 = vld [vmem:[%s1699 + $0x28] sm:$0xff]
      %v1706 = vld [vmem:[%s1699 + $0x30] sm:$0xff]
      %v1707 = vld [vmem:[%s1699 + $0x38] sm:$0xff]
      %v1708 = vld [vmem:[%s1699 + $0x40] sm:$0xff]
      %v1709 = vld [vmem:[%s1699 + $0x48] sm:$0xff]
      %v1710 = vld [vmem:[%s1699 + $0x50] sm:$0xff]
      %v1711 = vld [vmem:[%s1699 + $0x58] sm:$0xff]
      %v1712 = vld [vmem:[%s1699 + $0x60] sm:$0xff]
      %v1713 = vld [vmem:[%s1699 + $0x68] sm:$0xff]
      %v1714 = vld [vmem:[%s1699 + $0x70] sm:$0xff]
      %v1715 = vld [vmem:[%s1699 + $0x78] sm:$0xff]
      %1716 = vmatpush.msra.mxu0 %v1715
      %1717 = vmatpush.msra.mxu0 %v1714
      %1718 = vmatpush.msra.mxu0 %v1713
      %1719 = vmatpush.msra.mxu0 %v1712
      %1720 = vmatpush.msra.mxu0 %v1711
      %1721 = vmatpush.msra.mxu0 %v1710
      %1722 = vmatpush.msra.mxu0 %v1709
      %1723 = vmatpush.msra.mxu0 %v1708
      %1724 = vmatpush.msra.mxu0 %v1707
      %1725 = vmatpush.msra.mxu0 %v1706
      %1726 = vmatpush.msra.mxu0 %v1705
      %1727 = vmatpush.msra.mxu0 %v1704
      %1728 = vmatpush.msra.mxu0 %v1703
      %1729 = vmatpush.msra.mxu0 %v1702
      %1730 = vmatpush.msra.mxu0 %v1701
      %1731 = vmatpush.msra.mxu0 %v1700
      %1732 = vmatmul.f32.gmra.mxu0 %v1691
      %v1733 = vpop.f32.mrf.mxu0
      %v1734 = vadd.f32 0.0, %v1733
      %1735 = vmatmul.f32.gmra.mxu0 %v1692
      %v1736 = vpop.f32.mrf.mxu0
      %v1737 = vadd.f32 0.0, %v1736
      %1738 = vmatmul.f32.gmra.mxu0 %v1693
      %v1739 = vpop.f32.mrf.mxu0
      %v1740 = vadd.f32 0.0, %v1739
      %1741 = vmatmul.f32.gmra.mxu0 %v1694
      %v1742 = vpop.f32.mrf.mxu0
      %v1743 = vadd.f32 0.0, %v1742
      %1744 = vmatmul.f32.gmra.mxu0 %v1695
      %v1745 = vpop.f32.mrf.mxu0
      %v1746 = vadd.f32 0.0, %v1745
      %1747 = vmatmul.f32.gmra.mxu0 %v1696
      %v1748 = vpop.f32.mrf.mxu0
      %v1749 = vadd.f32 0.0, %v1748
      %1750 = vmatmul.f32.gmra.mxu0 %v1697
      %v1751 = vpop.f32.mrf.mxu0
      %v1752 = vadd.f32 0.0, %v1751
      %1753 = vmatmul.f32.gmra.mxu0 %v1698
      %v1754 = vpop.f32.mrf.mxu0
      %v1755 = vadd.f32 0.0, %v1754
      %1756 = vdwg.mxu0
      %1757 = vmatpush.msra.mxu0 %v1681
      %1758 = vmatpush.msra.mxu0 %v1680
      %1759 = vmatpush.msra.mxu0 %v1679
      %1760 = vmatpush.msra.mxu0 %v1678
      %1761 = vmatpush.msra.mxu0 %v1677
      %1762 = vmatpush.msra.mxu0 %v1676
      %1763 = vmatpush.msra.mxu0 %v1675
      %1764 = vmatpush.msra.mxu0 %v1674
      %1765 = vmatpush.msra.mxu0 %v1673
      %1766 = vmatpush.msra.mxu0 %v1672
      %1767 = vmatpush.msra.mxu0 %v1671
      %1768 = vmatpush.msra.mxu0 %v1670
      %1769 = vmatpush.msra.mxu0 %v1669
      %1770 = vmatpush.msra.mxu0 %v1668
      %1771 = vmatpush.msra.mxu0 %v1667
      %1772 = vmatpush.msra.mxu0 %v1666
      %1773 = vmatmul.f32.gmra.mxu0 %v1657
      %v1774 = vpop.f32.mrf.mxu0
      %v1775 = vadd.f32 %v1734, %v1774
      %1776 = vmatmul.f32.gmra.mxu0 %v1658
      %v1777 = vpop.f32.mrf.mxu0
      %v1778 = vadd.f32 %v1737, %v1777
      %1779 = vmatmul.f32.gmra.mxu0 %v1659
      %v1780 = vpop.f32.mrf.mxu0
      %v1781 = vadd.f32 %v1740, %v1780
      %1782 = vmatmul.f32.gmra.mxu0 %v1660
      %v1783 = vpop.f32.mrf.mxu0
      %v1784 = vadd.f32 %v1743, %v1783
      %1785 = vmatmul.f32.gmra.mxu0 %v1661
      %v1786 = vpop.f32.mrf.mxu0
      %v1787 = vadd.f32 %v1746, %v1786
      %1788 = vmatmul.f32.gmra.mxu0 %v1662
      %v1789 = vpop.f32.mrf.mxu0
      %v1790 = vadd.f32 %v1749, %v1789
      %1791 = vmatmul.f32.gmra.mxu0 %v1663
      %v1792 = vpop.f32.mrf.mxu0
      %v1793 = vadd.f32 %v1752, %v1792
      %1794 = vmatmul.f32.gmra.mxu0 %v1664
      %v1795 = vpop.f32.mrf.mxu0
      %v1796 = vadd.f32 %v1755, %v1795
      %1797 = vdwg.mxu0
      %v1798 = vld [vmem:[%s1648 + $0x1] sm:$0xff]
      %v1799 = vld [vmem:[%s1648 + $0x11] sm:$0xff]
      %v1800 = vld [vmem:[%s1648 + $0x21] sm:$0xff]
      %v1801 = vld [vmem:[%s1648 + $0x31] sm:$0xff]
      %v1802 = vld [vmem:[%s1648 + $0x41] sm:$0xff]
      %v1803 = vld [vmem:[%s1648 + $0x51] sm:$0xff]
      %v1804 = vld [vmem:[%s1648 + $0x61] sm:$0xff]
      %v1805 = vld [vmem:[%s1648 + $0x71] sm:$0xff]
      %v1806 = vmax.f32 %v1798, 0.0
      %v1807 = vmax.f32 %v1799, 0.0
      %v1808 = vmax.f32 %v1800, 0.0
      %v1809 = vmax.f32 %v1801, 0.0
      %v1810 = vmax.f32 %v1802, 0.0
      %v1811 = vmax.f32 %v1803, 0.0
      %v1812 = vmax.f32 %v1804, 0.0
      %v1813 = vmax.f32 %v1805, 0.0
      %s1814 = scalar_lea.vmem %s168, 2560
      %v1815 = vld [vmem:[%s1814] sm:$0xff]
      %v1816 = vld [vmem:[%s1814 + $0x8] sm:$0xff]
      %v1817 = vld [vmem:[%s1814 + $0x10] sm:$0xff]
      %v1818 = vld [vmem:[%s1814 + $0x18] sm:$0xff]
      %v1819 = vld [vmem:[%s1814 + $0x20] sm:$0xff]
      %v1820 = vld [vmem:[%s1814 + $0x28] sm:$0xff]
      %v1821 = vld [vmem:[%s1814 + $0x30] sm:$0xff]
      %v1822 = vld [vmem:[%s1814 + $0x38] sm:$0xff]
      %v1823 = vld [vmem:[%s1814 + $0x40] sm:$0xff]
      %v1824 = vld [vmem:[%s1814 + $0x48] sm:$0xff]
      %v1825 = vld [vmem:[%s1814 + $0x50] sm:$0xff]
      %v1826 = vld [vmem:[%s1814 + $0x58] sm:$0xff]
      %v1827 = vld [vmem:[%s1814 + $0x60] sm:$0xff]
      %v1828 = vld [vmem:[%s1814 + $0x68] sm:$0xff]
      %v1829 = vld [vmem:[%s1814 + $0x70] sm:$0xff]
      %v1830 = vld [vmem:[%s1814 + $0x78] sm:$0xff]
      %1831 = vmatpush.msra.mxu0 %v1830
      %1832 = vmatpush.msra.mxu0 %v1829
      %1833 = vmatpush.msra.mxu0 %v1828
      %1834 = vmatpush.msra.mxu0 %v1827
      %1835 = vmatpush.msra.mxu0 %v1826
      %1836 = vmatpush.msra.mxu0 %v1825
      %1837 = vmatpush.msra.mxu0 %v1824
      %1838 = vmatpush.msra.mxu0 %v1823
      %1839 = vmatpush.msra.mxu0 %v1822
      %1840 = vmatpush.msra.mxu0 %v1821
      %1841 = vmatpush.msra.mxu0 %v1820
      %1842 = vmatpush.msra.mxu0 %v1819
      %1843 = vmatpush.msra.mxu0 %v1818
      %1844 = vmatpush.msra.mxu0 %v1817
      %1845 = vmatpush.msra.mxu0 %v1816
      %1846 = vmatpush.msra.mxu0 %v1815
      %1847 = vmatmul.f32.gmra.mxu0 %v1806
      %v1848 = vpop.f32.mrf.mxu0
      %v1849 = vadd.f32 0.0, %v1848
      %1850 = vmatmul.f32.gmra.mxu0 %v1807
      %v1851 = vpop.f32.mrf.mxu0
      %v1852 = vadd.f32 0.0, %v1851
      %1853 = vmatmul.f32.gmra.mxu0 %v1808
      %v1854 = vpop.f32.mrf.mxu0
      %v1855 = vadd.f32 0.0, %v1854
      %1856 = vmatmul.f32.gmra.mxu0 %v1809
      %v1857 = vpop.f32.mrf.mxu0
      %v1858 = vadd.f32 0.0, %v1857
      %1859 = vmatmul.f32.gmra.mxu0 %v1810
      %v1860 = vpop.f32.mrf.mxu0
      %v1861 = vadd.f32 0.0, %v1860
      %1862 = vmatmul.f32.gmra.mxu0 %v1811
      %v1863 = vpop.f32.mrf.mxu0
      %v1864 = vadd.f32 0.0, %v1863
      %1865 = vmatmul.f32.gmra.mxu0 %v1812
      %v1866 = vpop.f32.mrf.mxu0
      %v1867 = vadd.f32 0.0, %v1866
      %1868 = vmatmul.f32.gmra.mxu0 %v1813
      %v1869 = vpop.f32.mrf.mxu0
      %v1870 = vadd.f32 0.0, %v1869
      %1871 = vdwg.mxu0
      %v1872 = vadd.f32 %v1775, %v1849
      %v1873 = vadd.f32 %v1778, %v1852
      %v1874 = vadd.f32 %v1781, %v1855
      %v1875 = vadd.f32 %v1784, %v1858
      %v1876 = vadd.f32 %v1787, %v1861
      %v1877 = vadd.f32 %v1790, %v1864
      %v1878 = vadd.f32 %v1793, %v1867
      %v1879 = vadd.f32 %v1796, %v1870
      %s1880 = scalar_lea.vmem %s161, 1440
      %v1881 = vld [vmem:[%s1880] sm:$0xff]
      %v1882 = vld [vmem:[%s1880 + $0x10] sm:$0xff]
      %v1883 = vld [vmem:[%s1880 + $0x20] sm:$0xff]
      %v1884 = vld [vmem:[%s1880 + $0x30] sm:$0xff]
      %v1885 = vld [vmem:[%s1880 + $0x40] sm:$0xff]
      %v1886 = vld [vmem:[%s1880 + $0x50] sm:$0xff]
      %v1887 = vld [vmem:[%s1880 + $0x60] sm:$0xff]
      %v1888 = vld [vmem:[%s1880 + $0x70] sm:$0xff]
      %v1889 = vmax.f32 %v1881, 0.0
      %v1890 = vmax.f32 %v1882, 0.0
      %v1891 = vmax.f32 %v1883, 0.0
      %v1892 = vmax.f32 %v1884, 0.0
      %v1893 = vmax.f32 %v1885, 0.0
      %v1894 = vmax.f32 %v1886, 0.0
      %v1895 = vmax.f32 %v1887, 0.0
      %v1896 = vmax.f32 %v1888, 0.0
      %s1897 = scalar_lea.vmem %s168, 2688
      %v1898 = vld [vmem:[%s1897] sm:$0xff]
      %v1899 = vld [vmem:[%s1897 + $0x8] sm:$0xff]
      %v1900 = vld [vmem:[%s1897 + $0x10] sm:$0xff]
      %v1901 = vld [vmem:[%s1897 + $0x18] sm:$0xff]
      %v1902 = vld [vmem:[%s1897 + $0x20] sm:$0xff]
      %v1903 = vld [vmem:[%s1897 + $0x28] sm:$0xff]
      %v1904 = vld [vmem:[%s1897 + $0x30] sm:$0xff]
      %v1905 = vld [vmem:[%s1897 + $0x38] sm:$0xff]
      %v1906 = vld [vmem:[%s1897 + $0x40] sm:$0xff]
      %v1907 = vld [vmem:[%s1897 + $0x48] sm:$0xff]
      %v1908 = vld [vmem:[%s1897 + $0x50] sm:$0xff]
      %v1909 = vld [vmem:[%s1897 + $0x58] sm:$0xff]
      %v1910 = vld [vmem:[%s1897 + $0x60] sm:$0xff]
      %v1911 = vld [vmem:[%s1897 + $0x68] sm:$0xff]
      %v1912 = vld [vmem:[%s1897 + $0x70] sm:$0xff]
      %v1913 = vld [vmem:[%s1897 + $0x78] sm:$0xff]
      %1914 = vmatpush.msra.mxu0 %v1913
      %1915 = vmatpush.msra.mxu0 %v1912
      %1916 = vmatpush.msra.mxu0 %v1911
      %1917 = vmatpush.msra.mxu0 %v1910
      %1918 = vmatpush.msra.mxu0 %v1909
      %1919 = vmatpush.msra.mxu0 %v1908
      %1920 = vmatpush.msra.mxu0 %v1907
      %1921 = vmatpush.msra.mxu0 %v1906
      %1922 = vmatpush.msra.mxu0 %v1905
      %1923 = vmatpush.msra.mxu0 %v1904
      %1924 = vmatpush.msra.mxu0 %v1903
      %1925 = vmatpush.msra.mxu0 %v1902
      %1926 = vmatpush.msra.mxu0 %v1901
      %1927 = vmatpush.msra.mxu0 %v1900
      %1928 = vmatpush.msra.mxu0 %v1899
      %1929 = vmatpush.msra.mxu0 %v1898
      %1930 = vmatmul.f32.gmra.mxu0 %v1889
      %v1931 = vpop.f32.mrf.mxu0
      %v1932 = vadd.f32 0.0, %v1931
      %1933 = vmatmul.f32.gmra.mxu0 %v1890
      %v1934 = vpop.f32.mrf.mxu0
      %v1935 = vadd.f32 0.0, %v1934
      %1936 = vmatmul.f32.gmra.mxu0 %v1891
      %v1937 = vpop.f32.mrf.mxu0
      %v1938 = vadd.f32 0.0, %v1937
      %1939 = vmatmul.f32.gmra.mxu0 %v1892
      %v1940 = vpop.f32.mrf.mxu0
      %v1941 = vadd.f32 0.0, %v1940
      %1942 = vmatmul.f32.gmra.mxu0 %v1893
      %v1943 = vpop.f32.mrf.mxu0
      %v1944 = vadd.f32 0.0, %v1943
      %1945 = vmatmul.f32.gmra.mxu0 %v1894
      %v1946 = vpop.f32.mrf.mxu0
      %v1947 = vadd.f32 0.0, %v1946
      %1948 = vmatmul.f32.gmra.mxu0 %v1895
      %v1949 = vpop.f32.mrf.mxu0
      %v1950 = vadd.f32 0.0, %v1949
      %1951 = vmatmul.f32.gmra.mxu0 %v1896
      %v1952 = vpop.f32.mrf.mxu0
      %v1953 = vadd.f32 0.0, %v1952
      %1954 = vdwg.mxu0
      %v1955 = vadd.f32 %v1872, %v1932
      %v1956 = vadd.f32 %v1873, %v1935
      %v1957 = vadd.f32 %v1874, %v1938
      %v1958 = vadd.f32 %v1875, %v1941
      %v1959 = vadd.f32 %v1876, %v1944
      %v1960 = vadd.f32 %v1877, %v1947
      %v1961 = vadd.f32 %v1878, %v1950
      %v1962 = vadd.f32 %v1879, %v1953
      %s1963 = scalar_lea.vmem %s161, 1584
      %v1964 = vld [vmem:[%s1963] sm:$0xff]
      %v1965 = vld [vmem:[%s1963 + $0x10] sm:$0xff]
      %v1966 = vld [vmem:[%s1963 + $0x20] sm:$0xff]
      %v1967 = vld [vmem:[%s1963 + $0x30] sm:$0xff]
      %v1968 = vld [vmem:[%s1963 + $0x40] sm:$0xff]
      %v1969 = vld [vmem:[%s1963 + $0x50] sm:$0xff]
      %v1970 = vld [vmem:[%s1963 + $0x60] sm:$0xff]
      %v1971 = vld [vmem:[%s1963 + $0x70] sm:$0xff]
      %v1972 = vmax.f32 %v1964, 0.0
      %v1973 = vmax.f32 %v1965, 0.0
      %v1974 = vmax.f32 %v1966, 0.0
      %v1975 = vmax.f32 %v1967, 0.0
      %v1976 = vmax.f32 %v1968, 0.0
      %v1977 = vmax.f32 %v1969, 0.0
      %v1978 = vmax.f32 %v1970, 0.0
      %v1979 = vmax.f32 %v1971, 0.0
      %s1980 = scalar_lea.vmem %s168, 2816
      %v1981 = vld [vmem:[%s1980] sm:$0xff]
      %v1982 = vld [vmem:[%s1980 + $0x8] sm:$0xff]
      %v1983 = vld [vmem:[%s1980 + $0x10] sm:$0xff]
      %v1984 = vld [vmem:[%s1980 + $0x18] sm:$0xff]
      %v1985 = vld [vmem:[%s1980 + $0x20] sm:$0xff]
      %v1986 = vld [vmem:[%s1980 + $0x28] sm:$0xff]
      %v1987 = vld [vmem:[%s1980 + $0x30] sm:$0xff]
      %v1988 = vld [vmem:[%s1980 + $0x38] sm:$0xff]
      %v1989 = vld [vmem:[%s1980 + $0x40] sm:$0xff]
      %v1990 = vld [vmem:[%s1980 + $0x48] sm:$0xff]
      %v1991 = vld [vmem:[%s1980 + $0x50] sm:$0xff]
      %v1992 = vld [vmem:[%s1980 + $0x58] sm:$0xff]
      %v1993 = vld [vmem:[%s1980 + $0x60] sm:$0xff]
      %v1994 = vld [vmem:[%s1980 + $0x68] sm:$0xff]
      %v1995 = vld [vmem:[%s1980 + $0x70] sm:$0xff]
      %v1996 = vld [vmem:[%s1980 + $0x78] sm:$0xff]
      %1997 = vmatpush.msra.mxu0 %v1996
      %1998 = vmatpush.msra.mxu0 %v1995
      %1999 = vmatpush.msra.mxu0 %v1994
      %2000 = vmatpush.msra.mxu0 %v1993
      %2001 = vmatpush.msra.mxu0 %v1992
      %2002 = vmatpush.msra.mxu0 %v1991
      %2003 = vmatpush.msra.mxu0 %v1990
      %2004 = vmatpush.msra.mxu0 %v1989
      %2005 = vmatpush.msra.mxu0 %v1988
      %2006 = vmatpush.msra.mxu0 %v1987
      %2007 = vmatpush.msra.mxu0 %v1986
      %2008 = vmatpush.msra.mxu0 %v1985
      %2009 = vmatpush.msra.mxu0 %v1984
      %2010 = vmatpush.msra.mxu0 %v1983
      %2011 = vmatpush.msra.mxu0 %v1982
      %2012 = vmatpush.msra.mxu0 %v1981
      %2013 = vmatmul.f32.gmra.mxu0 %v1972
      %v2014 = vpop.f32.mrf.mxu0
      %v2015 = vadd.f32 0.0, %v2014
      %2016 = vmatmul.f32.gmra.mxu0 %v1973
      %v2017 = vpop.f32.mrf.mxu0
      %v2018 = vadd.f32 0.0, %v2017
      %2019 = vmatmul.f32.gmra.mxu0 %v1974
      %v2020 = vpop.f32.mrf.mxu0
      %v2021 = vadd.f32 0.0, %v2020
      %2022 = vmatmul.f32.gmra.mxu0 %v1975
      %v2023 = vpop.f32.mrf.mxu0
      %v2024 = vadd.f32 0.0, %v2023
      %2025 = vmatmul.f32.gmra.mxu0 %v1976
      %v2026 = vpop.f32.mrf.mxu0
      %v2027 = vadd.f32 0.0, %v2026
      %2028 = vmatmul.f32.gmra.mxu0 %v1977
      %v2029 = vpop.f32.mrf.mxu0
      %v2030 = vadd.f32 0.0, %v2029
      %2031 = vmatmul.f32.gmra.mxu0 %v1978
      %v2032 = vpop.f32.mrf.mxu0
      %v2033 = vadd.f32 0.0, %v2032
      %2034 = vmatmul.f32.gmra.mxu0 %v1979
      %v2035 = vpop.f32.mrf.mxu0
      %v2036 = vadd.f32 0.0, %v2035
      %2037 = vdwg.mxu0
      %v2038 = vadd.f32 %v1955, %v2015
      %v2039 = vadd.f32 %v1956, %v2018
      %v2040 = vadd.f32 %v1957, %v2021
      %v2041 = vadd.f32 %v1958, %v2024
      %v2042 = vadd.f32 %v1959, %v2027
      %v2043 = vadd.f32 %v1960, %v2030
      %v2044 = vadd.f32 %v1961, %v2033
      %v2045 = vadd.f32 %v1962, %v2036
      %v2046 = vld [vmem:[%s1880 + $0x1] sm:$0xff]
      %v2047 = vld [vmem:[%s1880 + $0x11] sm:$0xff]
      %v2048 = vld [vmem:[%s1880 + $0x21] sm:$0xff]
      %v2049 = vld [vmem:[%s1880 + $0x31] sm:$0xff]
      %v2050 = vld [vmem:[%s1880 + $0x41] sm:$0xff]
      %v2051 = vld [vmem:[%s1880 + $0x51] sm:$0xff]
      %v2052 = vld [vmem:[%s1880 + $0x61] sm:$0xff]
      %v2053 = vld [vmem:[%s1880 + $0x71] sm:$0xff]
      %v2054 = vmax.f32 %v2046, 0.0
      %v2055 = vmax.f32 %v2047, 0.0
      %v2056 = vmax.f32 %v2048, 0.0
      %v2057 = vmax.f32 %v2049, 0.0
      %v2058 = vmax.f32 %v2050, 0.0
      %v2059 = vmax.f32 %v2051, 0.0
      %v2060 = vmax.f32 %v2052, 0.0
      %v2061 = vmax.f32 %v2053, 0.0
      %s2062 = scalar_lea.vmem %s168, 2944
      %v2063 = vld [vmem:[%s2062] sm:$0xff]
      %v2064 = vld [vmem:[%s2062 + $0x8] sm:$0xff]
      %v2065 = vld [vmem:[%s2062 + $0x10] sm:$0xff]
      %v2066 = vld [vmem:[%s2062 + $0x18] sm:$0xff]
      %v2067 = vld [vmem:[%s2062 + $0x20] sm:$0xff]
      %v2068 = vld [vmem:[%s2062 + $0x28] sm:$0xff]
      %v2069 = vld [vmem:[%s2062 + $0x30] sm:$0xff]
      %v2070 = vld [vmem:[%s2062 + $0x38] sm:$0xff]
      %v2071 = vld [vmem:[%s2062 + $0x40] sm:$0xff]
      %v2072 = vld [vmem:[%s2062 + $0x48] sm:$0xff]
      %v2073 = vld [vmem:[%s2062 + $0x50] sm:$0xff]
      %v2074 = vld [vmem:[%s2062 + $0x58] sm:$0xff]
      %v2075 = vld [vmem:[%s2062 + $0x60] sm:$0xff]
      %v2076 = vld [vmem:[%s2062 + $0x68] sm:$0xff]
      %v2077 = vld [vmem:[%s2062 + $0x70] sm:$0xff]
      %v2078 = vld [vmem:[%s2062 + $0x78] sm:$0xff]
      %2079 = vmatpush.msra.mxu0 %v2078
      %2080 = vmatpush.msra.mxu0 %v2077
      %2081 = vmatpush.msra.mxu0 %v2076
      %2082 = vmatpush.msra.mxu0 %v2075
      %2083 = vmatpush.msra.mxu0 %v2074
      %2084 = vmatpush.msra.mxu0 %v2073
      %2085 = vmatpush.msra.mxu0 %v2072
      %2086 = vmatpush.msra.mxu0 %v2071
      %2087 = vmatpush.msra.mxu0 %v2070
      %2088 = vmatpush.msra.mxu0 %v2069
      %2089 = vmatpush.msra.mxu0 %v2068
      %2090 = vmatpush.msra.mxu0 %v2067
      %2091 = vmatpush.msra.mxu0 %v2066
      %2092 = vmatpush.msra.mxu0 %v2065
      %2093 = vmatpush.msra.mxu0 %v2064
      %2094 = vmatpush.msra.mxu0 %v2063
      %2095 = vmatmul.f32.gmra.mxu0 %v2054
      %v2096 = vpop.f32.mrf.mxu0
      %v2097 = vadd.f32 0.0, %v2096
      %2098 = vmatmul.f32.gmra.mxu0 %v2055
      %v2099 = vpop.f32.mrf.mxu0
      %v2100 = vadd.f32 0.0, %v2099
      %2101 = vmatmul.f32.gmra.mxu0 %v2056
      %v2102 = vpop.f32.mrf.mxu0
      %v2103 = vadd.f32 0.0, %v2102
      %2104 = vmatmul.f32.gmra.mxu0 %v2057
      %v2105 = vpop.f32.mrf.mxu0
      %v2106 = vadd.f32 0.0, %v2105
      %2107 = vmatmul.f32.gmra.mxu0 %v2058
      %v2108 = vpop.f32.mrf.mxu0
      %v2109 = vadd.f32 0.0, %v2108
      %2110 = vmatmul.f32.gmra.mxu0 %v2059
      %v2111 = vpop.f32.mrf.mxu0
      %v2112 = vadd.f32 0.0, %v2111
      %2113 = vmatmul.f32.gmra.mxu0 %v2060
      %v2114 = vpop.f32.mrf.mxu0
      %v2115 = vadd.f32 0.0, %v2114
      %2116 = vmatmul.f32.gmra.mxu0 %v2061
      %v2117 = vpop.f32.mrf.mxu0
      %v2118 = vadd.f32 0.0, %v2117
      %2119 = vdwg.mxu0
      %v2120 = vadd.f32 %v2038, %v2097
      %v2121 = vadd.f32 %v2039, %v2100
      %v2122 = vadd.f32 %v2040, %v2103
      %v2123 = vadd.f32 %v2041, %v2106
      %v2124 = vadd.f32 %v2042, %v2109
      %v2125 = vadd.f32 %v2043, %v2112
      %v2126 = vadd.f32 %v2044, %v2115
      %v2127 = vadd.f32 %v2045, %v2118
      %s2128 = scalar_lea.vmem %s161, 1168
      %v2129 = vld [vmem:[%s2128] sm:$0xff]
      %v2130 = vld [vmem:[%s2128 + $0x10] sm:$0xff]
      %v2131 = vld [vmem:[%s2128 + $0x20] sm:$0xff]
      %v2132 = vld [vmem:[%s2128 + $0x30] sm:$0xff]
      %v2133 = vld [vmem:[%s2128 + $0x40] sm:$0xff]
      %v2134 = vld [vmem:[%s2128 + $0x50] sm:$0xff]
      %v2135 = vld [vmem:[%s2128 + $0x60] sm:$0xff]
      %v2136 = vld [vmem:[%s2128 + $0x70] sm:$0xff]
      %v2137 = vmax.f32 %v2129, 0.0
      %v2138 = vmax.f32 %v2130, 0.0
      %v2139 = vmax.f32 %v2131, 0.0
      %v2140 = vmax.f32 %v2132, 0.0
      %v2141 = vmax.f32 %v2133, 0.0
      %v2142 = vmax.f32 %v2134, 0.0
      %v2143 = vmax.f32 %v2135, 0.0
      %v2144 = vmax.f32 %v2136, 0.0
      %s2145 = scalar_lea.vmem %s168, 3072
      %v2146 = vld [vmem:[%s2145] sm:$0xff]
      %v2147 = vld [vmem:[%s2145 + $0x8] sm:$0xff]
      %v2148 = vld [vmem:[%s2145 + $0x10] sm:$0xff]
      %v2149 = vld [vmem:[%s2145 + $0x18] sm:$0xff]
      %v2150 = vld [vmem:[%s2145 + $0x20] sm:$0xff]
      %v2151 = vld [vmem:[%s2145 + $0x28] sm:$0xff]
      %v2152 = vld [vmem:[%s2145 + $0x30] sm:$0xff]
      %v2153 = vld [vmem:[%s2145 + $0x38] sm:$0xff]
      %v2154 = vld [vmem:[%s2145 + $0x40] sm:$0xff]
      %v2155 = vld [vmem:[%s2145 + $0x48] sm:$0xff]
      %v2156 = vld [vmem:[%s2145 + $0x50] sm:$0xff]
      %v2157 = vld [vmem:[%s2145 + $0x58] sm:$0xff]
      %v2158 = vld [vmem:[%s2145 + $0x60] sm:$0xff]
      %v2159 = vld [vmem:[%s2145 + $0x68] sm:$0xff]
      %v2160 = vld [vmem:[%s2145 + $0x70] sm:$0xff]
      %v2161 = vld [vmem:[%s2145 + $0x78] sm:$0xff]
      %2162 = vmatpush.msra.mxu0 %v2161
      %2163 = vmatpush.msra.mxu0 %v2160
      %2164 = vmatpush.msra.mxu0 %v2159
      %2165 = vmatpush.msra.mxu0 %v2158
      %2166 = vmatpush.msra.mxu0 %v2157
      %2167 = vmatpush.msra.mxu0 %v2156
      %2168 = vmatpush.msra.mxu0 %v2155
      %2169 = vmatpush.msra.mxu0 %v2154
      %2170 = vmatpush.msra.mxu0 %v2153
      %2171 = vmatpush.msra.mxu0 %v2152
      %2172 = vmatpush.msra.mxu0 %v2151
      %2173 = vmatpush.msra.mxu0 %v2150
      %2174 = vmatpush.msra.mxu0 %v2149
      %2175 = vmatpush.msra.mxu0 %v2148
      %2176 = vmatpush.msra.mxu0 %v2147
      %2177 = vmatpush.msra.mxu0 %v2146
      %2178 = vmatmul.f32.gmra.mxu0 %v2137
      %v2179 = vpop.f32.mrf.mxu0
      %v2180 = vadd.f32 0.0, %v2179
      %2181 = vmatmul.f32.gmra.mxu0 %v2138
      %v2182 = vpop.f32.mrf.mxu0
      %v2183 = vadd.f32 0.0, %v2182
      %2184 = vmatmul.f32.gmra.mxu0 %v2139
      %v2185 = vpop.f32.mrf.mxu0
      %v2186 = vadd.f32 0.0, %v2185
      %2187 = vmatmul.f32.gmra.mxu0 %v2140
      %v2188 = vpop.f32.mrf.mxu0
      %v2189 = vadd.f32 0.0, %v2188
      %2190 = vmatmul.f32.gmra.mxu0 %v2141
      %v2191 = vpop.f32.mrf.mxu0
      %v2192 = vadd.f32 0.0, %v2191
      %2193 = vmatmul.f32.gmra.mxu0 %v2142
      %v2194 = vpop.f32.mrf.mxu0
      %v2195 = vadd.f32 0.0, %v2194
      %2196 = vmatmul.f32.gmra.mxu0 %v2143
      %v2197 = vpop.f32.mrf.mxu0
      %v2198 = vadd.f32 0.0, %v2197
      %2199 = vmatmul.f32.gmra.mxu0 %v2144
      %v2200 = vpop.f32.mrf.mxu0
      %v2201 = vadd.f32 0.0, %v2200
      %2202 = vdwg.mxu0
      %v2203 = vadd.f32 %v2120, %v2180
      %v2204 = vadd.f32 %v2121, %v2183
      %v2205 = vadd.f32 %v2122, %v2186
      %v2206 = vadd.f32 %v2123, %v2189
      %v2207 = vadd.f32 %v2124, %v2192
      %v2208 = vadd.f32 %v2125, %v2195
      %v2209 = vadd.f32 %v2126, %v2198
      %v2210 = vadd.f32 %v2127, %v2201
      %s2211 = scalar_lea.vmem %s161, 1312
      %v2212 = vld [vmem:[%s2211] sm:$0xff]
      %v2213 = vld [vmem:[%s2211 + $0x10] sm:$0xff]
      %v2214 = vld [vmem:[%s2211 + $0x20] sm:$0xff]
      %v2215 = vld [vmem:[%s2211 + $0x30] sm:$0xff]
      %v2216 = vld [vmem:[%s2211 + $0x40] sm:$0xff]
      %v2217 = vld [vmem:[%s2211 + $0x50] sm:$0xff]
      %v2218 = vld [vmem:[%s2211 + $0x60] sm:$0xff]
      %v2219 = vld [vmem:[%s2211 + $0x70] sm:$0xff]
      %v2220 = vmax.f32 %v2212, 0.0
      %v2221 = vmax.f32 %v2213, 0.0
      %v2222 = vmax.f32 %v2214, 0.0
      %v2223 = vmax.f32 %v2215, 0.0
      %v2224 = vmax.f32 %v2216, 0.0
      %v2225 = vmax.f32 %v2217, 0.0
      %v2226 = vmax.f32 %v2218, 0.0
      %v2227 = vmax.f32 %v2219, 0.0
      %s2228 = scalar_lea.vmem %s168, 3200
      %v2229 = vld [vmem:[%s2228] sm:$0xff]
      %v2230 = vld [vmem:[%s2228 + $0x8] sm:$0xff]
      %v2231 = vld [vmem:[%s2228 + $0x10] sm:$0xff]
      %v2232 = vld [vmem:[%s2228 + $0x18] sm:$0xff]
      %v2233 = vld [vmem:[%s2228 + $0x20] sm:$0xff]
      %v2234 = vld [vmem:[%s2228 + $0x28] sm:$0xff]
      %v2235 = vld [vmem:[%s2228 + $0x30] sm:$0xff]
      %v2236 = vld [vmem:[%s2228 + $0x38] sm:$0xff]
      %v2237 = vld [vmem:[%s2228 + $0x40] sm:$0xff]
      %v2238 = vld [vmem:[%s2228 + $0x48] sm:$0xff]
      %v2239 = vld [vmem:[%s2228 + $0x50] sm:$0xff]
      %v2240 = vld [vmem:[%s2228 + $0x58] sm:$0xff]
      %v2241 = vld [vmem:[%s2228 + $0x60] sm:$0xff]
      %v2242 = vld [vmem:[%s2228 + $0x68] sm:$0xff]
      %v2243 = vld [vmem:[%s2228 + $0x70] sm:$0xff]
      %v2244 = vld [vmem:[%s2228 + $0x78] sm:$0xff]
      %2245 = vmatpush.msra.mxu0 %v2244
      %2246 = vmatpush.msra.mxu0 %v2243
      %2247 = vmatpush.msra.mxu0 %v2242
      %2248 = vmatpush.msra.mxu0 %v2241
      %2249 = vmatpush.msra.mxu0 %v2240
      %2250 = vmatpush.msra.mxu0 %v2239
      %2251 = vmatpush.msra.mxu0 %v2238
      %2252 = vmatpush.msra.mxu0 %v2237
      %2253 = vmatpush.msra.mxu0 %v2236
      %2254 = vmatpush.msra.mxu0 %v2235
      %2255 = vmatpush.msra.mxu0 %v2234
      %2256 = vmatpush.msra.mxu0 %v2233
      %2257 = vmatpush.msra.mxu0 %v2232
      %2258 = vmatpush.msra.mxu0 %v2231
      %2259 = vmatpush.msra.mxu0 %v2230
      %2260 = vmatpush.msra.mxu0 %v2229
      %2261 = vmatmul.f32.gmra.mxu0 %v2220
      %v2262 = vpop.f32.mrf.mxu0
      %v2263 = vadd.f32 0.0, %v2262
      %2264 = vmatmul.f32.gmra.mxu0 %v2221
      %v2265 = vpop.f32.mrf.mxu0
      %v2266 = vadd.f32 0.0, %v2265
      %2267 = vmatmul.f32.gmra.mxu0 %v2222
      %v2268 = vpop.f32.mrf.mxu0
      %v2269 = vadd.f32 0.0, %v2268
      %2270 = vmatmul.f32.gmra.mxu0 %v2223
      %v2271 = vpop.f32.mrf.mxu0
      %v2272 = vadd.f32 0.0, %v2271
      %2273 = vmatmul.f32.gmra.mxu0 %v2224
      %v2274 = vpop.f32.mrf.mxu0
      %v2275 = vadd.f32 0.0, %v2274
      %2276 = vmatmul.f32.gmra.mxu0 %v2225
      %v2277 = vpop.f32.mrf.mxu0
      %v2278 = vadd.f32 0.0, %v2277
      %2279 = vmatmul.f32.gmra.mxu0 %v2226
      %v2280 = vpop.f32.mrf.mxu0
      %v2281 = vadd.f32 0.0, %v2280
      %2282 = vmatmul.f32.gmra.mxu0 %v2227
      %v2283 = vpop.f32.mrf.mxu0
      %v2284 = vadd.f32 0.0, %v2283
      %2285 = vdwg.mxu0
      %v2286 = vadd.f32 %v2203, %v2263
      %v2287 = vadd.f32 %v2204, %v2266
      %v2288 = vadd.f32 %v2205, %v2269
      %v2289 = vadd.f32 %v2206, %v2272
      %v2290 = vadd.f32 %v2207, %v2275
      %v2291 = vadd.f32 %v2208, %v2278
      %v2292 = vadd.f32 %v2209, %v2281
      %v2293 = vadd.f32 %v2210, %v2284
      %v2294 = vld [vmem:[%s2128 + $0x1] sm:$0xff]
      %v2295 = vld [vmem:[%s2128 + $0x11] sm:$0xff]
      %v2296 = vld [vmem:[%s2128 + $0x21] sm:$0xff]
      %v2297 = vld [vmem:[%s2128 + $0x31] sm:$0xff]
      %v2298 = vld [vmem:[%s2128 + $0x41] sm:$0xff]
      %v2299 = vld [vmem:[%s2128 + $0x51] sm:$0xff]
      %v2300 = vld [vmem:[%s2128 + $0x61] sm:$0xff]
      %v2301 = vld [vmem:[%s2128 + $0x71] sm:$0xff]
      %v2302 = vmax.f32 %v2294, 0.0
      %v2303 = vmax.f32 %v2295, 0.0
      %v2304 = vmax.f32 %v2296, 0.0
      %v2305 = vmax.f32 %v2297, 0.0
      %v2306 = vmax.f32 %v2298, 0.0
      %v2307 = vmax.f32 %v2299, 0.0
      %v2308 = vmax.f32 %v2300, 0.0
      %v2309 = vmax.f32 %v2301, 0.0
      %s2310 = scalar_lea.vmem %s168, 3328
      %v2311 = vld [vmem:[%s2310] sm:$0xff]
      %v2312 = vld [vmem:[%s2310 + $0x8] sm:$0xff]
      %v2313 = vld [vmem:[%s2310 + $0x10] sm:$0xff]
      %v2314 = vld [vmem:[%s2310 + $0x18] sm:$0xff]
      %v2315 = vld [vmem:[%s2310 + $0x20] sm:$0xff]
      %v2316 = vld [vmem:[%s2310 + $0x28] sm:$0xff]
      %v2317 = vld [vmem:[%s2310 + $0x30] sm:$0xff]
      %v2318 = vld [vmem:[%s2310 + $0x38] sm:$0xff]
      %v2319 = vld [vmem:[%s2310 + $0x40] sm:$0xff]
      %v2320 = vld [vmem:[%s2310 + $0x48] sm:$0xff]
      %v2321 = vld [vmem:[%s2310 + $0x50] sm:$0xff]
      %v2322 = vld [vmem:[%s2310 + $0x58] sm:$0xff]
      %v2323 = vld [vmem:[%s2310 + $0x60] sm:$0xff]
      %v2324 = vld [vmem:[%s2310 + $0x68] sm:$0xff]
      %v2325 = vld [vmem:[%s2310 + $0x70] sm:$0xff]
      %v2326 = vld [vmem:[%s2310 + $0x78] sm:$0xff]
      %2327 = vmatpush.msra.mxu0 %v2326
      %2328 = vmatpush.msra.mxu0 %v2325
      %2329 = vmatpush.msra.mxu0 %v2324
      %2330 = vmatpush.msra.mxu0 %v2323
      %2331 = vmatpush.msra.mxu0 %v2322
      %2332 = vmatpush.msra.mxu0 %v2321
      %2333 = vmatpush.msra.mxu0 %v2320
      %2334 = vmatpush.msra.mxu0 %v2319
      %2335 = vmatpush.msra.mxu0 %v2318
      %2336 = vmatpush.msra.mxu0 %v2317
      %2337 = vmatpush.msra.mxu0 %v2316
      %2338 = vmatpush.msra.mxu0 %v2315
      %2339 = vmatpush.msra.mxu0 %v2314
      %2340 = vmatpush.msra.mxu0 %v2313
      %2341 = vmatpush.msra.mxu0 %v2312
      %2342 = vmatpush.msra.mxu0 %v2311
      %2343 = vmatmul.f32.gmra.mxu0 %v2302
      %v2344 = vpop.f32.mrf.mxu0
      %v2345 = vadd.f32 0.0, %v2344
      %2346 = vmatmul.f32.gmra.mxu0 %v2303
      %v2347 = vpop.f32.mrf.mxu0
      %v2348 = vadd.f32 0.0, %v2347
      %2349 = vmatmul.f32.gmra.mxu0 %v2304
      %v2350 = vpop.f32.mrf.mxu0
      %v2351 = vadd.f32 0.0, %v2350
      %2352 = vmatmul.f32.gmra.mxu0 %v2305
      %v2353 = vpop.f32.mrf.mxu0
      %v2354 = vadd.f32 0.0, %v2353
      %2355 = vmatmul.f32.gmra.mxu0 %v2306
      %v2356 = vpop.f32.mrf.mxu0
      %v2357 = vadd.f32 0.0, %v2356
      %2358 = vmatmul.f32.gmra.mxu0 %v2307
      %v2359 = vpop.f32.mrf.mxu0
      %v2360 = vadd.f32 0.0, %v2359
      %2361 = vmatmul.f32.gmra.mxu0 %v2308
      %v2362 = vpop.f32.mrf.mxu0
      %v2363 = vadd.f32 0.0, %v2362
      %2364 = vmatmul.f32.gmra.mxu0 %v2309
      %v2365 = vpop.f32.mrf.mxu0
      %v2366 = vadd.f32 0.0, %v2365
      %2367 = vdwg.mxu0
      %v2368 = vadd.f32 %v2286, %v2345
      %v2369 = vadd.f32 %v2287, %v2348
      %v2370 = vadd.f32 %v2288, %v2351
      %v2371 = vadd.f32 %v2289, %v2354
      %v2372 = vadd.f32 %v2290, %v2357
      %v2373 = vadd.f32 %v2291, %v2360
      %v2374 = vadd.f32 %v2292, %v2363
      %v2375 = vadd.f32 %v2293, %v2366
      %s2376 = scalar_lea.vmem %s175, 128
      %2377 = vst [vmem:[%s2376] sm:$0xff] %v2368
      %2378 = vst [vmem:[%s2376 + $0x8] sm:$0xff] %v2369
      %2379 = vst [vmem:[%s2376 + $0x10] sm:$0xff] %v2370
      %2380 = vst [vmem:[%s2376 + $0x18] sm:$0xff] %v2371
      %2381 = vst [vmem:[%s2376 + $0x20] sm:$0xff] %v2372
      %2382 = vst [vmem:[%s2376 + $0x28] sm:$0xff] %v2373
      %2383 = vst [vmem:[%s2376 + $0x30] sm:$0xff] %v2374
      %2384 = vst [vmem:[%s2376 + $0x38] sm:$0xff] %v2375
      %s2385 = scalar_lea.vmem %s161, 1728
      %v2386 = vld [vmem:[%s2385] sm:$0xff]
      %v2387 = vld [vmem:[%s2385 + $0x10] sm:$0xff]
      %v2388 = vld [vmem:[%s2385 + $0x20] sm:$0xff]
      %v2389 = vld [vmem:[%s2385 + $0x30] sm:$0xff]
      %v2390 = vld [vmem:[%s2385 + $0x40] sm:$0xff]
      %v2391 = vld [vmem:[%s2385 + $0x50] sm:$0xff]
      %v2392 = vld [vmem:[%s2385 + $0x60] sm:$0xff]
      %v2393 = vld [vmem:[%s2385 + $0x70] sm:$0xff]
      %v2394 = vmax.f32 %v2386, 0.0
      %v2395 = vmax.f32 %v2387, 0.0
      %v2396 = vmax.f32 %v2388, 0.0
      %v2397 = vmax.f32 %v2389, 0.0
      %v2398 = vmax.f32 %v2390, 0.0
      %v2399 = vmax.f32 %v2391, 0.0
      %v2400 = vmax.f32 %v2392, 0.0
      %v2401 = vmax.f32 %v2393, 0.0
      %s2402 = scalar_lea.vmem %s168, 3456
      %v2403 = vld [vmem:[%s2402] sm:$0xff]
      %v2404 = vld [vmem:[%s2402 + $0x8] sm:$0xff]
      %v2405 = vld [vmem:[%s2402 + $0x10] sm:$0xff]
      %v2406 = vld [vmem:[%s2402 + $0x18] sm:$0xff]
      %v2407 = vld [vmem:[%s2402 + $0x20] sm:$0xff]
      %v2408 = vld [vmem:[%s2402 + $0x28] sm:$0xff]
      %v2409 = vld [vmem:[%s2402 + $0x30] sm:$0xff]
      %v2410 = vld [vmem:[%s2402 + $0x38] sm:$0xff]
      %v2411 = vld [vmem:[%s2402 + $0x40] sm:$0xff]
      %v2412 = vld [vmem:[%s2402 + $0x48] sm:$0xff]
      %v2413 = vld [vmem:[%s2402 + $0x50] sm:$0xff]
      %v2414 = vld [vmem:[%s2402 + $0x58] sm:$0xff]
      %v2415 = vld [vmem:[%s2402 + $0x60] sm:$0xff]
      %v2416 = vld [vmem:[%s2402 + $0x68] sm:$0xff]
      %v2417 = vld [vmem:[%s2402 + $0x70] sm:$0xff]
      %v2418 = vld [vmem:[%s2402 + $0x78] sm:$0xff]
      %s2419 = scalar_lea.vmem %s161, 1872
      %v2420 = vld [vmem:[%s2419] sm:$0xff]
      %v2421 = vld [vmem:[%s2419 + $0x10] sm:$0xff]
      %v2422 = vld [vmem:[%s2419 + $0x20] sm:$0xff]
      %v2423 = vld [vmem:[%s2419 + $0x30] sm:$0xff]
      %v2424 = vld [vmem:[%s2419 + $0x40] sm:$0xff]
      %v2425 = vld [vmem:[%s2419 + $0x50] sm:$0xff]
      %v2426 = vld [vmem:[%s2419 + $0x60] sm:$0xff]
      %v2427 = vld [vmem:[%s2419 + $0x70] sm:$0xff]
      %v2428 = vmax.f32 %v2420, 0.0
      %v2429 = vmax.f32 %v2421, 0.0
      %v2430 = vmax.f32 %v2422, 0.0
      %v2431 = vmax.f32 %v2423, 0.0
      %v2432 = vmax.f32 %v2424, 0.0
      %v2433 = vmax.f32 %v2425, 0.0
      %v2434 = vmax.f32 %v2426, 0.0
      %v2435 = vmax.f32 %v2427, 0.0
      %s2436 = scalar_lea.vmem %s168, 3584
      %v2437 = vld [vmem:[%s2436] sm:$0xff]
      %v2438 = vld [vmem:[%s2436 + $0x8] sm:$0xff]
      %v2439 = vld [vmem:[%s2436 + $0x10] sm:$0xff]
      %v2440 = vld [vmem:[%s2436 + $0x18] sm:$0xff]
      %v2441 = vld [vmem:[%s2436 + $0x20] sm:$0xff]
      %v2442 = vld [vmem:[%s2436 + $0x28] sm:$0xff]
      %v2443 = vld [vmem:[%s2436 + $0x30] sm:$0xff]
      %v2444 = vld [vmem:[%s2436 + $0x38] sm:$0xff]
      %v2445 = vld [vmem:[%s2436 + $0x40] sm:$0xff]
      %v2446 = vld [vmem:[%s2436 + $0x48] sm:$0xff]
      %v2447 = vld [vmem:[%s2436 + $0x50] sm:$0xff]
      %v2448 = vld [vmem:[%s2436 + $0x58] sm:$0xff]
      %v2449 = vld [vmem:[%s2436 + $0x60] sm:$0xff]
      %v2450 = vld [vmem:[%s2436 + $0x68] sm:$0xff]
      %v2451 = vld [vmem:[%s2436 + $0x70] sm:$0xff]
      %v2452 = vld [vmem:[%s2436 + $0x78] sm:$0xff]
      %2453 = vmatpush.msra.mxu0 %v2452
      %2454 = vmatpush.msra.mxu0 %v2451
      %2455 = vmatpush.msra.mxu0 %v2450
      %2456 = vmatpush.msra.mxu0 %v2449
      %2457 = vmatpush.msra.mxu0 %v2448
      %2458 = vmatpush.msra.mxu0 %v2447
      %2459 = vmatpush.msra.mxu0 %v2446
      %2460 = vmatpush.msra.mxu0 %v2445
      %2461 = vmatpush.msra.mxu0 %v2444
      %2462 = vmatpush.msra.mxu0 %v2443
      %2463 = vmatpush.msra.mxu0 %v2442
      %2464 = vmatpush.msra.mxu0 %v2441
      %2465 = vmatpush.msra.mxu0 %v2440
      %2466 = vmatpush.msra.mxu0 %v2439
      %2467 = vmatpush.msra.mxu0 %v2438
      %2468 = vmatpush.msra.mxu0 %v2437
      %2469 = vmatmul.f32.gmra.mxu0 %v2428
      %v2470 = vpop.f32.mrf.mxu0
      %v2471 = vadd.f32 0.0, %v2470
      %2472 = vmatmul.f32.gmra.mxu0 %v2429
      %v2473 = vpop.f32.mrf.mxu0
      %v2474 = vadd.f32 0.0, %v2473
      %2475 = vmatmul.f32.gmra.mxu0 %v2430
      %v2476 = vpop.f32.mrf.mxu0
      %v2477 = vadd.f32 0.0, %v2476
      %2478 = vmatmul.f32.gmra.mxu0 %v2431
      %v2479 = vpop.f32.mrf.mxu0
      %v2480 = vadd.f32 0.0, %v2479
      %2481 = vmatmul.f32.gmra.mxu0 %v2432
      %v2482 = vpop.f32.mrf.mxu0
      %v2483 = vadd.f32 0.0, %v2482
      %2484 = vmatmul.f32.gmra.mxu0 %v2433
      %v2485 = vpop.f32.mrf.mxu0
      %v2486 = vadd.f32 0.0, %v2485
      %2487 = vmatmul.f32.gmra.mxu0 %v2434
      %v2488 = vpop.f32.mrf.mxu0
      %v2489 = vadd.f32 0.0, %v2488
      %2490 = vmatmul.f32.gmra.mxu0 %v2435
      %v2491 = vpop.f32.mrf.mxu0
      %v2492 = vadd.f32 0.0, %v2491
      %2493 = vdwg.mxu0
      %2494 = vmatpush.msra.mxu0 %v2418
      %2495 = vmatpush.msra.mxu0 %v2417
      %2496 = vmatpush.msra.mxu0 %v2416
      %2497 = vmatpush.msra.mxu0 %v2415
      %2498 = vmatpush.msra.mxu0 %v2414
      %2499 = vmatpush.msra.mxu0 %v2413
      %2500 = vmatpush.msra.mxu0 %v2412
      %2501 = vmatpush.msra.mxu0 %v2411
      %2502 = vmatpush.msra.mxu0 %v2410
      %2503 = vmatpush.msra.mxu0 %v2409
      %2504 = vmatpush.msra.mxu0 %v2408
      %2505 = vmatpush.msra.mxu0 %v2407
      %2506 = vmatpush.msra.mxu0 %v2406
      %2507 = vmatpush.msra.mxu0 %v2405
      %2508 = vmatpush.msra.mxu0 %v2404
      %2509 = vmatpush.msra.mxu0 %v2403
      %2510 = vmatmul.f32.gmra.mxu0 %v2394
      %v2511 = vpop.f32.mrf.mxu0
      %v2512 = vadd.f32 %v2471, %v2511
      %2513 = vmatmul.f32.gmra.mxu0 %v2395
      %v2514 = vpop.f32.mrf.mxu0
      %v2515 = vadd.f32 %v2474, %v2514
      %2516 = vmatmul.f32.gmra.mxu0 %v2396
      %v2517 = vpop.f32.mrf.mxu0
      %v2518 = vadd.f32 %v2477, %v2517
      %2519 = vmatmul.f32.gmra.mxu0 %v2397
      %v2520 = vpop.f32.mrf.mxu0
      %v2521 = vadd.f32 %v2480, %v2520
      %2522 = vmatmul.f32.gmra.mxu0 %v2398
      %v2523 = vpop.f32.mrf.mxu0
      %v2524 = vadd.f32 %v2483, %v2523
      %2525 = vmatmul.f32.gmra.mxu0 %v2399
      %v2526 = vpop.f32.mrf.mxu0
      %v2527 = vadd.f32 %v2486, %v2526
      %2528 = vmatmul.f32.gmra.mxu0 %v2400
      %v2529 = vpop.f32.mrf.mxu0
      %v2530 = vadd.f32 %v2489, %v2529
      %2531 = vmatmul.f32.gmra.mxu0 %v2401
      %v2532 = vpop.f32.mrf.mxu0
      %v2533 = vadd.f32 %v2492, %v2532
      %2534 = vdwg.mxu0
      %v2535 = vld [vmem:[%s2385 + $0x1] sm:$0xff]
      %v2536 = vld [vmem:[%s2385 + $0x11] sm:$0xff]
      %v2537 = vld [vmem:[%s2385 + $0x21] sm:$0xff]
      %v2538 = vld [vmem:[%s2385 + $0x31] sm:$0xff]
      %v2539 = vld [vmem:[%s2385 + $0x41] sm:$0xff]
      %v2540 = vld [vmem:[%s2385 + $0x51] sm:$0xff]
      %v2541 = vld [vmem:[%s2385 + $0x61] sm:$0xff]
      %v2542 = vld [vmem:[%s2385 + $0x71] sm:$0xff]
      %v2543 = vmax.f32 %v2535, 0.0
      %v2544 = vmax.f32 %v2536, 0.0
      %v2545 = vmax.f32 %v2537, 0.0
      %v2546 = vmax.f32 %v2538, 0.0
      %v2547 = vmax.f32 %v2539, 0.0
      %v2548 = vmax.f32 %v2540, 0.0
      %v2549 = vmax.f32 %v2541, 0.0
      %v2550 = vmax.f32 %v2542, 0.0
      %s2551 = scalar_lea.vmem %s168, 3712
      %v2552 = vld [vmem:[%s2551] sm:$0xff]
      %v2553 = vld [vmem:[%s2551 + $0x8] sm:$0xff]
      %v2554 = vld [vmem:[%s2551 + $0x10] sm:$0xff]
      %v2555 = vld [vmem:[%s2551 + $0x18] sm:$0xff]
      %v2556 = vld [vmem:[%s2551 + $0x20] sm:$0xff]
      %v2557 = vld [vmem:[%s2551 + $0x28] sm:$0xff]
      %v2558 = vld [vmem:[%s2551 + $0x30] sm:$0xff]
      %v2559 = vld [vmem:[%s2551 + $0x38] sm:$0xff]
      %v2560 = vld [vmem:[%s2551 + $0x40] sm:$0xff]
      %v2561 = vld [vmem:[%s2551 + $0x48] sm:$0xff]
      %v2562 = vld [vmem:[%s2551 + $0x50] sm:$0xff]
      %v2563 = vld [vmem:[%s2551 + $0x58] sm:$0xff]
      %v2564 = vld [vmem:[%s2551 + $0x60] sm:$0xff]
      %v2565 = vld [vmem:[%s2551 + $0x68] sm:$0xff]
      %v2566 = vld [vmem:[%s2551 + $0x70] sm:$0xff]
      %v2567 = vld [vmem:[%s2551 + $0x78] sm:$0xff]
      %2568 = vmatpush.msra.mxu0 %v2567
      %2569 = vmatpush.msra.mxu0 %v2566
      %2570 = vmatpush.msra.mxu0 %v2565
      %2571 = vmatpush.msra.mxu0 %v2564
      %2572 = vmatpush.msra.mxu0 %v2563
      %2573 = vmatpush.msra.mxu0 %v2562
      %2574 = vmatpush.msra.mxu0 %v2561
      %2575 = vmatpush.msra.mxu0 %v2560
      %2576 = vmatpush.msra.mxu0 %v2559
      %2577 = vmatpush.msra.mxu0 %v2558
      %2578 = vmatpush.msra.mxu0 %v2557
      %2579 = vmatpush.msra.mxu0 %v2556
      %2580 = vmatpush.msra.mxu0 %v2555
      %2581 = vmatpush.msra.mxu0 %v2554
      %2582 = vmatpush.msra.mxu0 %v2553
      %2583 = vmatpush.msra.mxu0 %v2552
      %2584 = vmatmul.f32.gmra.mxu0 %v2543
      %v2585 = vpop.f32.mrf.mxu0
      %v2586 = vadd.f32 0.0, %v2585
      %2587 = vmatmul.f32.gmra.mxu0 %v2544
      %v2588 = vpop.f32.mrf.mxu0
      %v2589 = vadd.f32 0.0, %v2588
      %2590 = vmatmul.f32.gmra.mxu0 %v2545
      %v2591 = vpop.f32.mrf.mxu0
      %v2592 = vadd.f32 0.0, %v2591
      %2593 = vmatmul.f32.gmra.mxu0 %v2546
      %v2594 = vpop.f32.mrf.mxu0
      %v2595 = vadd.f32 0.0, %v2594
      %2596 = vmatmul.f32.gmra.mxu0 %v2547
      %v2597 = vpop.f32.mrf.mxu0
      %v2598 = vadd.f32 0.0, %v2597
      %2599 = vmatmul.f32.gmra.mxu0 %v2548
      %v2600 = vpop.f32.mrf.mxu0
      %v2601 = vadd.f32 0.0, %v2600
      %2602 = vmatmul.f32.gmra.mxu0 %v2549
      %v2603 = vpop.f32.mrf.mxu0
      %v2604 = vadd.f32 0.0, %v2603
      %2605 = vmatmul.f32.gmra.mxu0 %v2550
      %v2606 = vpop.f32.mrf.mxu0
      %v2607 = vadd.f32 0.0, %v2606
      %2608 = vdwg.mxu0
      %v2609 = vadd.f32 %v2512, %v2586
      %v2610 = vadd.f32 %v2515, %v2589
      %v2611 = vadd.f32 %v2518, %v2592
      %v2612 = vadd.f32 %v2521, %v2595
      %v2613 = vadd.f32 %v2524, %v2598
      %v2614 = vadd.f32 %v2527, %v2601
      %v2615 = vadd.f32 %v2530, %v2604
      %v2616 = vadd.f32 %v2533, %v2607
      %s2617 = scalar_lea.vmem %s161, 2016
      %v2618 = vld [vmem:[%s2617] sm:$0xff]
      %v2619 = vld [vmem:[%s2617 + $0x10] sm:$0xff]
      %v2620 = vld [vmem:[%s2617 + $0x20] sm:$0xff]
      %v2621 = vld [vmem:[%s2617 + $0x30] sm:$0xff]
      %v2622 = vld [vmem:[%s2617 + $0x40] sm:$0xff]
      %v2623 = vld [vmem:[%s2617 + $0x50] sm:$0xff]
      %v2624 = vld [vmem:[%s2617 + $0x60] sm:$0xff]
      %v2625 = vld [vmem:[%s2617 + $0x70] sm:$0xff]
      %v2626 = vmax.f32 %v2618, 0.0
      %v2627 = vmax.f32 %v2619, 0.0
      %v2628 = vmax.f32 %v2620, 0.0
      %v2629 = vmax.f32 %v2621, 0.0
      %v2630 = vmax.f32 %v2622, 0.0
      %v2631 = vmax.f32 %v2623, 0.0
      %v2632 = vmax.f32 %v2624, 0.0
      %v2633 = vmax.f32 %v2625, 0.0
      %s2634 = scalar_lea.vmem %s168, 3840
      %v2635 = vld [vmem:[%s2634] sm:$0xff]
      %v2636 = vld [vmem:[%s2634 + $0x8] sm:$0xff]
      %v2637 = vld [vmem:[%s2634 + $0x10] sm:$0xff]
      %v2638 = vld [vmem:[%s2634 + $0x18] sm:$0xff]
      %v2639 = vld [vmem:[%s2634 + $0x20] sm:$0xff]
      %v2640 = vld [vmem:[%s2634 + $0x28] sm:$0xff]
      %v2641 = vld [vmem:[%s2634 + $0x30] sm:$0xff]
      %v2642 = vld [vmem:[%s2634 + $0x38] sm:$0xff]
      %v2643 = vld [vmem:[%s2634 + $0x40] sm:$0xff]
      %v2644 = vld [vmem:[%s2634 + $0x48] sm:$0xff]
      %v2645 = vld [vmem:[%s2634 + $0x50] sm:$0xff]
      %v2646 = vld [vmem:[%s2634 + $0x58] sm:$0xff]
      %v2647 = vld [vmem:[%s2634 + $0x60] sm:$0xff]
      %v2648 = vld [vmem:[%s2634 + $0x68] sm:$0xff]
      %v2649 = vld [vmem:[%s2634 + $0x70] sm:$0xff]
      %v2650 = vld [vmem:[%s2634 + $0x78] sm:$0xff]
      %2651 = vmatpush.msra.mxu0 %v2650
      %2652 = vmatpush.msra.mxu0 %v2649
      %2653 = vmatpush.msra.mxu0 %v2648
      %2654 = vmatpush.msra.mxu0 %v2647
      %2655 = vmatpush.msra.mxu0 %v2646
      %2656 = vmatpush.msra.mxu0 %v2645
      %2657 = vmatpush.msra.mxu0 %v2644
      %2658 = vmatpush.msra.mxu0 %v2643
      %2659 = vmatpush.msra.mxu0 %v2642
      %2660 = vmatpush.msra.mxu0 %v2641
      %2661 = vmatpush.msra.mxu0 %v2640
      %2662 = vmatpush.msra.mxu0 %v2639
      %2663 = vmatpush.msra.mxu0 %v2638
      %2664 = vmatpush.msra.mxu0 %v2637
      %2665 = vmatpush.msra.mxu0 %v2636
      %2666 = vmatpush.msra.mxu0 %v2635
      %2667 = vmatmul.f32.gmra.mxu0 %v2626
      %v2668 = vpop.f32.mrf.mxu0
      %v2669 = vadd.f32 0.0, %v2668
      %2670 = vmatmul.f32.gmra.mxu0 %v2627
      %v2671 = vpop.f32.mrf.mxu0
      %v2672 = vadd.f32 0.0, %v2671
      %2673 = vmatmul.f32.gmra.mxu0 %v2628
      %v2674 = vpop.f32.mrf.mxu0
      %v2675 = vadd.f32 0.0, %v2674
      %2676 = vmatmul.f32.gmra.mxu0 %v2629
      %v2677 = vpop.f32.mrf.mxu0
      %v2678 = vadd.f32 0.0, %v2677
      %2679 = vmatmul.f32.gmra.mxu0 %v2630
      %v2680 = vpop.f32.mrf.mxu0
      %v2681 = vadd.f32 0.0, %v2680
      %2682 = vmatmul.f32.gmra.mxu0 %v2631
      %v2683 = vpop.f32.mrf.mxu0
      %v2684 = vadd.f32 0.0, %v2683
      %2685 = vmatmul.f32.gmra.mxu0 %v2632
      %v2686 = vpop.f32.mrf.mxu0
      %v2687 = vadd.f32 0.0, %v2686
      %2688 = vmatmul.f32.gmra.mxu0 %v2633
      %v2689 = vpop.f32.mrf.mxu0
      %v2690 = vadd.f32 0.0, %v2689
      %2691 = vdwg.mxu0
      %v2692 = vadd.f32 %v2609, %v2669
      %v2693 = vadd.f32 %v2610, %v2672
      %v2694 = vadd.f32 %v2611, %v2675
      %v2695 = vadd.f32 %v2612, %v2678
      %v2696 = vadd.f32 %v2613, %v2681
      %v2697 = vadd.f32 %v2614, %v2684
      %v2698 = vadd.f32 %v2615, %v2687
      %v2699 = vadd.f32 %v2616, %v2690
      %s2700 = scalar_lea.vmem %s161, 2160
      %v2701 = vld [vmem:[%s2700] sm:$0xff]
      %v2702 = vld [vmem:[%s2700 + $0x10] sm:$0xff]
      %v2703 = vld [vmem:[%s2700 + $0x20] sm:$0xff]
      %v2704 = vld [vmem:[%s2700 + $0x30] sm:$0xff]
      %v2705 = vld [vmem:[%s2700 + $0x40] sm:$0xff]
      %v2706 = vld [vmem:[%s2700 + $0x50] sm:$0xff]
      %v2707 = vld [vmem:[%s2700 + $0x60] sm:$0xff]
      %v2708 = vld [vmem:[%s2700 + $0x70] sm:$0xff]
      %v2709 = vmax.f32 %v2701, 0.0
      %v2710 = vmax.f32 %v2702, 0.0
      %v2711 = vmax.f32 %v2703, 0.0
      %v2712 = vmax.f32 %v2704, 0.0
      %v2713 = vmax.f32 %v2705, 0.0
      %v2714 = vmax.f32 %v2706, 0.0
      %v2715 = vmax.f32 %v2707, 0.0
      %v2716 = vmax.f32 %v2708, 0.0
      %s2717 = scalar_lea.vmem %s168, 3968
      %v2718 = vld [vmem:[%s2717] sm:$0xff]
      %v2719 = vld [vmem:[%s2717 + $0x8] sm:$0xff]
      %v2720 = vld [vmem:[%s2717 + $0x10] sm:$0xff]
      %v2721 = vld [vmem:[%s2717 + $0x18] sm:$0xff]
      %v2722 = vld [vmem:[%s2717 + $0x20] sm:$0xff]
      %v2723 = vld [vmem:[%s2717 + $0x28] sm:$0xff]
      %v2724 = vld [vmem:[%s2717 + $0x30] sm:$0xff]
      %v2725 = vld [vmem:[%s2717 + $0x38] sm:$0xff]
      %v2726 = vld [vmem:[%s2717 + $0x40] sm:$0xff]
      %v2727 = vld [vmem:[%s2717 + $0x48] sm:$0xff]
      %v2728 = vld [vmem:[%s2717 + $0x50] sm:$0xff]
      %v2729 = vld [vmem:[%s2717 + $0x58] sm:$0xff]
      %v2730 = vld [vmem:[%s2717 + $0x60] sm:$0xff]
      %v2731 = vld [vmem:[%s2717 + $0x68] sm:$0xff]
      %v2732 = vld [vmem:[%s2717 + $0x70] sm:$0xff]
      %v2733 = vld [vmem:[%s2717 + $0x78] sm:$0xff]
      %2734 = vmatpush.msra.mxu0 %v2733
      %2735 = vmatpush.msra.mxu0 %v2732
      %2736 = vmatpush.msra.mxu0 %v2731
      %2737 = vmatpush.msra.mxu0 %v2730
      %2738 = vmatpush.msra.mxu0 %v2729
      %2739 = vmatpush.msra.mxu0 %v2728
      %2740 = vmatpush.msra.mxu0 %v2727
      %2741 = vmatpush.msra.mxu0 %v2726
      %2742 = vmatpush.msra.mxu0 %v2725
      %2743 = vmatpush.msra.mxu0 %v2724
      %2744 = vmatpush.msra.mxu0 %v2723
      %2745 = vmatpush.msra.mxu0 %v2722
      %2746 = vmatpush.msra.mxu0 %v2721
      %2747 = vmatpush.msra.mxu0 %v2720
      %2748 = vmatpush.msra.mxu0 %v2719
      %2749 = vmatpush.msra.mxu0 %v2718
      %2750 = vmatmul.f32.gmra.mxu0 %v2709
      %v2751 = vpop.f32.mrf.mxu0
      %v2752 = vadd.f32 0.0, %v2751
      %2753 = vmatmul.f32.gmra.mxu0 %v2710
      %v2754 = vpop.f32.mrf.mxu0
      %v2755 = vadd.f32 0.0, %v2754
      %2756 = vmatmul.f32.gmra.mxu0 %v2711
      %v2757 = vpop.f32.mrf.mxu0
      %v2758 = vadd.f32 0.0, %v2757
      %2759 = vmatmul.f32.gmra.mxu0 %v2712
      %v2760 = vpop.f32.mrf.mxu0
      %v2761 = vadd.f32 0.0, %v2760
      %2762 = vmatmul.f32.gmra.mxu0 %v2713
      %v2763 = vpop.f32.mrf.mxu0
      %v2764 = vadd.f32 0.0, %v2763
      %2765 = vmatmul.f32.gmra.mxu0 %v2714
      %v2766 = vpop.f32.mrf.mxu0
      %v2767 = vadd.f32 0.0, %v2766
      %2768 = vmatmul.f32.gmra.mxu0 %v2715
      %v2769 = vpop.f32.mrf.mxu0
      %v2770 = vadd.f32 0.0, %v2769
      %2771 = vmatmul.f32.gmra.mxu0 %v2716
      %v2772 = vpop.f32.mrf.mxu0
      %v2773 = vadd.f32 0.0, %v2772
      %2774 = vdwg.mxu0
      %v2775 = vadd.f32 %v2692, %v2752
      %v2776 = vadd.f32 %v2693, %v2755
      %v2777 = vadd.f32 %v2694, %v2758
      %v2778 = vadd.f32 %v2695, %v2761
      %v2779 = vadd.f32 %v2696, %v2764
      %v2780 = vadd.f32 %v2697, %v2767
      %v2781 = vadd.f32 %v2698, %v2770
      %v2782 = vadd.f32 %v2699, %v2773
      %v2783 = vld [vmem:[%s2617 + $0x1] sm:$0xff]
      %v2784 = vld [vmem:[%s2617 + $0x11] sm:$0xff]
      %v2785 = vld [vmem:[%s2617 + $0x21] sm:$0xff]
      %v2786 = vld [vmem:[%s2617 + $0x31] sm:$0xff]
      %v2787 = vld [vmem:[%s2617 + $0x41] sm:$0xff]
      %v2788 = vld [vmem:[%s2617 + $0x51] sm:$0xff]
      %v2789 = vld [vmem:[%s2617 + $0x61] sm:$0xff]
      %v2790 = vld [vmem:[%s2617 + $0x71] sm:$0xff]
      %v2791 = vmax.f32 %v2783, 0.0
      %v2792 = vmax.f32 %v2784, 0.0
      %v2793 = vmax.f32 %v2785, 0.0
      %v2794 = vmax.f32 %v2786, 0.0
      %v2795 = vmax.f32 %v2787, 0.0
      %v2796 = vmax.f32 %v2788, 0.0
      %v2797 = vmax.f32 %v2789, 0.0
      %v2798 = vmax.f32 %v2790, 0.0
      %s2799 = scalar_lea.vmem %s168, 4096
      %v2800 = vld [vmem:[%s2799] sm:$0xff]
      %v2801 = vld [vmem:[%s2799 + $0x8] sm:$0xff]
      %v2802 = vld [vmem:[%s2799 + $0x10] sm:$0xff]
      %v2803 = vld [vmem:[%s2799 + $0x18] sm:$0xff]
      %v2804 = vld [vmem:[%s2799 + $0x20] sm:$0xff]
      %v2805 = vld [vmem:[%s2799 + $0x28] sm:$0xff]
      %v2806 = vld [vmem:[%s2799 + $0x30] sm:$0xff]
      %v2807 = vld [vmem:[%s2799 + $0x38] sm:$0xff]
      %v2808 = vld [vmem:[%s2799 + $0x40] sm:$0xff]
      %v2809 = vld [vmem:[%s2799 + $0x48] sm:$0xff]
      %v2810 = vld [vmem:[%s2799 + $0x50] sm:$0xff]
      %v2811 = vld [vmem:[%s2799 + $0x58] sm:$0xff]
      %v2812 = vld [vmem:[%s2799 + $0x60] sm:$0xff]
      %v2813 = vld [vmem:[%s2799 + $0x68] sm:$0xff]
      %v2814 = vld [vmem:[%s2799 + $0x70] sm:$0xff]
      %v2815 = vld [vmem:[%s2799 + $0x78] sm:$0xff]
      %2816 = vmatpush.msra.mxu0 %v2815
      %2817 = vmatpush.msra.mxu0 %v2814
      %2818 = vmatpush.msra.mxu0 %v2813
      %2819 = vmatpush.msra.mxu0 %v2812
      %2820 = vmatpush.msra.mxu0 %v2811
      %2821 = vmatpush.msra.mxu0 %v2810
      %2822 = vmatpush.msra.mxu0 %v2809
      %2823 = vmatpush.msra.mxu0 %v2808
      %2824 = vmatpush.msra.mxu0 %v2807
      %2825 = vmatpush.msra.mxu0 %v2806
      %2826 = vmatpush.msra.mxu0 %v2805
      %2827 = vmatpush.msra.mxu0 %v2804
      %2828 = vmatpush.msra.mxu0 %v2803
      %2829 = vmatpush.msra.mxu0 %v2802
      %2830 = vmatpush.msra.mxu0 %v2801
      %2831 = vmatpush.msra.mxu0 %v2800
      %2832 = vmatmul.f32.gmra.mxu0 %v2791
      %v2833 = vpop.f32.mrf.mxu0
      %v2834 = vadd.f32 0.0, %v2833
      %2835 = vmatmul.f32.gmra.mxu0 %v2792
      %v2836 = vpop.f32.mrf.mxu0
      %v2837 = vadd.f32 0.0, %v2836
      %2838 = vmatmul.f32.gmra.mxu0 %v2793
      %v2839 = vpop.f32.mrf.mxu0
      %v2840 = vadd.f32 0.0, %v2839
      %2841 = vmatmul.f32.gmra.mxu0 %v2794
      %v2842 = vpop.f32.mrf.mxu0
      %v2843 = vadd.f32 0.0, %v2842
      %2844 = vmatmul.f32.gmra.mxu0 %v2795
      %v2845 = vpop.f32.mrf.mxu0
      %v2846 = vadd.f32 0.0, %v2845
      %2847 = vmatmul.f32.gmra.mxu0 %v2796
      %v2848 = vpop.f32.mrf.mxu0
      %v2849 = vadd.f32 0.0, %v2848
      %2850 = vmatmul.f32.gmra.mxu0 %v2797
      %v2851 = vpop.f32.mrf.mxu0
      %v2852 = vadd.f32 0.0, %v2851
      %2853 = vmatmul.f32.gmra.mxu0 %v2798
      %v2854 = vpop.f32.mrf.mxu0
      %v2855 = vadd.f32 0.0, %v2854
      %2856 = vdwg.mxu0
      %v2857 = vadd.f32 %v2775, %v2834
      %v2858 = vadd.f32 %v2776, %v2837
      %v2859 = vadd.f32 %v2777, %v2840
      %v2860 = vadd.f32 %v2778, %v2843
      %v2861 = vadd.f32 %v2779, %v2846
      %v2862 = vadd.f32 %v2780, %v2849
      %v2863 = vadd.f32 %v2781, %v2852
      %v2864 = vadd.f32 %v2782, %v2855
      %s2865 = scalar_lea.vmem %s161, 1744
      %v2866 = vld [vmem:[%s2865] sm:$0xff]
      %v2867 = vld [vmem:[%s2865 + $0x10] sm:$0xff]
      %v2868 = vld [vmem:[%s2865 + $0x20] sm:$0xff]
      %v2869 = vld [vmem:[%s2865 + $0x30] sm:$0xff]
      %v2870 = vld [vmem:[%s2865 + $0x40] sm:$0xff]
      %v2871 = vld [vmem:[%s2865 + $0x50] sm:$0xff]
      %v2872 = vld [vmem:[%s2865 + $0x60] sm:$0xff]
      %v2873 = vld [vmem:[%s2865 + $0x70] sm:$0xff]
      %v2874 = vmax.f32 %v2866, 0.0
      %v2875 = vmax.f32 %v2867, 0.0
      %v2876 = vmax.f32 %v2868, 0.0
      %v2877 = vmax.f32 %v2869, 0.0
      %v2878 = vmax.f32 %v2870, 0.0
      %v2879 = vmax.f32 %v2871, 0.0
      %v2880 = vmax.f32 %v2872, 0.0
      %v2881 = vmax.f32 %v2873, 0.0
      %s2882 = scalar_lea.vmem %s168, 4224
      %v2883 = vld [vmem:[%s2882] sm:$0xff]
      %v2884 = vld [vmem:[%s2882 + $0x8] sm:$0xff]
      %v2885 = vld [vmem:[%s2882 + $0x10] sm:$0xff]
      %v2886 = vld [vmem:[%s2882 + $0x18] sm:$0xff]
      %v2887 = vld [vmem:[%s2882 + $0x20] sm:$0xff]
      %v2888 = vld [vmem:[%s2882 + $0x28] sm:$0xff]
      %v2889 = vld [vmem:[%s2882 + $0x30] sm:$0xff]
      %v2890 = vld [vmem:[%s2882 + $0x38] sm:$0xff]
      %v2891 = vld [vmem:[%s2882 + $0x40] sm:$0xff]
      %v2892 = vld [vmem:[%s2882 + $0x48] sm:$0xff]
      %v2893 = vld [vmem:[%s2882 + $0x50] sm:$0xff]
      %v2894 = vld [vmem:[%s2882 + $0x58] sm:$0xff]
      %v2895 = vld [vmem:[%s2882 + $0x60] sm:$0xff]
      %v2896 = vld [vmem:[%s2882 + $0x68] sm:$0xff]
      %v2897 = vld [vmem:[%s2882 + $0x70] sm:$0xff]
      %v2898 = vld [vmem:[%s2882 + $0x78] sm:$0xff]
      %2899 = vmatpush.msra.mxu0 %v2898
      %2900 = vmatpush.msra.mxu0 %v2897
      %2901 = vmatpush.msra.mxu0 %v2896
      %2902 = vmatpush.msra.mxu0 %v2895
      %2903 = vmatpush.msra.mxu0 %v2894
      %2904 = vmatpush.msra.mxu0 %v2893
      %2905 = vmatpush.msra.mxu0 %v2892
      %2906 = vmatpush.msra.mxu0 %v2891
      %2907 = vmatpush.msra.mxu0 %v2890
      %2908 = vmatpush.msra.mxu0 %v2889
      %2909 = vmatpush.msra.mxu0 %v2888
      %2910 = vmatpush.msra.mxu0 %v2887
      %2911 = vmatpush.msra.mxu0 %v2886
      %2912 = vmatpush.msra.mxu0 %v2885
      %2913 = vmatpush.msra.mxu0 %v2884
      %2914 = vmatpush.msra.mxu0 %v2883
      %2915 = vmatmul.f32.gmra.mxu0 %v2874
      %v2916 = vpop.f32.mrf.mxu0
      %v2917 = vadd.f32 0.0, %v2916
      %2918 = vmatmul.f32.gmra.mxu0 %v2875
      %v2919 = vpop.f32.mrf.mxu0
      %v2920 = vadd.f32 0.0, %v2919
      %2921 = vmatmul.f32.gmra.mxu0 %v2876
      %v2922 = vpop.f32.mrf.mxu0
      %v2923 = vadd.f32 0.0, %v2922
      %2924 = vmatmul.f32.gmra.mxu0 %v2877
      %v2925 = vpop.f32.mrf.mxu0
      %v2926 = vadd.f32 0.0, %v2925
      %2927 = vmatmul.f32.gmra.mxu0 %v2878
      %v2928 = vpop.f32.mrf.mxu0
      %v2929 = vadd.f32 0.0, %v2928
      %2930 = vmatmul.f32.gmra.mxu0 %v2879
      %v2931 = vpop.f32.mrf.mxu0
      %v2932 = vadd.f32 0.0, %v2931
      %2933 = vmatmul.f32.gmra.mxu0 %v2880
      %v2934 = vpop.f32.mrf.mxu0
      %v2935 = vadd.f32 0.0, %v2934
      %2936 = vmatmul.f32.gmra.mxu0 %v2881
      %v2937 = vpop.f32.mrf.mxu0
      %v2938 = vadd.f32 0.0, %v2937
      %2939 = vdwg.mxu0
      %v2940 = vadd.f32 %v2857, %v2917
      %v2941 = vadd.f32 %v2858, %v2920
      %v2942 = vadd.f32 %v2859, %v2923
      %v2943 = vadd.f32 %v2860, %v2926
      %v2944 = vadd.f32 %v2861, %v2929
      %v2945 = vadd.f32 %v2862, %v2932
      %v2946 = vadd.f32 %v2863, %v2935
      %v2947 = vadd.f32 %v2864, %v2938
      %s2948 = scalar_lea.vmem %s161, 1888
      %v2949 = vld [vmem:[%s2948] sm:$0xff]
      %v2950 = vld [vmem:[%s2948 + $0x10] sm:$0xff]
      %v2951 = vld [vmem:[%s2948 + $0x20] sm:$0xff]
      %v2952 = vld [vmem:[%s2948 + $0x30] sm:$0xff]
      %v2953 = vld [vmem:[%s2948 + $0x40] sm:$0xff]
      %v2954 = vld [vmem:[%s2948 + $0x50] sm:$0xff]
      %v2955 = vld [vmem:[%s2948 + $0x60] sm:$0xff]
      %v2956 = vld [vmem:[%s2948 + $0x70] sm:$0xff]
      %v2957 = vmax.f32 %v2949, 0.0
      %v2958 = vmax.f32 %v2950, 0.0
      %v2959 = vmax.f32 %v2951, 0.0
      %v2960 = vmax.f32 %v2952, 0.0
      %v2961 = vmax.f32 %v2953, 0.0
      %v2962 = vmax.f32 %v2954, 0.0
      %v2963 = vmax.f32 %v2955, 0.0
      %v2964 = vmax.f32 %v2956, 0.0
      %s2965 = scalar_lea.vmem %s168, 4352
      %v2966 = vld [vmem:[%s2965] sm:$0xff]
      %v2967 = vld [vmem:[%s2965 + $0x8] sm:$0xff]
      %v2968 = vld [vmem:[%s2965 + $0x10] sm:$0xff]
      %v2969 = vld [vmem:[%s2965 + $0x18] sm:$0xff]
      %v2970 = vld [vmem:[%s2965 + $0x20] sm:$0xff]
      %v2971 = vld [vmem:[%s2965 + $0x28] sm:$0xff]
      %v2972 = vld [vmem:[%s2965 + $0x30] sm:$0xff]
      %v2973 = vld [vmem:[%s2965 + $0x38] sm:$0xff]
      %v2974 = vld [vmem:[%s2965 + $0x40] sm:$0xff]
      %v2975 = vld [vmem:[%s2965 + $0x48] sm:$0xff]
      %v2976 = vld [vmem:[%s2965 + $0x50] sm:$0xff]
      %v2977 = vld [vmem:[%s2965 + $0x58] sm:$0xff]
      %v2978 = vld [vmem:[%s2965 + $0x60] sm:$0xff]
      %v2979 = vld [vmem:[%s2965 + $0x68] sm:$0xff]
      %v2980 = vld [vmem:[%s2965 + $0x70] sm:$0xff]
      %v2981 = vld [vmem:[%s2965 + $0x78] sm:$0xff]
      %2982 = vmatpush.msra.mxu0 %v2981
      %2983 = vmatpush.msra.mxu0 %v2980
      %2984 = vmatpush.msra.mxu0 %v2979
      %2985 = vmatpush.msra.mxu0 %v2978
      %2986 = vmatpush.msra.mxu0 %v2977
      %2987 = vmatpush.msra.mxu0 %v2976
      %2988 = vmatpush.msra.mxu0 %v2975
      %2989 = vmatpush.msra.mxu0 %v2974
      %2990 = vmatpush.msra.mxu0 %v2973
      %2991 = vmatpush.msra.mxu0 %v2972
      %2992 = vmatpush.msra.mxu0 %v2971
      %2993 = vmatpush.msra.mxu0 %v2970
      %2994 = vmatpush.msra.mxu0 %v2969
      %2995 = vmatpush.msra.mxu0 %v2968
      %2996 = vmatpush.msra.mxu0 %v2967
      %2997 = vmatpush.msra.mxu0 %v2966
      %2998 = vmatmul.f32.gmra.mxu0 %v2957
      %v2999 = vpop.f32.mrf.mxu0
      %v3000 = vadd.f32 0.0, %v2999
      %3001 = vmatmul.f32.gmra.mxu0 %v2958
      %v3002 = vpop.f32.mrf.mxu0
      %v3003 = vadd.f32 0.0, %v3002
      %3004 = vmatmul.f32.gmra.mxu0 %v2959
      %v3005 = vpop.f32.mrf.mxu0
      %v3006 = vadd.f32 0.0, %v3005
      %3007 = vmatmul.f32.gmra.mxu0 %v2960
      %v3008 = vpop.f32.mrf.mxu0
      %v3009 = vadd.f32 0.0, %v3008
      %3010 = vmatmul.f32.gmra.mxu0 %v2961
      %v3011 = vpop.f32.mrf.mxu0
      %v3012 = vadd.f32 0.0, %v3011
      %3013 = vmatmul.f32.gmra.mxu0 %v2962
      %v3014 = vpop.f32.mrf.mxu0
      %v3015 = vadd.f32 0.0, %v3014
      %3016 = vmatmul.f32.gmra.mxu0 %v2963
      %v3017 = vpop.f32.mrf.mxu0
      %v3018 = vadd.f32 0.0, %v3017
      %3019 = vmatmul.f32.gmra.mxu0 %v2964
      %v3020 = vpop.f32.mrf.mxu0
      %v3021 = vadd.f32 0.0, %v3020
      %3022 = vdwg.mxu0
      %v3023 = vadd.f32 %v2940, %v3000
      %v3024 = vadd.f32 %v2941, %v3003
      %v3025 = vadd.f32 %v2942, %v3006
      %v3026 = vadd.f32 %v2943, %v3009
      %v3027 = vadd.f32 %v2944, %v3012
      %v3028 = vadd.f32 %v2945, %v3015
      %v3029 = vadd.f32 %v2946, %v3018
      %v3030 = vadd.f32 %v2947, %v3021
      %v3031 = vld [vmem:[%s2865 + $0x1] sm:$0xff]
      %v3032 = vld [vmem:[%s2865 + $0x11] sm:$0xff]
      %v3033 = vld [vmem:[%s2865 + $0x21] sm:$0xff]
      %v3034 = vld [vmem:[%s2865 + $0x31] sm:$0xff]
      %v3035 = vld [vmem:[%s2865 + $0x41] sm:$0xff]
      %v3036 = vld [vmem:[%s2865 + $0x51] sm:$0xff]
      %v3037 = vld [vmem:[%s2865 + $0x61] sm:$0xff]
      %v3038 = vld [vmem:[%s2865 + $0x71] sm:$0xff]
      %v3039 = vmax.f32 %v3031, 0.0
      %v3040 = vmax.f32 %v3032, 0.0
      %v3041 = vmax.f32 %v3033, 0.0
      %v3042 = vmax.f32 %v3034, 0.0
      %v3043 = vmax.f32 %v3035, 0.0
      %v3044 = vmax.f32 %v3036, 0.0
      %v3045 = vmax.f32 %v3037, 0.0
      %v3046 = vmax.f32 %v3038, 0.0
      %s3047 = scalar_lea.vmem %s168, 4480
      %v3048 = vld [vmem:[%s3047] sm:$0xff]
      %v3049 = vld [vmem:[%s3047 + $0x8] sm:$0xff]
      %v3050 = vld [vmem:[%s3047 + $0x10] sm:$0xff]
      %v3051 = vld [vmem:[%s3047 + $0x18] sm:$0xff]
      %v3052 = vld [vmem:[%s3047 + $0x20] sm:$0xff]
      %v3053 = vld [vmem:[%s3047 + $0x28] sm:$0xff]
      %v3054 = vld [vmem:[%s3047 + $0x30] sm:$0xff]
      %v3055 = vld [vmem:[%s3047 + $0x38] sm:$0xff]
      %v3056 = vld [vmem:[%s3047 + $0x40] sm:$0xff]
      %v3057 = vld [vmem:[%s3047 + $0x48] sm:$0xff]
      %v3058 = vld [vmem:[%s3047 + $0x50] sm:$0xff]
      %v3059 = vld [vmem:[%s3047 + $0x58] sm:$0xff]
      %v3060 = vld [vmem:[%s3047 + $0x60] sm:$0xff]
      %v3061 = vld [vmem:[%s3047 + $0x68] sm:$0xff]
      %v3062 = vld [vmem:[%s3047 + $0x70] sm:$0xff]
      %v3063 = vld [vmem:[%s3047 + $0x78] sm:$0xff]
      %3064 = vmatpush.msra.mxu0 %v3063
      %3065 = vmatpush.msra.mxu0 %v3062
      %3066 = vmatpush.msra.mxu0 %v3061
      %3067 = vmatpush.msra.mxu0 %v3060
      %3068 = vmatpush.msra.mxu0 %v3059
      %3069 = vmatpush.msra.mxu0 %v3058
      %3070 = vmatpush.msra.mxu0 %v3057
      %3071 = vmatpush.msra.mxu0 %v3056
      %3072 = vmatpush.msra.mxu0 %v3055
      %3073 = vmatpush.msra.mxu0 %v3054
      %3074 = vmatpush.msra.mxu0 %v3053
      %3075 = vmatpush.msra.mxu0 %v3052
      %3076 = vmatpush.msra.mxu0 %v3051
      %3077 = vmatpush.msra.mxu0 %v3050
      %3078 = vmatpush.msra.mxu0 %v3049
      %3079 = vmatpush.msra.mxu0 %v3048
      %3080 = vmatmul.f32.gmra.mxu0 %v3039
      %v3081 = vpop.f32.mrf.mxu0
      %v3082 = vadd.f32 0.0, %v3081
      %3083 = vmatmul.f32.gmra.mxu0 %v3040
      %v3084 = vpop.f32.mrf.mxu0
      %v3085 = vadd.f32 0.0, %v3084
      %3086 = vmatmul.f32.gmra.mxu0 %v3041
      %v3087 = vpop.f32.mrf.mxu0
      %v3088 = vadd.f32 0.0, %v3087
      %3089 = vmatmul.f32.gmra.mxu0 %v3042
      %v3090 = vpop.f32.mrf.mxu0
      %v3091 = vadd.f32 0.0, %v3090
      %3092 = vmatmul.f32.gmra.mxu0 %v3043
      %v3093 = vpop.f32.mrf.mxu0
      %v3094 = vadd.f32 0.0, %v3093
      %3095 = vmatmul.f32.gmra.mxu0 %v3044
      %v3096 = vpop.f32.mrf.mxu0
      %v3097 = vadd.f32 0.0, %v3096
      %3098 = vmatmul.f32.gmra.mxu0 %v3045
      %v3099 = vpop.f32.mrf.mxu0
      %v3100 = vadd.f32 0.0, %v3099
      %3101 = vmatmul.f32.gmra.mxu0 %v3046
      %v3102 = vpop.f32.mrf.mxu0
      %v3103 = vadd.f32 0.0, %v3102
      %3104 = vdwg.mxu0
      %v3105 = vadd.f32 %v3023, %v3082
      %v3106 = vadd.f32 %v3024, %v3085
      %v3107 = vadd.f32 %v3025, %v3088
      %v3108 = vadd.f32 %v3026, %v3091
      %v3109 = vadd.f32 %v3027, %v3094
      %v3110 = vadd.f32 %v3028, %v3097
      %v3111 = vadd.f32 %v3029, %v3100
      %v3112 = vadd.f32 %v3030, %v3103
      %s3113 = scalar_lea.vmem %s175, 192
      %3114 = vst [vmem:[%s3113] sm:$0xff] %v3105
      %3115 = vst [vmem:[%s3113 + $0x8] sm:$0xff] %v3106
      %3116 = vst [vmem:[%s3113 + $0x10] sm:$0xff] %v3107
      %3117 = vst [vmem:[%s3113 + $0x18] sm:$0xff] %v3108
      %3118 = vst [vmem:[%s3113 + $0x20] sm:$0xff] %v3109
      %3119 = vst [vmem:[%s3113 + $0x28] sm:$0xff] %v3110
      %3120 = vst [vmem:[%s3113 + $0x30] sm:$0xff] %v3111
      %3121 = vst [vmem:[%s3113 + $0x38] sm:$0xff] %v3112
      %s3122 = smul.u32 4, %s13
      %p3123 = scmp.lt.s32.totalorder %s3122, 15
      %s3124 = scalar_select %p3123, %s3122, 15
      %s3125 = smul.addr %s3124, 8
      %s3126 = smul.addr %s3125, 8
      %s3127 = scalar_lea.vmem %s2, %s3126
      // Predicated region
      $region29: #{relu_grouped_conv2d.1} parent=27 // pred_check
        %p3128 = pneg %p83
      $region30: #{relu_grouped_conv2d.1} parent=27 // pred_check_branch
        %3130 = sbr.rel (%p3128) target = $region32
      $region31: #{relu_grouped_conv2d.1} parent=27 // pred_region
        %s3131 = smul.u32 4, %s13
      $region32: #{relu_grouped_conv2d.1} parent=27 // pred_fallthru
        _
    $region28: #{relu_grouped_conv2d.1} parent=5 // pred_fallthru
      _
    %p3132 = scmp.le.s32.totalorder 2, %s8
    // Predicated region
    $region33: #{relu_grouped_conv2d.1} parent=5 // pred_check
      %p3133 = pneg %p3132
    $region34: #{relu_grouped_conv2d.1} parent=5 // pred_check_branch
      %3135 = sbr.rel (%p3133) target = $region36
    $region35: #{relu_grouped_conv2d.1} parent=5 // pred_region
      %s3136 = ssub.s32 %s8, 2
      // Predicated region
      $region37: #{relu_grouped_conv2d.1} parent=35 // pred_check
        %p3137 = pneg %p89
      $region38: #{relu_grouped_conv2d.1} parent=35 // pred_check_branch
        %3139 = sbr.rel (%p3137) target = $region40
      $region39: #{relu_grouped_conv2d.1} parent=35 // pred_region
        %s3140 = smul.u32 4, %s14
        %p3141 = scmp.lt.s32.totalorder %s3140, 15
        %s3142 = scalar_select %p3141, %s3140, 15
        %s3143 = smul.addr %s3142, 8
        %s3144 = smul.addr %s3143, 8
        %s3145 = scalar_lea.vmem %s2, %s3144
      $region40: #{relu_grouped_conv2d.1} parent=35 // pred_fallthru
        _
    $region36: #{relu_grouped_conv2d.1} parent=5 // pred_fallthru
      _
  $region6: #{relu_grouped_conv2d.1} parent=0 // loop_footer
    %s12 = sadd.s32 1, %s8
  $region7: #{relu_grouped_conv2d.1} parent=0 // loop_footer_branch
    %7 = sbr.rel target = $region3
  $region8: #{relu_grouped_conv2d.1} parent=0 // loop_exit
    _

</llo_original>
